<compile_context>
chip_gen: v5e
topology: v5e:2x2
jax: 0.10.0
libtpu: 0.0.40
codegen_flags: <defaults>
</compile_context>

<pallas_src>
import math
import functools

import jax
import jax.numpy as jnp
from jax import lax
from jax.experimental import pallas as pl
from jax.experimental.pallas import tpu as pltpu


# ----------------------------- config ---------------------------------------
class Config:
    image_size = 16
    patch_size = 4
    num_channels = 4
    hidden_size = 32
    num_attention_heads = 4
    intermediate_size = 64
    num_hidden_layers = 2
    layer_norm_eps = 1e-6
    attention_dropout = 0.0


CFG = Config()


# ----------------------------- kernel ----------------------------------------
def _layernorm(x, gamma, beta, eps):
    mu = jnp.mean(x, axis=-1, keepdims=True)
    var = jnp.mean((x - mu) ** 2, axis=-1, keepdims=True)
    return (x - mu) * lax.rsqrt(var + eps) * gamma + beta


def fused_siglip_kernel(
    patch_ref, pw_ref, pos_ref, lnb_ref, wqkv_ref, bqkv_ref,
    wo_ref, w1_ref, b1_ref, w2_ref, post_ref,
    out_ref,
    *, num_layers, num_heads, seq, nb, eps,
):
    """Whole SigLIP vision forward for `nb` batch elements stacked on sublanes.

    lnb_ref[l] rows: 0=ln1_g 1=ln1_b 2=ln2_g 3=ln2_b 4=out_proj bias 5=fc2 bias
    """
    D = pw_ref.shape[1]
    hd = D // num_heads
    scale = hd ** (-0.5)
    inv_sqrt2 = 1.0 / math.sqrt(2.0)

    # ---- patch embedding (Conv2d-as-matmul) + (pos_emb + conv bias) ----
    x = jnp.dot(patch_ref[...], pw_ref[...], preferred_element_type=jnp.float32)
    x = x + pos_ref[...]                                        # (nb*S, D)

    for l in range(num_layers):                                 # static unroll
        lnp = lnb_ref[l]                                        # (6, D)
        wo_l = wo_ref[l]                                        # (D, D)

        # ---- LayerNorm 1 + fused QKV projection over the folded batch ----
        h = _layernorm(x, lnp[0], lnp[1], eps)
        qkv = jnp.dot(h, wqkv_ref[l],
                      preferred_element_type=jnp.float32) + bqkv_ref[l]  # (nb*S, 3D)

        # ---- attention: per-batch (block-diagonal), per-head accumulation ----
        outs = []
        for b in range(nb):                                     # static batch loop
            r0 = b * seq
            q_b = qkv[r0:r0 + seq, 0:D]                         # (S, D)
            k_b = qkv[r0:r0 + seq, D:2 * D]                     # (S, D)
            v_b = qkv[r0:r0 + seq, 2 * D:3 * D]                 # (S, D)
            kT_b = k_b.T                                        # one transpose / batch / layer
            acc = jnp.zeros((seq, D), jnp.float32)
            for hi in range(num_heads):                         # static head loop
                c0 = hi * hd
                s = jnp.dot(q_b[:, c0:c0 + hd], kT_b[c0:c0 + hd, :],
                            preferred_element_type=jnp.float32) * scale
                s = s - jnp.max(s, axis=-1, keepdims=True)
                e = jnp.exp(s)
                p = e * pl.reciprocal(jnp.sum(e, axis=-1, keepdims=True),
                                      approx=True)
                head = jnp.dot(p, v_b[:, c0:c0 + hd],
                               preferred_element_type=jnp.float32)       # (S, hd)
                # fold out_proj per head: (S,hd) @ Wo[hd rows, :] -- free sublane slice
                acc = acc + jnp.dot(head, wo_l[c0:c0 + hd, :],
                                    preferred_element_type=jnp.float32)
            outs.append(acc)
        attn = outs[0] if nb == 1 else jnp.concatenate(outs, axis=0)     # sublane concat
        x = x + attn + lnp[4]                                   # + out_proj bias

        # ---- LayerNorm 2 + MLP (exact erf GELU, matches PyTorch F.gelu) ----
        h2 = _layernorm(x, lnp[2], lnp[3], eps)
        h1 = jnp.dot(h2, w1_ref[l],
                     preferred_element_type=jnp.float32) + b1_ref[l]
        g = 0.5 * h1 * (1.0 + lax.erf(h1 * inv_sqrt2))
        x = x + jnp.dot(g, w2_ref[l],
                        preferred_element_type=jnp.float32) + lnp[5]

    # ---- post layernorm ----
    out = _layernorm(x, post_ref[0], post_ref[1], eps)
    out_ref[...] = out.astype(out_ref.dtype)


# ----------------------------- wrapper ---------------------------------------
def extract_patches(pixel_values, patch_size):
    # NCHW -> (B, num_patches, C*P*P); flatten order (C, P, P) matches the
    # PyTorch Conv2d weight layout (D, C, P, P).
    B, C, H, W = pixel_values.shape
    P = patch_size
    x = pixel_values.reshape(B, C, H // P, P, W // P, P)
    x = x.transpose(0, 2, 4, 1, 3, 5)                           # (B, h, w, C, P, P)
    return x.reshape(B, (H // P) * (W // P), C * P * P)


def _device_is_v7x():
    try:
        kind = jax.devices()[0].device_kind.lower()
    except Exception:
        return False
    return ("v7" in kind) or ("7x" in kind)


def siglip_vision_model(pixel_values, params, cfg, fold_batch=None):
    B, C, H, W = pixel_values.shape
    P = cfg.patch_size
    N = (H // P) * (W // P)
    D = cfg.hidden_size
    I = cfg.intermediate_size
    L = cfg.num_hidden_layers
    CPP = C * P * P

    if fold_batch is None:
        # v5e/v6e: single TensorCore -> fold the whole batch into ONE grid step.
        # v7x: two TensorCores -> keep grid=(B,) "parallel" (one batch / core).
        fold_batch = not _device_is_v7x()

    nb = B if fold_batch else 1                # batch elements per grid step
    grid = (B // nb,)

    patches = extract_patches(pixel_values, P).reshape(B * N, CPP)
    # position embedding with the conv bias folded in, tiled over batch so a
    # single block spec serves both the folded and the per-batch grid path.
    pos = jnp.tile(params["pos_plus_convb"], (B, 1))            # (B*N, D)

    kernel = functools.partial(
        fused_siglip_kernel,
        num_layers=L, num_heads=cfg.num_attention_heads,
        seq=N, nb=nb, eps=cfg.layer_norm_eps)

    def fixed(shape):
        zeros = (0,) * len(shape)
        return pl.BlockSpec(shape, lambda i, _z=zeros: _z)

    out_flat = pl.pallas_call(
        kernel,
        out_shape=jax.ShapeDtypeStruct((B * N, D), jnp.float32),
        grid=grid,
        in_specs=[
            pl.BlockSpec((nb * N, CPP), lambda i: (i, 0)),      # patches
            fixed((CPP, D)),                                    # patch proj weight
            pl.BlockSpec((nb * N, D), lambda i: (i, 0)),        # pos_emb + conv bias
            fixed((L, 6, D)),                                   # ln1_g/b, ln2_g/b, bo, b2
            fixed((L, D, 3 * D)),                               # fused Wq|Wk|Wv
            fixed((L, 1, 3 * D)),                               # fused bq|bk|bv
            fixed((L, D, D)),                                   # Wo
            fixed((L, D, I)),                                   # fc1 W
            fixed((L, 1, I)),                                   # fc1 b
            fixed((L, I, D)),                                   # fc2 W
            fixed((2, D)),                                      # post LN gamma/beta
        ],
        out_specs=pl.BlockSpec((nb * N, D), lambda i: (i, 0)),
        compiler_params=pltpu.CompilerParams(
            dimension_semantics=("parallel",)),
    )(
        patches, params["patch_w"], pos,
        params["lnb"], params["wqkv"], params["bqkv"], params["wo"],
        params["w1"], params["b1"], params["w2"], params["post_ln"],
    )
    return out_flat.reshape(B, N, D)


# ----------------------------- params ----------------------------------------
def init_params(cfg, key):
    D = cfg.hidden_size
    I = cfg.intermediate_size
    C = cfg.num_channels
    P = cfg.patch_size
    N = (cfg.image_size // cfg.patch_size) ** 2
    L = cfg.num_hidden_layers

    keys = iter(jax.random.split(key, 8 + 16 * L))

    def nrm(k, shape, s=0.02):
        return (s * jax.random.normal(k, shape)).astype(jnp.float32)

    # Conv2d weight (D, C, P, P) flattened to (C*P*P, D) for x @ W.
    # TODO(synk): when loading a real checkpoint use weight.reshape(D, C*P*P).T
    patch_w = nrm(next(keys), (D, C * P * P)).T
    patch_b = nrm(next(keys), (1, D))
    pos_emb = nrm(next(keys), (N, D))

    params = {
        "patch_w": patch_w,
        "pos_plus_convb": pos_emb + patch_b,       # conv bias folded host-side
        "post_ln": jnp.concatenate(
            [jnp.ones((1, D), jnp.float32), jnp.zeros((1, D), jnp.float32)],
            axis=0),
    }

    lnb, wqkv, bqkv, wo, w1, b1, w2 = ([] for _ in range(7))
    for _ in range(L):
        # nn.Linear weight (out,in); stored transposed (in,out) for x @ W
        wq = nrm(next(keys), (D, D)).T
        wk = nrm(next(keys), (D, D)).T
        wv = nrm(next(keys), (D, D)).T
        wqkv.append(jnp.concatenate([wq, wk, wv], axis=1))              # (D, 3D)
        bqkv.append(jnp.concatenate([nrm(next(keys), (1, D)),
                                     nrm(next(keys), (1, D)),
                                     nrm(next(keys), (1, D))], axis=1))  # (1, 3D)
        wo.append(nrm(next(keys), (D, D)).T)                            # (D, D)
        bo = nrm(next(keys), (D,))
        w1.append(nrm(next(keys), (I, D)).T)                            # (D, I)
        b1.append(nrm(next(keys), (1, I)))
        w2.append(nrm(next(keys), (D, I)).T)                            # (I, D)
        b2 = nrm(next(keys), (D,))
        lnb.append(jnp.stack([jnp.ones((D,), jnp.float32),
                              jnp.zeros((D,), jnp.float32),
                              jnp.ones((D,), jnp.float32),
                              jnp.zeros((D,), jnp.float32),
                              bo, b2]))                                  # (6, D)

    params.update({
        "lnb": jnp.stack(lnb),         # (L, 6, D)
        "wqkv": jnp.stack(wqkv),       # (L, D, 3D)
        "bqkv": jnp.stack(bqkv),       # (L, 1, 3D)
        "wo": jnp.stack(wo),           # (L, D, D)
        "w1": jnp.stack(w1),           # (L, D, I)
        "b1": jnp.stack(b1),           # (L, 1, I)
        "w2": jnp.stack(w2),           # (L, I, D)
    })
    return params


# ----------------------------- main ------------------------------------------
if __name__ == "__main__":
    key = jax.random.PRNGKey(0)
    k_param, k_input = jax.random.split(key)

    params = init_params(CFG, k_param)
    pixel_values = jax.random.normal(
        k_input, (2, CFG.num_channels, CFG.image_size, CFG.image_size),
        dtype=jnp.float32)

    out = siglip_vision_model(pixel_values, params, CFG)
    out = jax.block_until_ready(out)

    expected_seq = (CFG.image_size // CFG.patch_size) ** 2
    assert out.shape == (2, expected_seq, CFG.hidden_size), out.shape
    assert bool(jnp.all(jnp.isfinite(out)))
    print("KERNEL_OK")
</pallas_src>

<mosaic_0001>
module attributes {stable_mosaic.version = 11 : i64} {
  func.func @fused_siglip_kernel(%arg0: i32, %arg1: memref<32x64xf32, #tpu.memory_space<vmem>>, %arg2: memref<64x32xf32, #tpu.memory_space<vmem>>, %arg3: memref<32x32xf32, #tpu.memory_space<vmem>>, %arg4: memref<2x6x32xf32, #tpu.memory_space<vmem>>, %arg5: memref<2x32x96xf32, #tpu.memory_space<vmem>>, %arg6: memref<2x1x96xf32, #tpu.memory_space<vmem>>, %arg7: memref<2x32x32xf32, #tpu.memory_space<vmem>>, %arg8: memref<2x32x64xf32, #tpu.memory_space<vmem>>, %arg9: memref<2x1x64xf32, #tpu.memory_space<vmem>>, %arg10: memref<2x64x32xf32, #tpu.memory_space<vmem>>, %arg11: memref<2x32xf32, #tpu.memory_space<vmem>>, %arg12: memref<32x32xf32, #tpu.memory_space<vmem>>) attributes {dimension_semantics = [#tpu.dimension_semantics<parallel>], iteration_bounds = array<i64: 1>, scalar_prefetch = 0 : i64, scratch_operands = 0 : i64, tpu.core_type = #tpu.core_type<tc>, window_params = [{transform_indices = @transform_0, window_bounds = array<i64: 32, 64>}, {pipeline_mode = #tpu.pipeline_mode<synchronous>, transform_indices = @transform_1, window_bounds = array<i64: 64, 32>}, {transform_indices = @transform_2, window_bounds = array<i64: 32, 32>}, {pipeline_mode = #tpu.pipeline_mode<synchronous>, transform_indices = @transform_3, window_bounds = array<i64: 2, 6, 32>}, {pipeline_mode = #tpu.pipeline_mode<synchronous>, transform_indices = @transform_4, window_bounds = array<i64: 2, 32, 96>}, {pipeline_mode = #tpu.pipeline_mode<synchronous>, transform_indices = @transform_5, window_bounds = array<i64: 2, 1, 96>}, {pipeline_mode = #tpu.pipeline_mode<synchronous>, transform_indices = @transform_6, window_bounds = array<i64: 2, 32, 32>}, {pipeline_mode = #tpu.pipeline_mode<synchronous>, transform_indices = @transform_7, window_bounds = array<i64: 2, 32, 64>}, {pipeline_mode = #tpu.pipeline_mode<synchronous>, transform_indices = @transform_8, window_bounds = array<i64: 2, 1, 64>}, {pipeline_mode = #tpu.pipeline_mode<synchronous>, transform_indices = @transform_9, window_bounds = array<i64: 2, 64, 32>}, {pipeline_mode = #tpu.pipeline_mode<synchronous>, transform_indices = @transform_10, window_bounds = array<i64: 2, 32>}, {transform_indices = @transform_11, window_bounds = array<i64: 32, 32>}]} {
    %c0 = arith.constant 0 : index
    %c0_0 = arith.constant 0 : index
    %0 = vector.load %arg1[%c0, %c0_0] : memref<32x64xf32, #tpu.memory_space<vmem>>, vector<32x64xf32>
    %c0_1 = arith.constant 0 : index
    %c0_2 = arith.constant 0 : index
    %1 = vector.load %arg2[%c0_1, %c0_2] : memref<64x32xf32, #tpu.memory_space<vmem>>, vector<64x32xf32>
    %cst = arith.constant dense<0.000000e+00> : vector<32x32xf32>
    %2 = tpu.matmul %0, %1, %cst {dimension_numbers = #tpu.dot_dimension_numbers<[1], [0], [0], [1], [0, 0, 1, 1], [], []>} : vector<32x64xf32>, vector<64x32xf32>, vector<32x32xf32> -> vector<32x32xf32>
    %c0_3 = arith.constant 0 : index
    %c0_4 = arith.constant 0 : index
    %3 = vector.load %arg3[%c0_3, %c0_4] : memref<32x32xf32, #tpu.memory_space<vmem>>, vector<32x32xf32>
    %4 = arith.addf %2, %3 : vector<32x32xf32>
    %c0_5 = arith.constant 0 : index
    %c0_6 = arith.constant 0 : index
    %c0_7 = arith.constant 0 : index
    %5 = vector.load %arg4[%c0_5, %c0_6, %c0_7] : memref<2x6x32xf32, #tpu.memory_space<vmem>>, vector<1x6x32xf32>
    %6 = vector.shape_cast %5 : vector<1x6x32xf32> to vector<6x32xf32>
    %c0_8 = arith.constant 0 : index
    %c0_9 = arith.constant 0 : index
    %c0_10 = arith.constant 0 : index
    %7 = vector.load %arg7[%c0_8, %c0_9, %c0_10] : memref<2x32x32xf32, #tpu.memory_space<vmem>>, vector<1x32x32xf32>
    %8 = vector.shape_cast %7 : vector<1x32x32xf32> to vector<32x32xf32>
    %9 = vector.extract_strided_slice %6 {offsets = [0, 0], sizes = [1, 32], strides = [1, 1]} : vector<6x32xf32> to vector<1x32xf32>
    %10 = vector.shape_cast %9 : vector<1x32xf32> to vector<32xf32>
    %11 = vector.extract_strided_slice %6 {offsets = [1, 0], sizes = [1, 32], strides = [1, 1]} : vector<6x32xf32> to vector<1x32xf32>
    %12 = vector.shape_cast %11 : vector<1x32xf32> to vector<32xf32>
    %cst_11 = arith.constant dense<0.000000e+00> : vector<32xf32>
    %13 = vector.multi_reduction <add>, %4, %cst_11 [1] : vector<32x32xf32> to vector<32xf32>
    %14 = vector.shape_cast %13 : vector<32xf32> to vector<32x1xf32>
    %cst_12 = arith.constant 3.200000e+01 : f32
    %15 = vector.broadcast %cst_12 : f32 to vector<32x1xf32>
    %16 = arith.divf %14, %15 : vector<32x1xf32>
    %17 = vector.broadcast %16 : vector<32x1xf32> to vector<32x32xf32>
    %18 = arith.subf %4, %17 : vector<32x32xf32>
    %19 = arith.mulf %18, %18 : vector<32x32xf32>
    %cst_13 = arith.constant dense<0.000000e+00> : vector<32xf32>
    %20 = vector.multi_reduction <add>, %19, %cst_13 [1] : vector<32x32xf32> to vector<32xf32>
    %21 = vector.shape_cast %20 : vector<32xf32> to vector<32x1xf32>
    %cst_14 = arith.constant 3.200000e+01 : f32
    %22 = vector.broadcast %cst_14 : f32 to vector<32x1xf32>
    %23 = arith.divf %21, %22 : vector<32x1xf32>
    %24 = vector.broadcast %16 : vector<32x1xf32> to vector<32x32xf32>
    %25 = arith.subf %4, %24 : vector<32x32xf32>
    %cst_15 = arith.constant 9.99999997E-7 : f32
    %26 = vector.broadcast %cst_15 : f32 to vector<32x1xf32>
    %27 = arith.addf %23, %26 : vector<32x1xf32>
    %28 = math.rsqrt %27 : vector<32x1xf32>
    %29 = vector.broadcast %28 : vector<32x1xf32> to vector<32x32xf32>
    %30 = arith.mulf %25, %29 : vector<32x32xf32>
    %31 = vector.shape_cast %10 : vector<32xf32> to vector<1x32xf32>
    %32 = vector.broadcast %31 : vector<1x32xf32> to vector<32x32xf32>
    %33 = arith.mulf %30, %32 : vector<32x32xf32>
    %34 = vector.shape_cast %12 : vector<32xf32> to vector<1x32xf32>
    %35 = vector.broadcast %34 : vector<1x32xf32> to vector<32x32xf32>
    %36 = arith.addf %33, %35 : vector<32x32xf32>
    %c0_16 = arith.constant 0 : index
    %c0_17 = arith.constant 0 : index
    %c0_18 = arith.constant 0 : index
    %37 = vector.load %arg5[%c0_16, %c0_17, %c0_18] : memref<2x32x96xf32, #tpu.memory_space<vmem>>, vector<1x32x96xf32>
    %38 = vector.shape_cast %37 : vector<1x32x96xf32> to vector<32x96xf32>
    %cst_19 = arith.constant dense<0.000000e+00> : vector<32x96xf32>
    %39 = tpu.matmul %36, %38, %cst_19 {dimension_numbers = #tpu.dot_dimension_numbers<[1], [0], [0], [1], [0, 0, 1, 1], [], []>} : vector<32x32xf32>, vector<32x96xf32>, vector<32x96xf32> -> vector<32x96xf32>
    %c0_20 = arith.constant 0 : index
    %c0_21 = arith.constant 0 : index
    %c0_22 = arith.constant 0 : index
    %40 = vector.load %arg6[%c0_20, %c0_21, %c0_22] : memref<2x1x96xf32, #tpu.memory_space<vmem>>, vector<1x1x96xf32>
    %41 = vector.shape_cast %40 : vector<1x1x96xf32> to vector<1x96xf32>
    %42 = vector.broadcast %41 : vector<1x96xf32> to vector<32x96xf32>
    %43 = arith.addf %39, %42 : vector<32x96xf32>
    %44 = vector.extract_strided_slice %43 {offsets = [0, 0], sizes = [16, 32], strides = [1, 1]} : vector<32x96xf32> to vector<16x32xf32>
    %45 = vector.extract_strided_slice %43 {offsets = [0, 32], sizes = [16, 32], strides = [1, 1]} : vector<32x96xf32> to vector<16x32xf32>
    %46 = vector.extract_strided_slice %43 {offsets = [0, 64], sizes = [16, 32], strides = [1, 1]} : vector<32x96xf32> to vector<16x32xf32>
    %47 = tpu.transpose %45, [1, 0] : vector<16x32xf32> -> vector<32x16xf32>
    %cst_23 = arith.constant 0.000000e+00 : f32
    %48 = vector.broadcast %cst_23 : f32 to vector<16x32xf32>
    %49 = vector.extract_strided_slice %44 {offsets = [0, 0], sizes = [16, 8], strides = [1, 1]} : vector<16x32xf32> to vector<16x8xf32>
    %50 = vector.extract_strided_slice %47 {offsets = [0, 0], sizes = [8, 16], strides = [1, 1]} : vector<32x16xf32> to vector<8x16xf32>
    %cst_24 = arith.constant dense<0.000000e+00> : vector<16x16xf32>
    %51 = tpu.matmul %49, %50, %cst_24 {dimension_numbers = #tpu.dot_dimension_numbers<[1], [0], [0], [1], [0, 0, 1, 1], [], []>} : vector<16x8xf32>, vector<8x16xf32>, vector<16x16xf32> -> vector<16x16xf32>
    %cst_25 = arith.constant 0.353553385 : f32
    %52 = vector.broadcast %cst_25 : f32 to vector<16x16xf32>
    %53 = arith.mulf %51, %52 : vector<16x16xf32>
    %cst_26 = arith.constant dense<0xFF800000> : vector<16xf32>
    %54 = vector.multi_reduction <maximumf>, %53, %cst_26 [1] : vector<16x16xf32> to vector<16xf32>
    %55 = vector.shape_cast %54 : vector<16xf32> to vector<16x1xf32>
    %56 = vector.broadcast %55 : vector<16x1xf32> to vector<16x16xf32>
    %57 = arith.subf %53, %56 : vector<16x16xf32>
    %58 = math.exp %57 : vector<16x16xf32>
    %cst_27 = arith.constant dense<0.000000e+00> : vector<16xf32>
    %59 = vector.multi_reduction <add>, %58, %cst_27 [1] : vector<16x16xf32> to vector<16xf32>
    %60 = vector.shape_cast %59 : vector<16xf32> to vector<16x1xf32>
    %61 = tpu.reciprocal %60 {approx = true} : vector<16x1xf32> -> vector<16x1xf32>
    %62 = vector.broadcast %61 : vector<16x1xf32> to vector<16x16xf32>
    %63 = arith.mulf %58, %62 : vector<16x16xf32>
    %64 = vector.extract_strided_slice %46 {offsets = [0, 0], sizes = [16, 8], strides = [1, 1]} : vector<16x32xf32> to vector<16x8xf32>
    %cst_28 = arith.constant dense<0.000000e+00> : vector<16x8xf32>
    %65 = tpu.matmul %63, %64, %cst_28 {dimension_numbers = #tpu.dot_dimension_numbers<[1], [0], [0], [1], [0, 0, 1, 1], [], []>} : vector<16x16xf32>, vector<16x8xf32>, vector<16x8xf32> -> vector<16x8xf32>
    %66 = vector.extract_strided_slice %8 {offsets = [0, 0], sizes = [8, 32], strides = [1, 1]} : vector<32x32xf32> to vector<8x32xf32>
    %cst_29 = arith.constant dense<0.000000e+00> : vector<16x32xf32>
    %67 = tpu.matmul %65, %66, %cst_29 {dimension_numbers = #tpu.dot_dimension_numbers<[1], [0], [0], [1], [0, 0, 1, 1], [], []>} : vector<16x8xf32>, vector<8x32xf32>, vector<16x32xf32> -> vector<16x32xf32>
    %68 = arith.addf %48, %67 : vector<16x32xf32>
    %69 = vector.extract_strided_slice %44 {offsets = [0, 8], sizes = [16, 8], strides = [1, 1]} : vector<16x32xf32> to vector<16x8xf32>
    %70 = vector.extract_strided_slice %47 {offsets = [8, 0], sizes = [8, 16], strides = [1, 1]} : vector<32x16xf32> to vector<8x16xf32>
    %cst_30 = arith.constant dense<0.000000e+00> : vector<16x16xf32>
    %71 = tpu.matmul %69, %70, %cst_30 {dimension_numbers = #tpu.dot_dimension_numbers<[1], [0], [0], [1], [0, 0, 1, 1], [], []>} : vector<16x8xf32>, vector<8x16xf32>, vector<16x16xf32> -> vector<16x16xf32>
    %cst_31 = arith.constant 0.353553385 : f32
    %72 = vector.broadcast %cst_31 : f32 to vector<16x16xf32>
    %73 = arith.mulf %71, %72 : vector<16x16xf32>
    %cst_32 = arith.constant dense<0xFF800000> : vector<16xf32>
    %74 = vector.multi_reduction <maximumf>, %73, %cst_32 [1] : vector<16x16xf32> to vector<16xf32>
    %75 = vector.shape_cast %74 : vector<16xf32> to vector<16x1xf32>
    %76 = vector.broadcast %75 : vector<16x1xf32> to vector<16x16xf32>
    %77 = arith.subf %73, %76 : vector<16x16xf32>
    %78 = math.exp %77 : vector<16x16xf32>
    %cst_33 = arith.constant dense<0.000000e+00> : vector<16xf32>
    %79 = vector.multi_reduction <add>, %78, %cst_33 [1] : vector<16x16xf32> to vector<16xf32>
    %80 = vector.shape_cast %79 : vector<16xf32> to vector<16x1xf32>
    %81 = tpu.reciprocal %80 {approx = true} : vector<16x1xf32> -> vector<16x1xf32>
    %82 = vector.broadcast %81 : vector<16x1xf32> to vector<16x16xf32>
    %83 = arith.mulf %78, %82 : vector<16x16xf32>
    %84 = vector.extract_strided_slice %46 {offsets = [0, 8], sizes = [16, 8], strides = [1, 1]} : vector<16x32xf32> to vector<16x8xf32>
    %cst_34 = arith.constant dense<0.000000e+00> : vector<16x8xf32>
    %85 = tpu.matmul %83, %84, %cst_34 {dimension_numbers = #tpu.dot_dimension_numbers<[1], [0], [0], [1], [0, 0, 1, 1], [], []>} : vector<16x16xf32>, vector<16x8xf32>, vector<16x8xf32> -> vector<16x8xf32>
    %86 = vector.extract_strided_slice %8 {offsets = [8, 0], sizes = [8, 32], strides = [1, 1]} : vector<32x32xf32> to vector<8x32xf32>
    %cst_35 = arith.constant dense<0.000000e+00> : vector<16x32xf32>
    %87 = tpu.matmul %85, %86, %cst_35 {dimension_numbers = #tpu.dot_dimension_numbers<[1], [0], [0], [1], [0, 0, 1, 1], [], []>} : vector<16x8xf32>, vector<8x32xf32>, vector<16x32xf32> -> vector<16x32xf32>
    %88 = arith.addf %68, %87 : vector<16x32xf32>
    %89 = vector.extract_strided_slice %44 {offsets = [0, 16], sizes = [16, 8], strides = [1, 1]} : vector<16x32xf32> to vector<16x8xf32>
    %90 = vector.extract_strided_slice %47 {offsets = [16, 0], sizes = [8, 16], strides = [1, 1]} : vector<32x16xf32> to vector<8x16xf32>
    %cst_36 = arith.constant dense<0.000000e+00> : vector<16x16xf32>
    %91 = tpu.matmul %89, %90, %cst_36 {dimension_numbers = #tpu.dot_dimension_numbers<[1], [0], [0], [1], [0, 0, 1, 1], [], []>} : vector<16x8xf32>, vector<8x16xf32>, vector<16x16xf32> -> vector<16x16xf32>
    %cst_37 = arith.constant 0.353553385 : f32
    %92 = vector.broadcast %cst_37 : f32 to vector<16x16xf32>
    %93 = arith.mulf %91, %92 : vector<16x16xf32>
    %cst_38 = arith.constant dense<0xFF800000> : vector<16xf32>
    %94 = vector.multi_reduction <maximumf>, %93, %cst_38 [1] : vector<16x16xf32> to vector<16xf32>
    %95 = vector.shape_cast %94 : vector<16xf32> to vector<16x1xf32>
    %96 = vector.broadcast %95 : vector<16x1xf32> to vector<16x16xf32>
    %97 = arith.subf %93, %96 : vector<16x16xf32>
    %98 = math.exp %97 : vector<16x16xf32>
    %cst_39 = arith.constant dense<0.000000e+00> : vector<16xf32>
    %99 = vector.multi_reduction <add>, %98, %cst_39 [1] : vector<16x16xf32> to vector<16xf32>
    %100 = vector.shape_cast %99 : vector<16xf32> to vector<16x1xf32>
    %101 = tpu.reciprocal %100 {approx = true} : vector<16x1xf32> -> vector<16x1xf32>
    %102 = vector.broadcast %101 : vector<16x1xf32> to vector<16x16xf32>
    %103 = arith.mulf %98, %102 : vector<16x16xf32>
    %104 = vector.extract_strided_slice %46 {offsets = [0, 16], sizes = [16, 8], strides = [1, 1]} : vector<16x32xf32> to vector<16x8xf32>
    %cst_40 = arith.constant dense<0.000000e+00> : vector<16x8xf32>
    %105 = tpu.matmul %103, %104, %cst_40 {dimension_numbers = #tpu.dot_dimension_numbers<[1], [0], [0], [1], [0, 0, 1, 1], [], []>} : vector<16x16xf32>, vector<16x8xf32>, vector<16x8xf32> -> vector<16x8xf32>
    %106 = vector.extract_strided_slice %8 {offsets = [16, 0], sizes = [8, 32], strides = [1, 1]} : vector<32x32xf32> to vector<8x32xf32>
    %cst_41 = arith.constant dense<0.000000e+00> : vector<16x32xf32>
    %107 = tpu.matmul %105, %106, %cst_41 {dimension_numbers = #tpu.dot_dimension_numbers<[1], [0], [0], [1], [0, 0, 1, 1], [], []>} : vector<16x8xf32>, vector<8x32xf32>, vector<16x32xf32> -> vector<16x32xf32>
    %108 = arith.addf %88, %107 : vector<16x32xf32>
    %109 = vector.extract_strided_slice %44 {offsets = [0, 24], sizes = [16, 8], strides = [1, 1]} : vector<16x32xf32> to vector<16x8xf32>
    %110 = vector.extract_strided_slice %47 {offsets = [24, 0], sizes = [8, 16], strides = [1, 1]} : vector<32x16xf32> to vector<8x16xf32>
    %cst_42 = arith.constant dense<0.000000e+00> : vector<16x16xf32>
    %111 = tpu.matmul %109, %110, %cst_42 {dimension_numbers = #tpu.dot_dimension_numbers<[1], [0], [0], [1], [0, 0, 1, 1], [], []>} : vector<16x8xf32>, vector<8x16xf32>, vector<16x16xf32> -> vector<16x16xf32>
    %cst_43 = arith.constant 0.353553385 : f32
    %112 = vector.broadcast %cst_43 : f32 to vector<16x16xf32>
    %113 = arith.mulf %111, %112 : vector<16x16xf32>
    %cst_44 = arith.constant dense<0xFF800000> : vector<16xf32>
    %114 = vector.multi_reduction <maximumf>, %113, %cst_44 [1] : vector<16x16xf32> to vector<16xf32>
    %115 = vector.shape_cast %114 : vector<16xf32> to vector<16x1xf32>
    %116 = vector.broadcast %115 : vector<16x1xf32> to vector<16x16xf32>
    %117 = arith.subf %113, %116 : vector<16x16xf32>
    %118 = math.exp %117 : vector<16x16xf32>
    %cst_45 = arith.constant dense<0.000000e+00> : vector<16xf32>
    %119 = vector.multi_reduction <add>, %118, %cst_45 [1] : vector<16x16xf32> to vector<16xf32>
    %120 = vector.shape_cast %119 : vector<16xf32> to vector<16x1xf32>
    %121 = tpu.reciprocal %120 {approx = true} : vector<16x1xf32> -> vector<16x1xf32>
    %122 = vector.broadcast %121 : vector<16x1xf32> to vector<16x16xf32>
    %123 = arith.mulf %118, %122 : vector<16x16xf32>
    %124 = vector.extract_strided_slice %46 {offsets = [0, 24], sizes = [16, 8], strides = [1, 1]} : vector<16x32xf32> to vector<16x8xf32>
    %cst_46 = arith.constant dense<0.000000e+00> : vector<16x8xf32>
    %125 = tpu.matmul %123, %124, %cst_46 {dimension_numbers = #tpu.dot_dimension_numbers<[1], [0], [0], [1], [0, 0, 1, 1], [], []>} : vector<16x16xf32>, vector<16x8xf32>, vector<16x8xf32> -> vector<16x8xf32>
    %126 = vector.extract_strided_slice %8 {offsets = [24, 0], sizes = [8, 32], strides = [1, 1]} : vector<32x32xf32> to vector<8x32xf32>
    %cst_47 = arith.constant dense<0.000000e+00> : vector<16x32xf32>
    %127 = tpu.matmul %125, %126, %cst_47 {dimension_numbers = #tpu.dot_dimension_numbers<[1], [0], [0], [1], [0, 0, 1, 1], [], []>} : vector<16x8xf32>, vector<8x32xf32>, vector<16x32xf32> -> vector<16x32xf32>
    %128 = arith.addf %108, %127 : vector<16x32xf32>
    %129 = vector.extract_strided_slice %43 {offsets = [16, 0], sizes = [16, 32], strides = [1, 1]} : vector<32x96xf32> to vector<16x32xf32>
    %130 = vector.extract_strided_slice %43 {offsets = [16, 32], sizes = [16, 32], strides = [1, 1]} : vector<32x96xf32> to vector<16x32xf32>
    %131 = vector.extract_strided_slice %43 {offsets = [16, 64], sizes = [16, 32], strides = [1, 1]} : vector<32x96xf32> to vector<16x32xf32>
    %132 = tpu.transpose %130, [1, 0] : vector<16x32xf32> -> vector<32x16xf32>
    %cst_48 = arith.constant 0.000000e+00 : f32
    %133 = vector.broadcast %cst_48 : f32 to vector<16x32xf32>
    %134 = vector.extract_strided_slice %129 {offsets = [0, 0], sizes = [16, 8], strides = [1, 1]} : vector<16x32xf32> to vector<16x8xf32>
    %135 = vector.extract_strided_slice %132 {offsets = [0, 0], sizes = [8, 16], strides = [1, 1]} : vector<32x16xf32> to vector<8x16xf32>
    %cst_49 = arith.constant dense<0.000000e+00> : vector<16x16xf32>
    %136 = tpu.matmul %134, %135, %cst_49 {dimension_numbers = #tpu.dot_dimension_numbers<[1], [0], [0], [1], [0, 0, 1, 1], [], []>} : vector<16x8xf32>, vector<8x16xf32>, vector<16x16xf32> -> vector<16x16xf32>
    %cst_50 = arith.constant 0.353553385 : f32
    %137 = vector.broadcast %cst_50 : f32 to vector<16x16xf32>
    %138 = arith.mulf %136, %137 : vector<16x16xf32>
    %cst_51 = arith.constant dense<0xFF800000> : vector<16xf32>
    %139 = vector.multi_reduction <maximumf>, %138, %cst_51 [1] : vector<16x16xf32> to vector<16xf32>
    %140 = vector.shape_cast %139 : vector<16xf32> to vector<16x1xf32>
    %141 = vector.broadcast %140 : vector<16x1xf32> to vector<16x16xf32>
    %142 = arith.subf %138, %141 : vector<16x16xf32>
    %143 = math.exp %142 : vector<16x16xf32>
    %cst_52 = arith.constant dense<0.000000e+00> : vector<16xf32>
    %144 = vector.multi_reduction <add>, %143, %cst_52 [1] : vector<16x16xf32> to vector<16xf32>
    %145 = vector.shape_cast %144 : vector<16xf32> to vector<16x1xf32>
    %146 = tpu.reciprocal %145 {approx = true} : vector<16x1xf32> -> vector<16x1xf32>
    %147 = vector.broadcast %146 : vector<16x1xf32> to vector<16x16xf32>
    %148 = arith.mulf %143, %147 : vector<16x16xf32>
    %149 = vector.extract_strided_slice %131 {offsets = [0, 0], sizes = [16, 8], strides = [1, 1]} : vector<16x32xf32> to vector<16x8xf32>
    %cst_53 = arith.constant dense<0.000000e+00> : vector<16x8xf32>
    %150 = tpu.matmul %148, %149, %cst_53 {dimension_numbers = #tpu.dot_dimension_numbers<[1], [0], [0], [1], [0, 0, 1, 1], [], []>} : vector<16x16xf32>, vector<16x8xf32>, vector<16x8xf32> -> vector<16x8xf32>
    %151 = vector.extract_strided_slice %8 {offsets = [0, 0], sizes = [8, 32], strides = [1, 1]} : vector<32x32xf32> to vector<8x32xf32>
    %cst_54 = arith.constant dense<0.000000e+00> : vector<16x32xf32>
    %152 = tpu.matmul %150, %151, %cst_54 {dimension_numbers = #tpu.dot_dimension_numbers<[1], [0], [0], [1], [0, 0, 1, 1], [], []>} : vector<16x8xf32>, vector<8x32xf32>, vector<16x32xf32> -> vector<16x32xf32>
    %153 = arith.addf %133, %152 : vector<16x32xf32>
    %154 = vector.extract_strided_slice %129 {offsets = [0, 8], sizes = [16, 8], strides = [1, 1]} : vector<16x32xf32> to vector<16x8xf32>
    %155 = vector.extract_strided_slice %132 {offsets = [8, 0], sizes = [8, 16], strides = [1, 1]} : vector<32x16xf32> to vector<8x16xf32>
    %cst_55 = arith.constant dense<0.000000e+00> : vector<16x16xf32>
    %156 = tpu.matmul %154, %155, %cst_55 {dimension_numbers = #tpu.dot_dimension_numbers<[1], [0], [0], [1], [0, 0, 1, 1], [], []>} : vector<16x8xf32>, vector<8x16xf32>, vector<16x16xf32> -> vector<16x16xf32>
    %cst_56 = arith.constant 0.353553385 : f32
    %157 = vector.broadcast %cst_56 : f32 to vector<16x16xf32>
    %158 = arith.mulf %156, %157 : vector<16x16xf32>
    %cst_57 = arith.constant dense<0xFF800000> : vector<16xf32>
    %159 = vector.multi_reduction <maximumf>, %158, %cst_57 [1] : vector<16x16xf32> to vector<16xf32>
    %160 = vector.shape_cast %159 : vector<16xf32> to vector<16x1xf32>
    %161 = vector.broadcast %160 : vector<16x1xf32> to vector<16x16xf32>
    %162 = arith.subf %158, %161 : vector<16x16xf32>
    %163 = math.exp %162 : vector<16x16xf32>
    %cst_58 = arith.constant dense<0.000000e+00> : vector<16xf32>
    %164 = vector.multi_reduction <add>, %163, %cst_58 [1] : vector<16x16xf32> to vector<16xf32>
    %165 = vector.shape_cast %164 : vector<16xf32> to vector<16x1xf32>
    %166 = tpu.reciprocal %165 {approx = true} : vector<16x1xf32> -> vector<16x1xf32>
    %167 = vector.broadcast %166 : vector<16x1xf32> to vector<16x16xf32>
    %168 = arith.mulf %163, %167 : vector<16x16xf32>
    %169 = vector.extract_strided_slice %131 {offsets = [0, 8], sizes = [16, 8], strides = [1, 1]} : vector<16x32xf32> to vector<16x8xf32>
    %cst_59 = arith.constant dense<0.000000e+00> : vector<16x8xf32>
    %170 = tpu.matmul %168, %169, %cst_59 {dimension_numbers = #tpu.dot_dimension_numbers<[1], [0], [0], [1], [0, 0, 1, 1], [], []>} : vector<16x16xf32>, vector<16x8xf32>, vector<16x8xf32> -> vector<16x8xf32>
    %171 = vector.extract_strided_slice %8 {offsets = [8, 0], sizes = [8, 32], strides = [1, 1]} : vector<32x32xf32> to vector<8x32xf32>
    %cst_60 = arith.constant dense<0.000000e+00> : vector<16x32xf32>
    %172 = tpu.matmul %170, %171, %cst_60 {dimension_numbers = #tpu.dot_dimension_numbers<[1], [0], [0], [1], [0, 0, 1, 1], [], []>} : vector<16x8xf32>, vector<8x32xf32>, vector<16x32xf32> -> vector<16x32xf32>
    %173 = arith.addf %153, %172 : vector<16x32xf32>
    %174 = vector.extract_strided_slice %129 {offsets = [0, 16], sizes = [16, 8], strides = [1, 1]} : vector<16x32xf32> to vector<16x8xf32>
    %175 = vector.extract_strided_slice %132 {offsets = [16, 0], sizes = [8, 16], strides = [1, 1]} : vector<32x16xf32> to vector<8x16xf32>
    %cst_61 = arith.constant dense<0.000000e+00> : vector<16x16xf32>
    %176 = tpu.matmul %174, %175, %cst_61 {dimension_numbers = #tpu.dot_dimension_numbers<[1], [0], [0], [1], [0, 0, 1, 1], [], []>} : vector<16x8xf32>, vector<8x16xf32>, vector<16x16xf32> -> vector<16x16xf32>
    %cst_62 = arith.constant 0.353553385 : f32
    %177 = vector.broadcast %cst_62 : f32 to vector<16x16xf32>
    %178 = arith.mulf %176, %177 : vector<16x16xf32>
    %cst_63 = arith.constant dense<0xFF800000> : vector<16xf32>
    %179 = vector.multi_reduction <maximumf>, %178, %cst_63 [1] : vector<16x16xf32> to vector<16xf32>
    %180 = vector.shape_cast %179 : vector<16xf32> to vector<16x1xf32>
    %181 = vector.broadcast %180 : vector<16x1xf32> to vector<16x16xf32>
    %182 = arith.subf %178, %181 : vector<16x16xf32>
    %183 = math.exp %182 : vector<16x16xf32>
    %cst_64 = arith.constant dense<0.000000e+00> : vector<16xf32>
    %184 = vector.multi_reduction <add>, %183, %cst_64 [1] : vector<16x16xf32> to vector<16xf32>
    %185 = vector.shape_cast %184 : vector<16xf32> to vector<16x1xf32>
    %186 = tpu.reciprocal %185 {approx = true} : vector<16x1xf32> -> vector<16x1xf32>
    %187 = vector.broadcast %186 : vector<16x1xf32> to vector<16x16xf32>
    %188 = arith.mulf %183, %187 : vector<16x16xf32>
    %189 = vector.extract_strided_slice %131 {offsets = [0, 16], sizes = [16, 8], strides = [1, 1]} : vector<16x32xf32> to vector<16x8xf32>
    %cst_65 = arith.constant dense<0.000000e+00> : vector<16x8xf32>
    %190 = tpu.matmul %188, %189, %cst_65 {dimension_numbers = #tpu.dot_dimension_numbers<[1], [0], [0], [1], [0, 0, 1, 1], [], []>} : vector<16x16xf32>, vector<16x8xf32>, vector<16x8xf32> -> vector<16x8xf32>
    %191 = vector.extract_strided_slice %8 {offsets = [16, 0], sizes = [8, 32], strides = [1, 1]} : vector<32x32xf32> to vector<8x32xf32>
    %cst_66 = arith.constant dense<0.000000e+00> : vector<16x32xf32>
    %192 = tpu.matmul %190, %191, %cst_66 {dimension_numbers = #tpu.dot_dimension_numbers<[1], [0], [0], [1], [0, 0, 1, 1], [], []>} : vector<16x8xf32>, vector<8x32xf32>, vector<16x32xf32> -> vector<16x32xf32>
    %193 = arith.addf %173, %192 : vector<16x32xf32>
    %194 = vector.extract_strided_slice %129 {offsets = [0, 24], sizes = [16, 8], strides = [1, 1]} : vector<16x32xf32> to vector<16x8xf32>
    %195 = vector.extract_strided_slice %132 {offsets = [24, 0], sizes = [8, 16], strides = [1, 1]} : vector<32x16xf32> to vector<8x16xf32>
    %cst_67 = arith.constant dense<0.000000e+00> : vector<16x16xf32>
    %196 = tpu.matmul %194, %195, %cst_67 {dimension_numbers = #tpu.dot_dimension_numbers<[1], [0], [0], [1], [0, 0, 1, 1], [], []>} : vector<16x8xf32>, vector<8x16xf32>, vector<16x16xf32> -> vector<16x16xf32>
    %cst_68 = arith.constant 0.353553385 : f32
    %197 = vector.broadcast %cst_68 : f32 to vector<16x16xf32>
    %198 = arith.mulf %196, %197 : vector<16x16xf32>
    %cst_69 = arith.constant dense<0xFF800000> : vector<16xf32>
    %199 = vector.multi_reduction <maximumf>, %198, %cst_69 [1] : vector<16x16xf32> to vector<16xf32>
    %200 = vector.shape_cast %199 : vector<16xf32> to vector<16x1xf32>
    %201 = vector.broadcast %200 : vector<16x1xf32> to vector<16x16xf32>
    %202 = arith.subf %198, %201 : vector<16x16xf32>
    %203 = math.exp %202 : vector<16x16xf32>
    %cst_70 = arith.constant dense<0.000000e+00> : vector<16xf32>
    %204 = vector.multi_reduction <add>, %203, %cst_70 [1] : vector<16x16xf32> to vector<16xf32>
    %205 = vector.shape_cast %204 : vector<16xf32> to vector<16x1xf32>
    %206 = tpu.reciprocal %205 {approx = true} : vector<16x1xf32> -> vector<16x1xf32>
    %207 = vector.broadcast %206 : vector<16x1xf32> to vector<16x16xf32>
    %208 = arith.mulf %203, %207 : vector<16x16xf32>
    %209 = vector.extract_strided_slice %131 {offsets = [0, 24], sizes = [16, 8], strides = [1, 1]} : vector<16x32xf32> to vector<16x8xf32>
    %cst_71 = arith.constant dense<0.000000e+00> : vector<16x8xf32>
    %210 = tpu.matmul %208, %209, %cst_71 {dimension_numbers = #tpu.dot_dimension_numbers<[1], [0], [0], [1], [0, 0, 1, 1], [], []>} : vector<16x16xf32>, vector<16x8xf32>, vector<16x8xf32> -> vector<16x8xf32>
    %211 = vector.extract_strided_slice %8 {offsets = [24, 0], sizes = [8, 32], strides = [1, 1]} : vector<32x32xf32> to vector<8x32xf32>
    %cst_72 = arith.constant dense<0.000000e+00> : vector<16x32xf32>
    %212 = tpu.matmul %210, %211, %cst_72 {dimension_numbers = #tpu.dot_dimension_numbers<[1], [0], [0], [1], [0, 0, 1, 1], [], []>} : vector<16x8xf32>, vector<8x32xf32>, vector<16x32xf32> -> vector<16x32xf32>
    %213 = arith.addf %193, %212 : vector<16x32xf32>
    %214 = tpu.concatenate %128, %213 in 0 : vector<16x32xf32>, vector<16x32xf32> -> vector<32x32xf32>
    %215 = arith.addf %4, %214 : vector<32x32xf32>
    %216 = vector.extract_strided_slice %6 {offsets = [4, 0], sizes = [1, 32], strides = [1, 1]} : vector<6x32xf32> to vector<1x32xf32>
    %217 = vector.shape_cast %216 : vector<1x32xf32> to vector<32xf32>
    %218 = vector.shape_cast %217 : vector<32xf32> to vector<1x32xf32>
    %219 = vector.broadcast %218 : vector<1x32xf32> to vector<32x32xf32>
    %220 = arith.addf %215, %219 : vector<32x32xf32>
    %221 = vector.extract_strided_slice %6 {offsets = [2, 0], sizes = [1, 32], strides = [1, 1]} : vector<6x32xf32> to vector<1x32xf32>
    %222 = vector.shape_cast %221 : vector<1x32xf32> to vector<32xf32>
    %223 = vector.extract_strided_slice %6 {offsets = [3, 0], sizes = [1, 32], strides = [1, 1]} : vector<6x32xf32> to vector<1x32xf32>
    %224 = vector.shape_cast %223 : vector<1x32xf32> to vector<32xf32>
    %cst_73 = arith.constant dense<0.000000e+00> : vector<32xf32>
    %225 = vector.multi_reduction <add>, %220, %cst_73 [1] : vector<32x32xf32> to vector<32xf32>
    %226 = vector.shape_cast %225 : vector<32xf32> to vector<32x1xf32>
    %cst_74 = arith.constant 3.200000e+01 : f32
    %227 = vector.broadcast %cst_74 : f32 to vector<32x1xf32>
    %228 = arith.divf %226, %227 : vector<32x1xf32>
    %229 = vector.broadcast %228 : vector<32x1xf32> to vector<32x32xf32>
    %230 = arith.subf %220, %229 : vector<32x32xf32>
    %231 = arith.mulf %230, %230 : vector<32x32xf32>
    %cst_75 = arith.constant dense<0.000000e+00> : vector<32xf32>
    %232 = vector.multi_reduction <add>, %231, %cst_75 [1] : vector<32x32xf32> to vector<32xf32>
    %233 = vector.shape_cast %232 : vector<32xf32> to vector<32x1xf32>
    %cst_76 = arith.constant 3.200000e+01 : f32
    %234 = vector.broadcast %cst_76 : f32 to vector<32x1xf32>
    %235 = arith.divf %233, %234 : vector<32x1xf32>
    %236 = vector.broadcast %228 : vector<32x1xf32> to vector<32x32xf32>
    %237 = arith.subf %220, %236 : vector<32x32xf32>
    %cst_77 = arith.constant 9.99999997E-7 : f32
    %238 = vector.broadcast %cst_77 : f32 to vector<32x1xf32>
    %239 = arith.addf %235, %238 : vector<32x1xf32>
    %240 = math.rsqrt %239 : vector<32x1xf32>
    %241 = vector.broadcast %240 : vector<32x1xf32> to vector<32x32xf32>
    %242 = arith.mulf %237, %241 : vector<32x32xf32>
    %243 = vector.shape_cast %222 : vector<32xf32> to vector<1x32xf32>
    %244 = vector.broadcast %243 : vector<1x32xf32> to vector<32x32xf32>
    %245 = arith.mulf %242, %244 : vector<32x32xf32>
    %246 = vector.shape_cast %224 : vector<32xf32> to vector<1x32xf32>
    %247 = vector.broadcast %246 : vector<1x32xf32> to vector<32x32xf32>
    %248 = arith.addf %245, %247 : vector<32x32xf32>
    %c0_78 = arith.constant 0 : index
    %c0_79 = arith.constant 0 : index
    %c0_80 = arith.constant 0 : index
    %249 = vector.load %arg8[%c0_78, %c0_79, %c0_80] : memref<2x32x64xf32, #tpu.memory_space<vmem>>, vector<1x32x64xf32>
    %250 = vector.shape_cast %249 : vector<1x32x64xf32> to vector<32x64xf32>
    %cst_81 = arith.constant dense<0.000000e+00> : vector<32x64xf32>
    %251 = tpu.matmul %248, %250, %cst_81 {dimension_numbers = #tpu.dot_dimension_numbers<[1], [0], [0], [1], [0, 0, 1, 1], [], []>} : vector<32x32xf32>, vector<32x64xf32>, vector<32x64xf32> -> vector<32x64xf32>
    %c0_82 = arith.constant 0 : index
    %c0_83 = arith.constant 0 : index
    %c0_84 = arith.constant 0 : index
    %252 = vector.load %arg9[%c0_82, %c0_83, %c0_84] : memref<2x1x64xf32, #tpu.memory_space<vmem>>, vector<1x1x64xf32>
    %253 = vector.shape_cast %252 : vector<1x1x64xf32> to vector<1x64xf32>
    %254 = vector.broadcast %253 : vector<1x64xf32> to vector<32x64xf32>
    %255 = arith.addf %251, %254 : vector<32x64xf32>
    %cst_85 = arith.constant 5.000000e-01 : f32
    %256 = vector.broadcast %cst_85 : f32 to vector<32x64xf32>
    %257 = arith.mulf %256, %255 : vector<32x64xf32>
    %cst_86 = arith.constant 0.707106769 : f32
    %258 = vector.broadcast %cst_86 : f32 to vector<32x64xf32>
    %259 = arith.mulf %255, %258 : vector<32x64xf32>
    %260 = math.erf %259 : vector<32x64xf32>
    %cst_87 = arith.constant 1.000000e+00 : f32
    %261 = vector.broadcast %cst_87 : f32 to vector<32x64xf32>
    %262 = arith.addf %261, %260 : vector<32x64xf32>
    %263 = arith.mulf %257, %262 : vector<32x64xf32>
    %c0_88 = arith.constant 0 : index
    %c0_89 = arith.constant 0 : index
    %c0_90 = arith.constant 0 : index
    %264 = vector.load %arg10[%c0_88, %c0_89, %c0_90] : memref<2x64x32xf32, #tpu.memory_space<vmem>>, vector<1x64x32xf32>
    %265 = vector.shape_cast %264 : vector<1x64x32xf32> to vector<64x32xf32>
    %cst_91 = arith.constant dense<0.000000e+00> : vector<32x32xf32>
    %266 = tpu.matmul %263, %265, %cst_91 {dimension_numbers = #tpu.dot_dimension_numbers<[1], [0], [0], [1], [0, 0, 1, 1], [], []>} : vector<32x64xf32>, vector<64x32xf32>, vector<32x32xf32> -> vector<32x32xf32>
    %267 = arith.addf %220, %266 : vector<32x32xf32>
    %268 = vector.extract_strided_slice %6 {offsets = [5, 0], sizes = [1, 32], strides = [1, 1]} : vector<6x32xf32> to vector<1x32xf32>
    %269 = vector.shape_cast %268 : vector<1x32xf32> to vector<32xf32>
    %270 = vector.shape_cast %269 : vector<32xf32> to vector<1x32xf32>
    %271 = vector.broadcast %270 : vector<1x32xf32> to vector<32x32xf32>
    %272 = arith.addf %267, %271 : vector<32x32xf32>
    %c1 = arith.constant 1 : index
    %c0_92 = arith.constant 0 : index
    %c0_93 = arith.constant 0 : index
    %273 = vector.load %arg4[%c1, %c0_92, %c0_93] : memref<2x6x32xf32, #tpu.memory_space<vmem>>, vector<1x6x32xf32>
    %274 = vector.shape_cast %273 : vector<1x6x32xf32> to vector<6x32xf32>
    %c1_94 = arith.constant 1 : index
    %c0_95 = arith.constant 0 : index
    %c0_96 = arith.constant 0 : index
    %275 = vector.load %arg7[%c1_94, %c0_95, %c0_96] : memref<2x32x32xf32, #tpu.memory_space<vmem>>, vector<1x32x32xf32>
    %276 = vector.shape_cast %275 : vector<1x32x32xf32> to vector<32x32xf32>
    %277 = vector.extract_strided_slice %274 {offsets = [0, 0], sizes = [1, 32], strides = [1, 1]} : vector<6x32xf32> to vector<1x32xf32>
    %278 = vector.shape_cast %277 : vector<1x32xf32> to vector<32xf32>
    %279 = vector.extract_strided_slice %274 {offsets = [1, 0], sizes = [1, 32], strides = [1, 1]} : vector<6x32xf32> to vector<1x32xf32>
    %280 = vector.shape_cast %279 : vector<1x32xf32> to vector<32xf32>
    %cst_97 = arith.constant dense<0.000000e+00> : vector<32xf32>
    %281 = vector.multi_reduction <add>, %272, %cst_97 [1] : vector<32x32xf32> to vector<32xf32>
    %282 = vector.shape_cast %281 : vector<32xf32> to vector<32x1xf32>
    %cst_98 = arith.constant 3.200000e+01 : f32
    %283 = vector.broadcast %cst_98 : f32 to vector<32x1xf32>
    %284 = arith.divf %282, %283 : vector<32x1xf32>
    %285 = vector.broadcast %284 : vector<32x1xf32> to vector<32x32xf32>
    %286 = arith.subf %272, %285 : vector<32x32xf32>
    %287 = arith.mulf %286, %286 : vector<32x32xf32>
    %cst_99 = arith.constant dense<0.000000e+00> : vector<32xf32>
    %288 = vector.multi_reduction <add>, %287, %cst_99 [1] : vector<32x32xf32> to vector<32xf32>
    %289 = vector.shape_cast %288 : vector<32xf32> to vector<32x1xf32>
    %cst_100 = arith.constant 3.200000e+01 : f32
    %290 = vector.broadcast %cst_100 : f32 to vector<32x1xf32>
    %291 = arith.divf %289, %290 : vector<32x1xf32>
    %292 = vector.broadcast %284 : vector<32x1xf32> to vector<32x32xf32>
    %293 = arith.subf %272, %292 : vector<32x32xf32>
    %cst_101 = arith.constant 9.99999997E-7 : f32
    %294 = vector.broadcast %cst_101 : f32 to vector<32x1xf32>
    %295 = arith.addf %291, %294 : vector<32x1xf32>
    %296 = math.rsqrt %295 : vector<32x1xf32>
    %297 = vector.broadcast %296 : vector<32x1xf32> to vector<32x32xf32>
    %298 = arith.mulf %293, %297 : vector<32x32xf32>
    %299 = vector.shape_cast %278 : vector<32xf32> to vector<1x32xf32>
    %300 = vector.broadcast %299 : vector<1x32xf32> to vector<32x32xf32>
    %301 = arith.mulf %298, %300 : vector<32x32xf32>
    %302 = vector.shape_cast %280 : vector<32xf32> to vector<1x32xf32>
    %303 = vector.broadcast %302 : vector<1x32xf32> to vector<32x32xf32>
    %304 = arith.addf %301, %303 : vector<32x32xf32>
    %c1_102 = arith.constant 1 : index
    %c0_103 = arith.constant 0 : index
    %c0_104 = arith.constant 0 : index
    %305 = vector.load %arg5[%c1_102, %c0_103, %c0_104] : memref<2x32x96xf32, #tpu.memory_space<vmem>>, vector<1x32x96xf32>
    %306 = vector.shape_cast %305 : vector<1x32x96xf32> to vector<32x96xf32>
    %cst_105 = arith.constant dense<0.000000e+00> : vector<32x96xf32>
    %307 = tpu.matmul %304, %306, %cst_105 {dimension_numbers = #tpu.dot_dimension_numbers<[1], [0], [0], [1], [0, 0, 1, 1], [], []>} : vector<32x32xf32>, vector<32x96xf32>, vector<32x96xf32> -> vector<32x96xf32>
    %c1_106 = arith.constant 1 : index
    %c0_107 = arith.constant 0 : index
    %c0_108 = arith.constant 0 : index
    %308 = vector.load %arg6[%c1_106, %c0_107, %c0_108] : memref<2x1x96xf32, #tpu.memory_space<vmem>>, vector<1x1x96xf32>
    %309 = vector.shape_cast %308 : vector<1x1x96xf32> to vector<1x96xf32>
    %310 = vector.broadcast %309 : vector<1x96xf32> to vector<32x96xf32>
    %311 = arith.addf %307, %310 : vector<32x96xf32>
    %312 = vector.extract_strided_slice %311 {offsets = [0, 0], sizes = [16, 32], strides = [1, 1]} : vector<32x96xf32> to vector<16x32xf32>
    %313 = vector.extract_strided_slice %311 {offsets = [0, 32], sizes = [16, 32], strides = [1, 1]} : vector<32x96xf32> to vector<16x32xf32>
    %314 = vector.extract_strided_slice %311 {offsets = [0, 64], sizes = [16, 32], strides = [1, 1]} : vector<32x96xf32> to vector<16x32xf32>
    %315 = tpu.transpose %313, [1, 0] : vector<16x32xf32> -> vector<32x16xf32>
    %cst_109 = arith.constant 0.000000e+00 : f32
    %316 = vector.broadcast %cst_109 : f32 to vector<16x32xf32>
    %317 = vector.extract_strided_slice %312 {offsets = [0, 0], sizes = [16, 8], strides = [1, 1]} : vector<16x32xf32> to vector<16x8xf32>
    %318 = vector.extract_strided_slice %315 {offsets = [0, 0], sizes = [8, 16], strides = [1, 1]} : vector<32x16xf32> to vector<8x16xf32>
    %cst_110 = arith.constant dense<0.000000e+00> : vector<16x16xf32>
    %319 = tpu.matmul %317, %318, %cst_110 {dimension_numbers = #tpu.dot_dimension_numbers<[1], [0], [0], [1], [0, 0, 1, 1], [], []>} : vector<16x8xf32>, vector<8x16xf32>, vector<16x16xf32> -> vector<16x16xf32>
    %cst_111 = arith.constant 0.353553385 : f32
    %320 = vector.broadcast %cst_111 : f32 to vector<16x16xf32>
    %321 = arith.mulf %319, %320 : vector<16x16xf32>
    %cst_112 = arith.constant dense<0xFF800000> : vector<16xf32>
    %322 = vector.multi_reduction <maximumf>, %321, %cst_112 [1] : vector<16x16xf32> to vector<16xf32>
    %323 = vector.shape_cast %322 : vector<16xf32> to vector<16x1xf32>
    %324 = vector.broadcast %323 : vector<16x1xf32> to vector<16x16xf32>
    %325 = arith.subf %321, %324 : vector<16x16xf32>
    %326 = math.exp %325 : vector<16x16xf32>
    %cst_113 = arith.constant dense<0.000000e+00> : vector<16xf32>
    %327 = vector.multi_reduction <add>, %326, %cst_113 [1] : vector<16x16xf32> to vector<16xf32>
    %328 = vector.shape_cast %327 : vector<16xf32> to vector<16x1xf32>
    %329 = tpu.reciprocal %328 {approx = true} : vector<16x1xf32> -> vector<16x1xf32>
    %330 = vector.broadcast %329 : vector<16x1xf32> to vector<16x16xf32>
    %331 = arith.mulf %326, %330 : vector<16x16xf32>
    %332 = vector.extract_strided_slice %314 {offsets = [0, 0], sizes = [16, 8], strides = [1, 1]} : vector<16x32xf32> to vector<16x8xf32>
    %cst_114 = arith.constant dense<0.000000e+00> : vector<16x8xf32>
    %333 = tpu.matmul %331, %332, %cst_114 {dimension_numbers = #tpu.dot_dimension_numbers<[1], [0], [0], [1], [0, 0, 1, 1], [], []>} : vector<16x16xf32>, vector<16x8xf32>, vector<16x8xf32> -> vector<16x8xf32>
    %334 = vector.extract_strided_slice %276 {offsets = [0, 0], sizes = [8, 32], strides = [1, 1]} : vector<32x32xf32> to vector<8x32xf32>
    %cst_115 = arith.constant dense<0.000000e+00> : vector<16x32xf32>
    %335 = tpu.matmul %333, %334, %cst_115 {dimension_numbers = #tpu.dot_dimension_numbers<[1], [0], [0], [1], [0, 0, 1, 1], [], []>} : vector<16x8xf32>, vector<8x32xf32>, vector<16x32xf32> -> vector<16x32xf32>
    %336 = arith.addf %316, %335 : vector<16x32xf32>
    %337 = vector.extract_strided_slice %312 {offsets = [0, 8], sizes = [16, 8], strides = [1, 1]} : vector<16x32xf32> to vector<16x8xf32>
    %338 = vector.extract_strided_slice %315 {offsets = [8, 0], sizes = [8, 16], strides = [1, 1]} : vector<32x16xf32> to vector<8x16xf32>
    %cst_116 = arith.constant dense<0.000000e+00> : vector<16x16xf32>
    %339 = tpu.matmul %337, %338, %cst_116 {dimension_numbers = #tpu.dot_dimension_numbers<[1], [0], [0], [1], [0, 0, 1, 1], [], []>} : vector<16x8xf32>, vector<8x16xf32>, vector<16x16xf32> -> vector<16x16xf32>
    %cst_117 = arith.constant 0.353553385 : f32
    %340 = vector.broadcast %cst_117 : f32 to vector<16x16xf32>
    %341 = arith.mulf %339, %340 : vector<16x16xf32>
    %cst_118 = arith.constant dense<0xFF800000> : vector<16xf32>
    %342 = vector.multi_reduction <maximumf>, %341, %cst_118 [1] : vector<16x16xf32> to vector<16xf32>
    %343 = vector.shape_cast %342 : vector<16xf32> to vector<16x1xf32>
    %344 = vector.broadcast %343 : vector<16x1xf32> to vector<16x16xf32>
    %345 = arith.subf %341, %344 : vector<16x16xf32>
    %346 = math.exp %345 : vector<16x16xf32>
    %cst_119 = arith.constant dense<0.000000e+00> : vector<16xf32>
    %347 = vector.multi_reduction <add>, %346, %cst_119 [1] : vector<16x16xf32> to vector<16xf32>
    %348 = vector.shape_cast %347 : vector<16xf32> to vector<16x1xf32>
    %349 = tpu.reciprocal %348 {approx = true} : vector<16x1xf32> -> vector<16x1xf32>
    %350 = vector.broadcast %349 : vector<16x1xf32> to vector<16x16xf32>
    %351 = arith.mulf %346, %350 : vector<16x16xf32>
    %352 = vector.extract_strided_slice %314 {offsets = [0, 8], sizes = [16, 8], strides = [1, 1]} : vector<16x32xf32> to vector<16x8xf32>
    %cst_120 = arith.constant dense<0.000000e+00> : vector<16x8xf32>
    %353 = tpu.matmul %351, %352, %cst_120 {dimension_numbers = #tpu.dot_dimension_numbers<[1], [0], [0], [1], [0, 0, 1, 1], [], []>} : vector<16x16xf32>, vector<16x8xf32>, vector<16x8xf32> -> vector<16x8xf32>
    %354 = vector.extract_strided_slice %276 {offsets = [8, 0], sizes = [8, 32], strides = [1, 1]} : vector<32x32xf32> to vector<8x32xf32>
    %cst_121 = arith.constant dense<0.000000e+00> : vector<16x32xf32>
    %355 = tpu.matmul %353, %354, %cst_121 {dimension_numbers = #tpu.dot_dimension_numbers<[1], [0], [0], [1], [0, 0, 1, 1], [], []>} : vector<16x8xf32>, vector<8x32xf32>, vector<16x32xf32> -> vector<16x32xf32>
    %356 = arith.addf %336, %355 : vector<16x32xf32>
    %357 = vector.extract_strided_slice %312 {offsets = [0, 16], sizes = [16, 8], strides = [1, 1]} : vector<16x32xf32> to vector<16x8xf32>
    %358 = vector.extract_strided_slice %315 {offsets = [16, 0], sizes = [8, 16], strides = [1, 1]} : vector<32x16xf32> to vector<8x16xf32>
    %cst_122 = arith.constant dense<0.000000e+00> : vector<16x16xf32>
    %359 = tpu.matmul %357, %358, %cst_122 {dimension_numbers = #tpu.dot_dimension_numbers<[1], [0], [0], [1], [0, 0, 1, 1], [], []>} : vector<16x8xf32>, vector<8x16xf32>, vector<16x16xf32> -> vector<16x16xf32>
    %cst_123 = arith.constant 0.353553385 : f32
    %360 = vector.broadcast %cst_123 : f32 to vector<16x16xf32>
    %361 = arith.mulf %359, %360 : vector<16x16xf32>
    %cst_124 = arith.constant dense<0xFF800000> : vector<16xf32>
    %362 = vector.multi_reduction <maximumf>, %361, %cst_124 [1] : vector<16x16xf32> to vector<16xf32>
    %363 = vector.shape_cast %362 : vector<16xf32> to vector<16x1xf32>
    %364 = vector.broadcast %363 : vector<16x1xf32> to vector<16x16xf32>
    %365 = arith.subf %361, %364 : vector<16x16xf32>
    %366 = math.exp %365 : vector<16x16xf32>
    %cst_125 = arith.constant dense<0.000000e+00> : vector<16xf32>
    %367 = vector.multi_reduction <add>, %366, %cst_125 [1] : vector<16x16xf32> to vector<16xf32>
    %368 = vector.shape_cast %367 : vector<16xf32> to vector<16x1xf32>
    %369 = tpu.reciprocal %368 {approx = true} : vector<16x1xf32> -> vector<16x1xf32>
    %370 = vector.broadcast %369 : vector<16x1xf32> to vector<16x16xf32>
    %371 = arith.mulf %366, %370 : vector<16x16xf32>
    %372 = vector.extract_strided_slice %314 {offsets = [0, 16], sizes = [16, 8], strides = [1, 1]} : vector<16x32xf32> to vector<16x8xf32>
    %cst_126 = arith.constant dense<0.000000e+00> : vector<16x8xf32>
    %373 = tpu.matmul %371, %372, %cst_126 {dimension_numbers = #tpu.dot_dimension_numbers<[1], [0], [0], [1], [0, 0, 1, 1], [], []>} : vector<16x16xf32>, vector<16x8xf32>, vector<16x8xf32> -> vector<16x8xf32>
    %374 = vector.extract_strided_slice %276 {offsets = [16, 0], sizes = [8, 32], strides = [1, 1]} : vector<32x32xf32> to vector<8x32xf32>
    %cst_127 = arith.constant dense<0.000000e+00> : vector<16x32xf32>
    %375 = tpu.matmul %373, %374, %cst_127 {dimension_numbers = #tpu.dot_dimension_numbers<[1], [0], [0], [1], [0, 0, 1, 1], [], []>} : vector<16x8xf32>, vector<8x32xf32>, vector<16x32xf32> -> vector<16x32xf32>
    %376 = arith.addf %356, %375 : vector<16x32xf32>
    %377 = vector.extract_strided_slice %312 {offsets = [0, 24], sizes = [16, 8], strides = [1, 1]} : vector<16x32xf32> to vector<16x8xf32>
    %378 = vector.extract_strided_slice %315 {offsets = [24, 0], sizes = [8, 16], strides = [1, 1]} : vector<32x16xf32> to vector<8x16xf32>
    %cst_128 = arith.constant dense<0.000000e+00> : vector<16x16xf32>
    %379 = tpu.matmul %377, %378, %cst_128 {dimension_numbers = #tpu.dot_dimension_numbers<[1], [0], [0], [1], [0, 0, 1, 1], [], []>} : vector<16x8xf32>, vector<8x16xf32>, vector<16x16xf32> -> vector<16x16xf32>
    %cst_129 = arith.constant 0.353553385 : f32
    %380 = vector.broadcast %cst_129 : f32 to vector<16x16xf32>
    %381 = arith.mulf %379, %380 : vector<16x16xf32>
    %cst_130 = arith.constant dense<0xFF800000> : vector<16xf32>
    %382 = vector.multi_reduction <maximumf>, %381, %cst_130 [1] : vector<16x16xf32> to vector<16xf32>
    %383 = vector.shape_cast %382 : vector<16xf32> to vector<16x1xf32>
    %384 = vector.broadcast %383 : vector<16x1xf32> to vector<16x16xf32>
    %385 = arith.subf %381, %384 : vector<16x16xf32>
    %386 = math.exp %385 : vector<16x16xf32>
    %cst_131 = arith.constant dense<0.000000e+00> : vector<16xf32>
    %387 = vector.multi_reduction <add>, %386, %cst_131 [1] : vector<16x16xf32> to vector<16xf32>
    %388 = vector.shape_cast %387 : vector<16xf32> to vector<16x1xf32>
    %389 = tpu.reciprocal %388 {approx = true} : vector<16x1xf32> -> vector<16x1xf32>
    %390 = vector.broadcast %389 : vector<16x1xf32> to vector<16x16xf32>
    %391 = arith.mulf %386, %390 : vector<16x16xf32>
    %392 = vector.extract_strided_slice %314 {offsets = [0, 24], sizes = [16, 8], strides = [1, 1]} : vector<16x32xf32> to vector<16x8xf32>
    %cst_132 = arith.constant dense<0.000000e+00> : vector<16x8xf32>
    %393 = tpu.matmul %391, %392, %cst_132 {dimension_numbers = #tpu.dot_dimension_numbers<[1], [0], [0], [1], [0, 0, 1, 1], [], []>} : vector<16x16xf32>, vector<16x8xf32>, vector<16x8xf32> -> vector<16x8xf32>
    %394 = vector.extract_strided_slice %276 {offsets = [24, 0], sizes = [8, 32], strides = [1, 1]} : vector<32x32xf32> to vector<8x32xf32>
    %cst_133 = arith.constant dense<0.000000e+00> : vector<16x32xf32>
    %395 = tpu.matmul %393, %394, %cst_133 {dimension_numbers = #tpu.dot_dimension_numbers<[1], [0], [0], [1], [0, 0, 1, 1], [], []>} : vector<16x8xf32>, vector<8x32xf32>, vector<16x32xf32> -> vector<16x32xf32>
    %396 = arith.addf %376, %395 : vector<16x32xf32>
    %397 = vector.extract_strided_slice %311 {offsets = [16, 0], sizes = [16, 32], strides = [1, 1]} : vector<32x96xf32> to vector<16x32xf32>
    %398 = vector.extract_strided_slice %311 {offsets = [16, 32], sizes = [16, 32], strides = [1, 1]} : vector<32x96xf32> to vector<16x32xf32>
    %399 = vector.extract_strided_slice %311 {offsets = [16, 64], sizes = [16, 32], strides = [1, 1]} : vector<32x96xf32> to vector<16x32xf32>
    %400 = tpu.transpose %398, [1, 0] : vector<16x32xf32> -> vector<32x16xf32>
    %cst_134 = arith.constant 0.000000e+00 : f32
    %401 = vector.broadcast %cst_134 : f32 to vector<16x32xf32>
    %402 = vector.extract_strided_slice %397 {offsets = [0, 0], sizes = [16, 8], strides = [1, 1]} : vector<16x32xf32> to vector<16x8xf32>
    %403 = vector.extract_strided_slice %400 {offsets = [0, 0], sizes = [8, 16], strides = [1, 1]} : vector<32x16xf32> to vector<8x16xf32>
    %cst_135 = arith.constant dense<0.000000e+00> : vector<16x16xf32>
    %404 = tpu.matmul %402, %403, %cst_135 {dimension_numbers = #tpu.dot_dimension_numbers<[1], [0], [0], [1], [0, 0, 1, 1], [], []>} : vector<16x8xf32>, vector<8x16xf32>, vector<16x16xf32> -> vector<16x16xf32>
    %cst_136 = arith.constant 0.353553385 : f32
    %405 = vector.broadcast %cst_136 : f32 to vector<16x16xf32>
    %406 = arith.mulf %404, %405 : vector<16x16xf32>
    %cst_137 = arith.constant dense<0xFF800000> : vector<16xf32>
    %407 = vector.multi_reduction <maximumf>, %406, %cst_137 [1] : vector<16x16xf32> to vector<16xf32>
    %408 = vector.shape_cast %407 : vector<16xf32> to vector<16x1xf32>
    %409 = vector.broadcast %408 : vector<16x1xf32> to vector<16x16xf32>
    %410 = arith.subf %406, %409 : vector<16x16xf32>
    %411 = math.exp %410 : vector<16x16xf32>
    %cst_138 = arith.constant dense<0.000000e+00> : vector<16xf32>
    %412 = vector.multi_reduction <add>, %411, %cst_138 [1] : vector<16x16xf32> to vector<16xf32>
    %413 = vector.shape_cast %412 : vector<16xf32> to vector<16x1xf32>
    %414 = tpu.reciprocal %413 {approx = true} : vector<16x1xf32> -> vector<16x1xf32>
    %415 = vector.broadcast %414 : vector<16x1xf32> to vector<16x16xf32>
    %416 = arith.mulf %411, %415 : vector<16x16xf32>
    %417 = vector.extract_strided_slice %399 {offsets = [0, 0], sizes = [16, 8], strides = [1, 1]} : vector<16x32xf32> to vector<16x8xf32>
    %cst_139 = arith.constant dense<0.000000e+00> : vector<16x8xf32>
    %418 = tpu.matmul %416, %417, %cst_139 {dimension_numbers = #tpu.dot_dimension_numbers<[1], [0], [0], [1], [0, 0, 1, 1], [], []>} : vector<16x16xf32>, vector<16x8xf32>, vector<16x8xf32> -> vector<16x8xf32>
    %419 = vector.extract_strided_slice %276 {offsets = [0, 0], sizes = [8, 32], strides = [1, 1]} : vector<32x32xf32> to vector<8x32xf32>
    %cst_140 = arith.constant dense<0.000000e+00> : vector<16x32xf32>
    %420 = tpu.matmul %418, %419, %cst_140 {dimension_numbers = #tpu.dot_dimension_numbers<[1], [0], [0], [1], [0, 0, 1, 1], [], []>} : vector<16x8xf32>, vector<8x32xf32>, vector<16x32xf32> -> vector<16x32xf32>
    %421 = arith.addf %401, %420 : vector<16x32xf32>
    %422 = vector.extract_strided_slice %397 {offsets = [0, 8], sizes = [16, 8], strides = [1, 1]} : vector<16x32xf32> to vector<16x8xf32>
    %423 = vector.extract_strided_slice %400 {offsets = [8, 0], sizes = [8, 16], strides = [1, 1]} : vector<32x16xf32> to vector<8x16xf32>
    %cst_141 = arith.constant dense<0.000000e+00> : vector<16x16xf32>
    %424 = tpu.matmul %422, %423, %cst_141 {dimension_numbers = #tpu.dot_dimension_numbers<[1], [0], [0], [1], [0, 0, 1, 1], [], []>} : vector<16x8xf32>, vector<8x16xf32>, vector<16x16xf32> -> vector<16x16xf32>
    %cst_142 = arith.constant 0.353553385 : f32
    %425 = vector.broadcast %cst_142 : f32 to vector<16x16xf32>
    %426 = arith.mulf %424, %425 : vector<16x16xf32>
    %cst_143 = arith.constant dense<0xFF800000> : vector<16xf32>
    %427 = vector.multi_reduction <maximumf>, %426, %cst_143 [1] : vector<16x16xf32> to vector<16xf32>
    %428 = vector.shape_cast %427 : vector<16xf32> to vector<16x1xf32>
    %429 = vector.broadcast %428 : vector<16x1xf32> to vector<16x16xf32>
    %430 = arith.subf %426, %429 : vector<16x16xf32>
    %431 = math.exp %430 : vector<16x16xf32>
    %cst_144 = arith.constant dense<0.000000e+00> : vector<16xf32>
    %432 = vector.multi_reduction <add>, %431, %cst_144 [1] : vector<16x16xf32> to vector<16xf32>
    %433 = vector.shape_cast %432 : vector<16xf32> to vector<16x1xf32>
    %434 = tpu.reciprocal %433 {approx = true} : vector<16x1xf32> -> vector<16x1xf32>
    %435 = vector.broadcast %434 : vector<16x1xf32> to vector<16x16xf32>
    %436 = arith.mulf %431, %435 : vector<16x16xf32>
    %437 = vector.extract_strided_slice %399 {offsets = [0, 8], sizes = [16, 8], strides = [1, 1]} : vector<16x32xf32> to vector<16x8xf32>
    %cst_145 = arith.constant dense<0.000000e+00> : vector<16x8xf32>
    %438 = tpu.matmul %436, %437, %cst_145 {dimension_numbers = #tpu.dot_dimension_numbers<[1], [0], [0], [1], [0, 0, 1, 1], [], []>} : vector<16x16xf32>, vector<16x8xf32>, vector<16x8xf32> -> vector<16x8xf32>
    %439 = vector.extract_strided_slice %276 {offsets = [8, 0], sizes = [8, 32], strides = [1, 1]} : vector<32x32xf32> to vector<8x32xf32>
    %cst_146 = arith.constant dense<0.000000e+00> : vector<16x32xf32>
    %440 = tpu.matmul %438, %439, %cst_146 {dimension_numbers = #tpu.dot_dimension_numbers<[1], [0], [0], [1], [0, 0, 1, 1], [], []>} : vector<16x8xf32>, vector<8x32xf32>, vector<16x32xf32> -> vector<16x32xf32>
    %441 = arith.addf %421, %440 : vector<16x32xf32>
    %442 = vector.extract_strided_slice %397 {offsets = [0, 16], sizes = [16, 8], strides = [1, 1]} : vector<16x32xf32> to vector<16x8xf32>
    %443 = vector.extract_strided_slice %400 {offsets = [16, 0], sizes = [8, 16], strides = [1, 1]} : vector<32x16xf32> to vector<8x16xf32>
    %cst_147 = arith.constant dense<0.000000e+00> : vector<16x16xf32>
    %444 = tpu.matmul %442, %443, %cst_147 {dimension_numbers = #tpu.dot_dimension_numbers<[1], [0], [0], [1], [0, 0, 1, 1], [], []>} : vector<16x8xf32>, vector<8x16xf32>, vector<16x16xf32> -> vector<16x16xf32>
    %cst_148 = arith.constant 0.353553385 : f32
    %445 = vector.broadcast %cst_148 : f32 to vector<16x16xf32>
    %446 = arith.mulf %444, %445 : vector<16x16xf32>
    %cst_149 = arith.constant dense<0xFF800000> : vector<16xf32>
    %447 = vector.multi_reduction <maximumf>, %446, %cst_149 [1] : vector<16x16xf32> to vector<16xf32>
    %448 = vector.shape_cast %447 : vector<16xf32> to vector<16x1xf32>
    %449 = vector.broadcast %448 : vector<16x1xf32> to vector<16x16xf32>
    %450 = arith.subf %446, %449 : vector<16x16xf32>
    %451 = math.exp %450 : vector<16x16xf32>
    %cst_150 = arith.constant dense<0.000000e+00> : vector<16xf32>
    %452 = vector.multi_reduction <add>, %451, %cst_150 [1] : vector<16x16xf32> to vector<16xf32>
    %453 = vector.shape_cast %452 : vector<16xf32> to vector<16x1xf32>
    %454 = tpu.reciprocal %453 {approx = true} : vector<16x1xf32> -> vector<16x1xf32>
    %455 = vector.broadcast %454 : vector<16x1xf32> to vector<16x16xf32>
    %456 = arith.mulf %451, %455 : vector<16x16xf32>
    %457 = vector.extract_strided_slice %399 {offsets = [0, 16], sizes = [16, 8], strides = [1, 1]} : vector<16x32xf32> to vector<16x8xf32>
    %cst_151 = arith.constant dense<0.000000e+00> : vector<16x8xf32>
    %458 = tpu.matmul %456, %457, %cst_151 {dimension_numbers = #tpu.dot_dimension_numbers<[1], [0], [0], [1], [0, 0, 1, 1], [], []>} : vector<16x16xf32>, vector<16x8xf32>, vector<16x8xf32> -> vector<16x8xf32>
    %459 = vector.extract_strided_slice %276 {offsets = [16, 0], sizes = [8, 32], strides = [1, 1]} : vector<32x32xf32> to vector<8x32xf32>
    %cst_152 = arith.constant dense<0.000000e+00> : vector<16x32xf32>
    %460 = tpu.matmul %458, %459, %cst_152 {dimension_numbers = #tpu.dot_dimension_numbers<[1], [0], [0], [1], [0, 0, 1, 1], [], []>} : vector<16x8xf32>, vector<8x32xf32>, vector<16x32xf32> -> vector<16x32xf32>
    %461 = arith.addf %441, %460 : vector<16x32xf32>
    %462 = vector.extract_strided_slice %397 {offsets = [0, 24], sizes = [16, 8], strides = [1, 1]} : vector<16x32xf32> to vector<16x8xf32>
    %463 = vector.extract_strided_slice %400 {offsets = [24, 0], sizes = [8, 16], strides = [1, 1]} : vector<32x16xf32> to vector<8x16xf32>
    %cst_153 = arith.constant dense<0.000000e+00> : vector<16x16xf32>
    %464 = tpu.matmul %462, %463, %cst_153 {dimension_numbers = #tpu.dot_dimension_numbers<[1], [0], [0], [1], [0, 0, 1, 1], [], []>} : vector<16x8xf32>, vector<8x16xf32>, vector<16x16xf32> -> vector<16x16xf32>
    %cst_154 = arith.constant 0.353553385 : f32
    %465 = vector.broadcast %cst_154 : f32 to vector<16x16xf32>
    %466 = arith.mulf %464, %465 : vector<16x16xf32>
    %cst_155 = arith.constant dense<0xFF800000> : vector<16xf32>
    %467 = vector.multi_reduction <maximumf>, %466, %cst_155 [1] : vector<16x16xf32> to vector<16xf32>
    %468 = vector.shape_cast %467 : vector<16xf32> to vector<16x1xf32>
    %469 = vector.broadcast %468 : vector<16x1xf32> to vector<16x16xf32>
    %470 = arith.subf %466, %469 : vector<16x16xf32>
    %471 = math.exp %470 : vector<16x16xf32>
    %cst_156 = arith.constant dense<0.000000e+00> : vector<16xf32>
    %472 = vector.multi_reduction <add>, %471, %cst_156 [1] : vector<16x16xf32> to vector<16xf32>
    %473 = vector.shape_cast %472 : vector<16xf32> to vector<16x1xf32>
    %474 = tpu.reciprocal %473 {approx = true} : vector<16x1xf32> -> vector<16x1xf32>
    %475 = vector.broadcast %474 : vector<16x1xf32> to vector<16x16xf32>
    %476 = arith.mulf %471, %475 : vector<16x16xf32>
    %477 = vector.extract_strided_slice %399 {offsets = [0, 24], sizes = [16, 8], strides = [1, 1]} : vector<16x32xf32> to vector<16x8xf32>
    %cst_157 = arith.constant dense<0.000000e+00> : vector<16x8xf32>
    %478 = tpu.matmul %476, %477, %cst_157 {dimension_numbers = #tpu.dot_dimension_numbers<[1], [0], [0], [1], [0, 0, 1, 1], [], []>} : vector<16x16xf32>, vector<16x8xf32>, vector<16x8xf32> -> vector<16x8xf32>
    %479 = vector.extract_strided_slice %276 {offsets = [24, 0], sizes = [8, 32], strides = [1, 1]} : vector<32x32xf32> to vector<8x32xf32>
    %cst_158 = arith.constant dense<0.000000e+00> : vector<16x32xf32>
    %480 = tpu.matmul %478, %479, %cst_158 {dimension_numbers = #tpu.dot_dimension_numbers<[1], [0], [0], [1], [0, 0, 1, 1], [], []>} : vector<16x8xf32>, vector<8x32xf32>, vector<16x32xf32> -> vector<16x32xf32>
    %481 = arith.addf %461, %480 : vector<16x32xf32>
    %482 = tpu.concatenate %396, %481 in 0 : vector<16x32xf32>, vector<16x32xf32> -> vector<32x32xf32>
    %483 = arith.addf %272, %482 : vector<32x32xf32>
    %484 = vector.extract_strided_slice %274 {offsets = [4, 0], sizes = [1, 32], strides = [1, 1]} : vector<6x32xf32> to vector<1x32xf32>
    %485 = vector.shape_cast %484 : vector<1x32xf32> to vector<32xf32>
    %486 = vector.shape_cast %485 : vector<32xf32> to vector<1x32xf32>
    %487 = vector.broadcast %486 : vector<1x32xf32> to vector<32x32xf32>
    %488 = arith.addf %483, %487 : vector<32x32xf32>
    %489 = vector.extract_strided_slice %274 {offsets = [2, 0], sizes = [1, 32], strides = [1, 1]} : vector<6x32xf32> to vector<1x32xf32>
    %490 = vector.shape_cast %489 : vector<1x32xf32> to vector<32xf32>
    %491 = vector.extract_strided_slice %274 {offsets = [3, 0], sizes = [1, 32], strides = [1, 1]} : vector<6x32xf32> to vector<1x32xf32>
    %492 = vector.shape_cast %491 : vector<1x32xf32> to vector<32xf32>
    %cst_159 = arith.constant dense<0.000000e+00> : vector<32xf32>
    %493 = vector.multi_reduction <add>, %488, %cst_159 [1] : vector<32x32xf32> to vector<32xf32>
    %494 = vector.shape_cast %493 : vector<32xf32> to vector<32x1xf32>
    %cst_160 = arith.constant 3.200000e+01 : f32
    %495 = vector.broadcast %cst_160 : f32 to vector<32x1xf32>
    %496 = arith.divf %494, %495 : vector<32x1xf32>
    %497 = vector.broadcast %496 : vector<32x1xf32> to vector<32x32xf32>
    %498 = arith.subf %488, %497 : vector<32x32xf32>
    %499 = arith.mulf %498, %498 : vector<32x32xf32>
    %cst_161 = arith.constant dense<0.000000e+00> : vector<32xf32>
    %500 = vector.multi_reduction <add>, %499, %cst_161 [1] : vector<32x32xf32> to vector<32xf32>
    %501 = vector.shape_cast %500 : vector<32xf32> to vector<32x1xf32>
    %cst_162 = arith.constant 3.200000e+01 : f32
    %502 = vector.broadcast %cst_162 : f32 to vector<32x1xf32>
    %503 = arith.divf %501, %502 : vector<32x1xf32>
    %504 = vector.broadcast %496 : vector<32x1xf32> to vector<32x32xf32>
    %505 = arith.subf %488, %504 : vector<32x32xf32>
    %cst_163 = arith.constant 9.99999997E-7 : f32
    %506 = vector.broadcast %cst_163 : f32 to vector<32x1xf32>
    %507 = arith.addf %503, %506 : vector<32x1xf32>
    %508 = math.rsqrt %507 : vector<32x1xf32>
    %509 = vector.broadcast %508 : vector<32x1xf32> to vector<32x32xf32>
    %510 = arith.mulf %505, %509 : vector<32x32xf32>
    %511 = vector.shape_cast %490 : vector<32xf32> to vector<1x32xf32>
    %512 = vector.broadcast %511 : vector<1x32xf32> to vector<32x32xf32>
    %513 = arith.mulf %510, %512 : vector<32x32xf32>
    %514 = vector.shape_cast %492 : vector<32xf32> to vector<1x32xf32>
    %515 = vector.broadcast %514 : vector<1x32xf32> to vector<32x32xf32>
    %516 = arith.addf %513, %515 : vector<32x32xf32>
    %c1_164 = arith.constant 1 : index
    %c0_165 = arith.constant 0 : index
    %c0_166 = arith.constant 0 : index
    %517 = vector.load %arg8[%c1_164, %c0_165, %c0_166] : memref<2x32x64xf32, #tpu.memory_space<vmem>>, vector<1x32x64xf32>
    %518 = vector.shape_cast %517 : vector<1x32x64xf32> to vector<32x64xf32>
    %cst_167 = arith.constant dense<0.000000e+00> : vector<32x64xf32>
    %519 = tpu.matmul %516, %518, %cst_167 {dimension_numbers = #tpu.dot_dimension_numbers<[1], [0], [0], [1], [0, 0, 1, 1], [], []>} : vector<32x32xf32>, vector<32x64xf32>, vector<32x64xf32> -> vector<32x64xf32>
    %c1_168 = arith.constant 1 : index
    %c0_169 = arith.constant 0 : index
    %c0_170 = arith.constant 0 : index
    %520 = vector.load %arg9[%c1_168, %c0_169, %c0_170] : memref<2x1x64xf32, #tpu.memory_space<vmem>>, vector<1x1x64xf32>
    %521 = vector.shape_cast %520 : vector<1x1x64xf32> to vector<1x64xf32>
    %522 = vector.broadcast %521 : vector<1x64xf32> to vector<32x64xf32>
    %523 = arith.addf %519, %522 : vector<32x64xf32>
    %cst_171 = arith.constant 5.000000e-01 : f32
    %524 = vector.broadcast %cst_171 : f32 to vector<32x64xf32>
    %525 = arith.mulf %524, %523 : vector<32x64xf32>
    %cst_172 = arith.constant 0.707106769 : f32
    %526 = vector.broadcast %cst_172 : f32 to vector<32x64xf32>
    %527 = arith.mulf %523, %526 : vector<32x64xf32>
    %528 = math.erf %527 : vector<32x64xf32>
    %cst_173 = arith.constant 1.000000e+00 : f32
    %529 = vector.broadcast %cst_173 : f32 to vector<32x64xf32>
    %530 = arith.addf %529, %528 : vector<32x64xf32>
    %531 = arith.mulf %525, %530 : vector<32x64xf32>
    %c1_174 = arith.constant 1 : index
    %c0_175 = arith.constant 0 : index
    %c0_176 = arith.constant 0 : index
    %532 = vector.load %arg10[%c1_174, %c0_175, %c0_176] : memref<2x64x32xf32, #tpu.memory_space<vmem>>, vector<1x64x32xf32>
    %533 = vector.shape_cast %532 : vector<1x64x32xf32> to vector<64x32xf32>
    %cst_177 = arith.constant dense<0.000000e+00> : vector<32x32xf32>
    %534 = tpu.matmul %531, %533, %cst_177 {dimension_numbers = #tpu.dot_dimension_numbers<[1], [0], [0], [1], [0, 0, 1, 1], [], []>} : vector<32x64xf32>, vector<64x32xf32>, vector<32x32xf32> -> vector<32x32xf32>
    %535 = arith.addf %488, %534 : vector<32x32xf32>
    %536 = vector.extract_strided_slice %274 {offsets = [5, 0], sizes = [1, 32], strides = [1, 1]} : vector<6x32xf32> to vector<1x32xf32>
    %537 = vector.shape_cast %536 : vector<1x32xf32> to vector<32xf32>
    %538 = vector.shape_cast %537 : vector<32xf32> to vector<1x32xf32>
    %539 = vector.broadcast %538 : vector<1x32xf32> to vector<32x32xf32>
    %540 = arith.addf %535, %539 : vector<32x32xf32>
    %c0_178 = arith.constant 0 : index
    %c0_179 = arith.constant 0 : index
    %541 = vector.load %arg11[%c0_178, %c0_179] : memref<2x32xf32, #tpu.memory_space<vmem>>, vector<1x32xf32>
    %542 = vector.shape_cast %541 : vector<1x32xf32> to vector<32xf32>
    %c1_180 = arith.constant 1 : index
    %c0_181 = arith.constant 0 : index
    %543 = vector.load %arg11[%c1_180, %c0_181] : memref<2x32xf32, #tpu.memory_space<vmem>>, vector<1x32xf32>
    %544 = vector.shape_cast %543 : vector<1x32xf32> to vector<32xf32>
    %cst_182 = arith.constant dense<0.000000e+00> : vector<32xf32>
    %545 = vector.multi_reduction <add>, %540, %cst_182 [1] : vector<32x32xf32> to vector<32xf32>
    %546 = vector.shape_cast %545 : vector<32xf32> to vector<32x1xf32>
    %cst_183 = arith.constant 3.200000e+01 : f32
    %547 = vector.broadcast %cst_183 : f32 to vector<32x1xf32>
    %548 = arith.divf %546, %547 : vector<32x1xf32>
    %549 = vector.broadcast %548 : vector<32x1xf32> to vector<32x32xf32>
    %550 = arith.subf %540, %549 : vector<32x32xf32>
    %551 = arith.mulf %550, %550 : vector<32x32xf32>
    %cst_184 = arith.constant dense<0.000000e+00> : vector<32xf32>
    %552 = vector.multi_reduction <add>, %551, %cst_184 [1] : vector<32x32xf32> to vector<32xf32>
    %553 = vector.shape_cast %552 : vector<32xf32> to vector<32x1xf32>
    %cst_185 = arith.constant 3.200000e+01 : f32
    %554 = vector.broadcast %cst_185 : f32 to vector<32x1xf32>
    %555 = arith.divf %553, %554 : vector<32x1xf32>
    %556 = vector.broadcast %548 : vector<32x1xf32> to vector<32x32xf32>
    %557 = arith.subf %540, %556 : vector<32x32xf32>
    %cst_186 = arith.constant 9.99999997E-7 : f32
    %558 = vector.broadcast %cst_186 : f32 to vector<32x1xf32>
    %559 = arith.addf %555, %558 : vector<32x1xf32>
    %560 = math.rsqrt %559 : vector<32x1xf32>
    %561 = vector.broadcast %560 : vector<32x1xf32> to vector<32x32xf32>
    %562 = arith.mulf %557, %561 : vector<32x32xf32>
    %563 = vector.shape_cast %542 : vector<32xf32> to vector<1x32xf32>
    %564 = vector.broadcast %563 : vector<1x32xf32> to vector<32x32xf32>
    %565 = arith.mulf %562, %564 : vector<32x32xf32>
    %566 = vector.shape_cast %544 : vector<32xf32> to vector<1x32xf32>
    %567 = vector.broadcast %566 : vector<1x32xf32> to vector<32x32xf32>
    %568 = arith.addf %565, %567 : vector<32x32xf32>
    %c0_187 = arith.constant 0 : index
    %c0_188 = arith.constant 0 : index
    %569 = vector.load %arg12[%c0_187, %c0_188] : memref<32x32xf32, #tpu.memory_space<vmem>>, vector<32x32xf32>
    tpu.vector_store %arg12[%c0_187, %c0_188], %568 {strides = array<i32>} : memref<32x32xf32, #tpu.memory_space<vmem>>, vector<32x32xf32>,
    return
  }
  func.func @transform_0(%arg0: i32) -> (i32, i32) {
    %c0_i32 = arith.constant 0 : i32
    %c0_i32_0 = arith.constant 0 : i32
    return %arg0, %c0_i32 : i32, i32
  }
  func.func @transform_1(%arg0: i32) -> (i32, i32) {
    %c0_i32 = arith.constant 0 : i32
    %c0_i32_0 = arith.constant 0 : i32
    %c0_i32_1 = arith.constant 0 : i32
    return %c0_i32, %c0_i32_0 : i32, i32
  }
  func.func @transform_2(%arg0: i32) -> (i32, i32) {
    %c0_i32 = arith.constant 0 : i32
    %c0_i32_0 = arith.constant 0 : i32
    return %arg0, %c0_i32 : i32, i32
  }
  func.func @transform_3(%arg0: i32) -> (i32, i32, i32) {
    %c0_i32 = arith.constant 0 : i32
    %c0_i32_0 = arith.constant 0 : i32
    %c0_i32_1 = arith.constant 0 : i32
    %c0_i32_2 = arith.constant 0 : i32
    return %c0_i32, %c0_i32_0, %c0_i32_1 : i32, i32, i32
  }
  func.func @transform_4(%arg0: i32) -> (i32, i32, i32) {
    %c0_i32 = arith.constant 0 : i32
    %c0_i32_0 = arith.constant 0 : i32
    %c0_i32_1 = arith.constant 0 : i32
    %c0_i32_2 = arith.constant 0 : i32
    return %c0_i32, %c0_i32_0, %c0_i32_1 : i32, i32, i32
  }
  func.func @transform_5(%arg0: i32) -> (i32, i32, i32) {
    %c0_i32 = arith.constant 0 : i32
    %c0_i32_0 = arith.constant 0 : i32
    %c0_i32_1 = arith.constant 0 : i32
    %c0_i32_2 = arith.constant 0 : i32
    return %c0_i32, %c0_i32_0, %c0_i32_1 : i32, i32, i32
  }
  func.func @transform_6(%arg0: i32) -> (i32, i32, i32) {
    %c0_i32 = arith.constant 0 : i32
    %c0_i32_0 = arith.constant 0 : i32
    %c0_i32_1 = arith.constant 0 : i32
    %c0_i32_2 = arith.constant 0 : i32
    return %c0_i32, %c0_i32_0, %c0_i32_1 : i32, i32, i32
  }
  func.func @transform_7(%arg0: i32) -> (i32, i32, i32) {
    %c0_i32 = arith.constant 0 : i32
    %c0_i32_0 = arith.constant 0 : i32
    %c0_i32_1 = arith.constant 0 : i32
    %c0_i32_2 = arith.constant 0 : i32
    return %c0_i32, %c0_i32_0, %c0_i32_1 : i32, i32, i32
  }
  func.func @transform_8(%arg0: i32) -> (i32, i32, i32) {
    %c0_i32 = arith.constant 0 : i32
    %c0_i32_0 = arith.constant 0 : i32
    %c0_i32_1 = arith.constant 0 : i32
    %c0_i32_2 = arith.constant 0 : i32
    return %c0_i32, %c0_i32_0, %c0_i32_1 : i32, i32, i32
  }
  func.func @transform_9(%arg0: i32) -> (i32, i32, i32) {
    %c0_i32 = arith.constant 0 : i32
    %c0_i32_0 = arith.constant 0 : i32
    %c0_i32_1 = arith.constant 0 : i32
    %c0_i32_2 = arith.constant 0 : i32
    return %c0_i32, %c0_i32_0, %c0_i32_1 : i32, i32, i32
  }
  func.func @transform_10(%arg0: i32) -> (i32, i32) {
    %c0_i32 = arith.constant 0 : i32
    %c0_i32_0 = arith.constant 0 : i32
    %c0_i32_1 = arith.constant 0 : i32
    return %c0_i32, %c0_i32_0 : i32, i32
  }
  func.func @transform_11(%arg0: i32) -> (i32, i32) {
    %c0_i32 = arith.constant 0 : i32
    %c0_i32_0 = arith.constant 0 : i32
    return %arg0, %c0_i32 : i32, i32
  }
}

</mosaic_0001>

<llo_original>
// kernel: tpu_custom_call.1
$region0: #{tpu_custom_call.1}
  #allocation0 [shape = 'u32[]', space=smem, size = 0x4, offset = 0x4, fixed_abs, tag = 'smem constant byte address 0x4 - core index']
  #allocation1 [shape = 'u32[72,128]{1,0:T(1,128)}', space=vmem, size = 0x9000, scoped, tag = 'internal scratch']
  %s0 = inlined_call_operand.vmem [shape: f32[32,64], index: 0, kind: input, shape index: {}]
  %s1 = inlined_call_operand.vmem [shape: f32[64,32], index: 1, kind: input, shape index: {}]
  %s2 = inlined_call_operand.hbm [shape: f32[32,32], index: 2, kind: input, shape index: {}]
  %s3 = inlined_call_operand.vmem [shape: f32[2,6,32], index: 3, kind: input, shape index: {}]
  %s4 = inlined_call_operand.vmem [shape: f32[2,32,96], index: 4, kind: input, shape index: {}]
  %s5 = inlined_call_operand.vmem [shape: f32[2,1,96], index: 5, kind: input, shape index: {}]
  %s6 = inlined_call_operand.vmem [shape: f32[2,32,32], index: 6, kind: input, shape index: {}]
  %s7 = inlined_call_operand.vmem [shape: f32[2,32,64], index: 7, kind: input, shape index: {}]
  %s8 = inlined_call_operand.vmem [shape: f32[2,1,64], index: 8, kind: input, shape index: {}]
  %s9 = inlined_call_operand.vmem [shape: f32[2,64,32], index: 9, kind: input, shape index: {}]
  %s10 = inlined_call_operand.vmem [shape: f32[2,32], index: 10, kind: input, shape index: {}]
  %s11 = inlined_call_operand.hbm [shape: f32[32,32], index: 11, kind: output, shape index: {}]
  %s12 = sld [smem:[#allocation0]]
  $region58: #{tpu_custom_call.1} parent=0
    _
  %s14 = ssub.s32 1, %s12
  %s15 = scalar_select 0, %s14, %s12
  $region1: #{tpu_custom_call.1} parent=0
    #allocation2 [shape = 'u8[16384]{0}', space=vmem, size = 0x4000, scoped, tag = 'input window, operand 2, single buffered']
    #allocation3 [shape = 's32[1]{0}', space=sflag, size = 0x4, scoped, tag = 'scoped memory for tpu_custom_call.1']
    #allocation4 [shape = 's32[1]{0}', space=sflag, size = 0x4, scoped, tag = 'scoped memory for tpu_custom_call.1']
    #allocation5 [shape = 'u8[16384]{0}', space=vmem, size = 0x4000, scoped, tag = 'output window, operand 0, single buffered']
    %16 = vsyncpa [#allocation3], 0
    %17 = vsyncpa [#allocation4], 0
    // Predicated region
    $region2: #{tpu_custom_call.1} parent=1 // pred_check
      _
    $region3: #{tpu_custom_call.1} parent=1 // pred_check_branch
      %19 = sbr.rel (0) target = $region5
    $region4: #{tpu_custom_call.1} parent=1 // pred_region
      _
    $region5: #{tpu_custom_call.1} parent=1 // pred_fallthru
      _
    // Predicated region
    $region6: #{tpu_custom_call.1} parent=1 // pred_check
      _
    $region7: #{tpu_custom_call.1} parent=1 // pred_check_branch
      %21 = sbr.rel (0) target = $region9
    $region8: #{tpu_custom_call.1} parent=1 // pred_region
      _
    $region9: #{tpu_custom_call.1} parent=1 // pred_fallthru
      _
    // Predicated region
    $region10: #{tpu_custom_call.1} parent=1 // pred_check
      _
    $region11: #{tpu_custom_call.1} parent=1 // pred_check_branch
      %23 = sbr.rel (0) target = $region13
    $region12: #{tpu_custom_call.1} parent=1 // pred_region
      %25 = vsyncadd [#allocation3], 0
      %s26 = sshll.u32 %s2, 4
      %s27 = int_to_ptr.hbm [resolvable:$true] %s26
      %s28 = sshll.u32 [#allocation2], 4
      %s29 = int_to_ptr.vmem [resolvable:$true] %s28
      %34 = dma.hbm_to_vmem [thread:$0]  %s27, 512, %s29, [#allocation3], 128, 128, 8
    $region13: #{tpu_custom_call.1} parent=1 // pred_fallthru
      _
    // Predicated region
    $region14: #{tpu_custom_call.1} parent=1 // pred_check
      _
    $region15: #{tpu_custom_call.1} parent=1 // pred_check_branch
      %36 = sbr.rel (0) target = $region17
    $region16: #{tpu_custom_call.1} parent=1 // pred_region
      _
    $region17: #{tpu_custom_call.1} parent=1 // pred_fallthru
      _
    // Predicated region
    $region18: #{tpu_custom_call.1} parent=1 // pred_check
      _
    $region19: #{tpu_custom_call.1} parent=1 // pred_check_branch
      %38 = sbr.rel (0) target = $region21
    $region20: #{tpu_custom_call.1} parent=1 // pred_region
      _
    $region21: #{tpu_custom_call.1} parent=1 // pred_fallthru
      _
    // Predicated region
    $region22: #{tpu_custom_call.1} parent=1 // pred_check
      _
    $region23: #{tpu_custom_call.1} parent=1 // pred_check_branch
      %40 = sbr.rel (0) target = $region25
    $region24: #{tpu_custom_call.1} parent=1 // pred_region
      _
    $region25: #{tpu_custom_call.1} parent=1 // pred_fallthru
      _
    // Predicated region
    $region26: #{tpu_custom_call.1} parent=1 // pred_check
      _
    $region27: #{tpu_custom_call.1} parent=1 // pred_check_branch
      %42 = sbr.rel (0) target = $region29
    $region28: #{tpu_custom_call.1} parent=1 // pred_region
      _
    $region29: #{tpu_custom_call.1} parent=1 // pred_fallthru
      _
    // Predicated region
    $region30: #{tpu_custom_call.1} parent=1 // pred_check
      _
    $region31: #{tpu_custom_call.1} parent=1 // pred_check_branch
      %44 = sbr.rel (0) target = $region33
    $region32: #{tpu_custom_call.1} parent=1 // pred_region
      _
    $region33: #{tpu_custom_call.1} parent=1 // pred_fallthru
      _
    // Predicated region
    $region34: #{tpu_custom_call.1} parent=1 // pred_check
      _
    $region35: #{tpu_custom_call.1} parent=1 // pred_check_branch
      %46 = sbr.rel (0) target = $region37
    $region36: #{tpu_custom_call.1} parent=1 // pred_region
      _
    $region37: #{tpu_custom_call.1} parent=1 // pred_fallthru
      _
    // Predicated region
    $region38: #{tpu_custom_call.1} parent=1 // pred_check
      _
    $region39: #{tpu_custom_call.1} parent=1 // pred_check_branch
      %48 = sbr.rel (0) target = $region41
    $region40: #{tpu_custom_call.1} parent=1 // pred_region
      _
    $region41: #{tpu_custom_call.1} parent=1 // pred_fallthru
      _
    // Predicated region
    $region42: #{tpu_custom_call.1} parent=1 // pred_check
      _
    $region43: #{tpu_custom_call.1} parent=1 // pred_check_branch
      %50 = sbr.rel (0) target = $region45
    $region44: #{tpu_custom_call.1} parent=1 // pred_region
      _
    $region45: #{tpu_custom_call.1} parent=1 // pred_fallthru
      _
    // Predicated region
    $region46: #{tpu_custom_call.1} parent=1 // pred_check
      _
    $region47: #{tpu_custom_call.1} parent=1 // pred_check_branch
      %52 = sbr.rel (0) target = $region49
    $region48: #{tpu_custom_call.1} parent=1 // pred_region
      %54 = dma.done [#allocation3], 512
    $region49: #{tpu_custom_call.1} parent=1 // pred_fallthru
      _
    %v55 = vld [vmem:[%s0] sm:$0xff]
    %v56 = vld [vmem:[%s0 + $0x8] sm:$0xff]
    %v57 = vld [vmem:[%s0 + $0x10] sm:$0xff]
    %v58 = vld [vmem:[%s0 + $0x18] sm:$0xff]
    %v59 = vld [vmem:[%s1] sm:$0xff]
    %v60 = vld [vmem:[%s1 + $0x8] sm:$0xff]
    %v61 = vld [vmem:[%s1 + $0x10] sm:$0xff]
    %v62 = vld [vmem:[%s1 + $0x18] sm:$0xff]
    %v63 = vld [vmem:[%s1 + $0x20] sm:$0xff]
    %v64 = vld [vmem:[%s1 + $0x28] sm:$0xff]
    %v65 = vld [vmem:[%s1 + $0x30] sm:$0xff]
    %v66 = vld [vmem:[%s1 + $0x38] sm:$0xff]
    %v67 = vld [vmem:[#allocation2] sm:$0xff]
    %v68 = vld [vmem:[#allocation2 + $0x8] sm:$0xff]
    %v69 = vld [vmem:[#allocation2 + $0x10] sm:$0xff]
    %v70 = vld [vmem:[#allocation2 + $0x18] sm:$0xff]
    %vm71 = vcmask 523264
    %v73 = vsel %vm71, %v55, 0
    %v76 = vsel %vm71, %v56, 0
    %v79 = vsel %vm71, %v57, 0
    %v82 = vsel %vm71, %v58, 0
    %84 = vmatpush.msra.mxu0 0.0
    %85 = vmatpush.msra.mxu0 0.0
    %86 = vmatpush.msra.mxu0 0.0
    %87 = vmatpush.msra.mxu0 0.0
    %88 = vmatpush.msra.mxu0 0.0
    %89 = vmatpush.msra.mxu0 0.0
    %90 = vmatpush.msra.mxu0 0.0
    %91 = vmatpush.msra.mxu0 0.0
    %92 = vmatpush.msra.mxu0 %v66
    %93 = vmatpush.msra.mxu0 %v65
    %94 = vmatpush.msra.mxu0 %v64
    %95 = vmatpush.msra.mxu0 %v63
    %96 = vmatpush.msra.mxu0 %v62
    %97 = vmatpush.msra.mxu0 %v61
    %98 = vmatpush.msra.mxu0 %v60
    %99 = vmatpush.msra.mxu0 %v59
    %100 = vmatmul.f32.gmra.mxu0 %v73
    %v101 = vpop.f32.mrf.mxu0
    %v102 = vadd.f32 %v67, %v101
    %103 = vmatmul.f32.gmra.mxu0 %v76
    %v104 = vpop.f32.mrf.mxu0
    %v105 = vadd.f32 %v68, %v104
    %106 = vmatmul.f32.gmra.mxu0 %v79
    %v107 = vpop.f32.mrf.mxu0
    %v108 = vadd.f32 %v69, %v107
    %109 = vmatmul.f32.gmra.mxu0 %v82
    %v110 = vpop.f32.mrf.mxu0
    %v111 = vadd.f32 %v70, %v110
    %112 = vdwg.mxu0
    %v113 = vld [vmem:[%s3] sm:$0x3f]
    %v114 = vld [vmem:[%s6] sm:$0xff]
    %v115 = vld [vmem:[%s6 + $0x8] sm:$0xff]
    %v116 = vld [vmem:[%s6 + $0x10] sm:$0xff]
    %v117 = vld [vmem:[%s6 + $0x18] sm:$0xff]
    %vm118 = vcmask 261120
    %v119 = vsel %vm118, %v102, 0.0
    %120 = vadd.xlane.f32.xlu0 %v119
    %v121 = vpop.xlane.xlu0 %120
    %v122 = vsel %vm118, %v105, 0.0
    %123 = vadd.xlane.f32.xlu0 %v122
    %v124 = vpop.xlane.xlu0 %123
    %v125 = vsel %vm118, %v108, 0.0
    %126 = vadd.xlane.f32.xlu0 %v125
    %v127 = vpop.xlane.xlu0 %126
    %v128 = vsel %vm118, %v111, 0.0
    %129 = vadd.xlane.f32.xlu0 %v128
    %v130 = vpop.xlane.xlu0 %129
    %v131 = vrcp.pop 32.0
    %v132 = vmul.f32 32.0, %v131
    %v133 = vsub.f32 1.0, %v132
    %v134 = vmul.f32 %v131, %v133
    %v135 = vadd.f32 %v131, %v134
    %vm136 = vweird.f32 %v131
    %v137 = vsel %vm136, %v131, %v135
    %v138 = vmul.f32 %v121, %v137
    %v139 = vmul.f32 %v124, %v137
    %v140 = vmul.f32 %v127, %v137
    %v141 = vmul.f32 %v130, %v137
    %v142 = vsub.f32 %v102, %v138
    %v143 = vsub.f32 %v105, %v139
    %v144 = vsub.f32 %v108, %v140
    %v145 = vsub.f32 %v111, %v141
    %v146 = vmul.f32 %v142, %v142
    %v147 = vmul.f32 %v143, %v143
    %v148 = vmul.f32 %v144, %v144
    %v149 = vmul.f32 %v145, %v145
    %v150 = vsel %vm118, %v146, 0.0
    %151 = vadd.xlane.f32.xlu0 %v150
    %v152 = vpop.xlane.xlu0 %151
    %v153 = vsel %vm118, %v147, 0.0
    %154 = vadd.xlane.f32.xlu0 %v153
    %v155 = vpop.xlane.xlu0 %154
    %v156 = vsel %vm118, %v148, 0.0
    %157 = vadd.xlane.f32.xlu0 %v156
    %v158 = vpop.xlane.xlu0 %157
    %v159 = vsel %vm118, %v149, 0.0
    %160 = vadd.xlane.f32.xlu0 %v159
    %v161 = vpop.xlane.xlu0 %160
    %v162 = vmul.f32 %v152, %v137
    %v163 = vmul.f32 %v155, %v137
    %v164 = vmul.f32 %v158, %v137
    %v165 = vmul.f32 %v161, %v137
    %v166 = vadd.f32 %v162, 1e-06
    %v167 = vadd.f32 %v163, 1e-06
    %v168 = vadd.f32 %v164, 1e-06
    %v169 = vadd.f32 %v165, 1e-06
    %v170 = vrsqrt.pop %v166
    %v171 = vmul.f32 %v170, %v166
    %v172 = vmul.f32 %v171, %v170
    %v173 = vmul.f32 0.5, %v172
    %v174 = vsub.f32 1.5, %v173
    %v175 = vmul.f32 %v170, %v174
    %vm176 = vweird.f32 %v166
    %vm177 = vweird.f32 %v170
    %vm178 = vmor %vm176, %vm177
    %v179 = vsel %vm178, %v170, %v175
    %v180 = vrsqrt.pop %v167
    %v181 = vmul.f32 %v180, %v167
    %v182 = vmul.f32 %v181, %v180
    %v183 = vmul.f32 0.5, %v182
    %v184 = vsub.f32 1.5, %v183
    %v185 = vmul.f32 %v180, %v184
    %vm186 = vweird.f32 %v167
    %vm187 = vweird.f32 %v180
    %vm188 = vmor %vm186, %vm187
    %v189 = vsel %vm188, %v180, %v185
    %v190 = vrsqrt.pop %v168
    %v191 = vmul.f32 %v190, %v168
    %v192 = vmul.f32 %v191, %v190
    %v193 = vmul.f32 0.5, %v192
    %v194 = vsub.f32 1.5, %v193
    %v195 = vmul.f32 %v190, %v194
    %vm196 = vweird.f32 %v168
    %vm197 = vweird.f32 %v190
    %vm198 = vmor %vm196, %vm197
    %v199 = vsel %vm198, %v190, %v195
    %v200 = vrsqrt.pop %v169
    %v201 = vmul.f32 %v200, %v169
    %v202 = vmul.f32 %v201, %v200
    %v203 = vmul.f32 0.5, %v202
    %v204 = vsub.f32 1.5, %v203
    %v205 = vmul.f32 %v200, %v204
    %vm206 = vweird.f32 %v169
    %vm207 = vweird.f32 %v200
    %vm208 = vmor %vm206, %vm207
    %v209 = vsel %vm208, %v200, %v205
    %v210 = vmul.f32 %v142, %v179
    %v211 = vmul.f32 %v143, %v189
    %v212 = vmul.f32 %v144, %v199
    %v213 = vmul.f32 %v145, %v209
    %v214 = vperm.slane %v113, 0
    %v215 = vmul.f32 %v210, %v214
    %v216 = vmul.f32 %v211, %v214
    %v217 = vmul.f32 %v212, %v214
    %v218 = vmul.f32 %v213, %v214
    %v219 = vperm.slane %v113, 1
    %v220 = vadd.f32 %v215, %v219
    %v221 = vadd.f32 %v216, %v219
    %v222 = vadd.f32 %v217, %v219
    %v223 = vadd.f32 %v218, %v219
    %v224 = vld [vmem:[%s4] sm:$0xff]
    %v225 = vld [vmem:[%s4 + $0x8] sm:$0xff]
    %v226 = vld [vmem:[%s4 + $0x10] sm:$0xff]
    %v227 = vld [vmem:[%s4 + $0x18] sm:$0xff]
    %v228 = vld [vmem:[%s5] sm:$0x1]
    %v230 = vperm.slane %v228, 0
    %v233 = vsel %vm118, %v220, 0
    %v236 = vsel %vm118, %v221, 0
    %v239 = vsel %vm118, %v222, 0
    %v242 = vsel %vm118, %v223, 0
    %244 = vmatpush.msra.mxu0 0.0
    %245 = vmatpush.msra.mxu0 0.0
    %246 = vmatpush.msra.mxu0 0.0
    %247 = vmatpush.msra.mxu0 0.0
    %248 = vmatpush.msra.mxu0 0.0
    %249 = vmatpush.msra.mxu0 0.0
    %250 = vmatpush.msra.mxu0 0.0
    %251 = vmatpush.msra.mxu0 0.0
    %252 = vmatpush.msra.mxu0 0.0
    %253 = vmatpush.msra.mxu0 0.0
    %254 = vmatpush.msra.mxu0 0.0
    %255 = vmatpush.msra.mxu0 0.0
    %256 = vmatpush.msra.mxu0 %v227
    %257 = vmatpush.msra.mxu0 %v226
    %258 = vmatpush.msra.mxu0 %v225
    %259 = vmatpush.msra.mxu0 %v224
    %260 = vmatmul.f32.gmra.mxu0 %v233
    %v261 = vpop.f32.mrf.mxu0
    %v262 = vadd.f32 %v230, %v261
    %263 = vmatmul.f32.gmra.mxu0 %v236
    %v264 = vpop.f32.mrf.mxu0
    %v265 = vadd.f32 %v230, %v264
    %266 = vmatmul.f32.gmra.mxu0 %v239
    %v267 = vpop.f32.mrf.mxu0
    %v268 = vadd.f32 %v230, %v267
    %269 = vmatmul.f32.gmra.mxu0 %v242
    %v270 = vpop.f32.mrf.mxu0
    %v271 = vadd.f32 %v230, %v270
    %272 = vdwg.mxu0
    %275 = vrot.lane.b32.xlu0 %v262, 96
    %v276 = vpop.permute.xlu0 %275
    %277 = vrot.lane.b32.xlu0 %v265, 96
    %v278 = vpop.permute.xlu0 %277
    %vm279 = vcmask 64512
    %v280 = vsel %vm279, %v262, 0
    %v282 = vsel %vm279, %v265, 0
    %v284 = vsel %vm279, %v276, 0
    %v286 = vsel %vm279, %v278, 0
    %288 = vmatpush.xpose.msra.mxu0 0.0
    %289 = vmatpush.xpose.msra.mxu0 0.0
    %290 = vmatpush.xpose.msra.mxu0 0.0
    %291 = vmatpush.xpose.msra.mxu0 0.0
    %292 = vmatpush.xpose.msra.mxu0 0.0
    %293 = vmatpush.xpose.msra.mxu0 0.0
    %294 = vmatpush.xpose.msra.mxu0 0.0
    %295 = vmatpush.xpose.msra.mxu0 0.0
    %296 = vmatpush.xpose.msra.mxu0 0.0
    %297 = vmatpush.xpose.msra.mxu0 0.0
    %298 = vmatpush.xpose.msra.mxu0 0.0
    %299 = vmatpush.xpose.msra.mxu0 0.0
    %300 = vmatpush.xpose.msra.mxu0 0.0
    %301 = vmatpush.xpose.msra.mxu0 0.0
    %302 = vmatpush.xpose.msra.mxu0 %v286
    %303 = vmatpush.xpose.msra.mxu0 %v284
    %304 = vmatmul.f32.gmra.mxu0 %v280
    %v305 = vpop.f32.mrf.mxu0
    %v306 = vadd.f32 0.0, %v305
    %307 = vmatmul.f32.gmra.mxu0 %v282
    %v308 = vpop.f32.mrf.mxu0
    %v309 = vadd.f32 0.0, %v308
    %310 = vdwg.mxu0
    %v311 = vmul.f32 %v306, 0.35355338
    %v312 = vmul.f32 %v309, 0.35355338
    %vm313 = vcmask 130048
    %v314 = vsel %vm313, %v311, -inf
    %315 = vmax.xlane.f32.xlu0 %v314
    %v316 = vpop.xlane.xlu0 %315
    %v317 = vsel %vm313, %v312, -inf
    %318 = vmax.xlane.f32.xlu0 %v317
    %v319 = vpop.xlane.xlu0 %318
    %v320 = vsub.f32 %v311, %v316
    %v321 = vsub.f32 %v312, %v319
    %v322 = vmul.f32 %v320, 1.442695
    %v323 = vpow.pop %v322
    %v324 = vmul.f32 %v321, 1.442695
    %v325 = vpow.pop %v324
    %v326 = vsel %vm313, %v323, 0.0
    %327 = vadd.xlane.f32.xlu0 %v326
    %v328 = vpop.xlane.xlu0 %327
    %v329 = vsel %vm313, %v325, 0.0
    %330 = vadd.xlane.f32.xlu0 %v329
    %v331 = vpop.xlane.xlu0 %330
    %v332 = vrcp.pop %v328
    %v333 = vrcp.pop %v331
    %v334 = vmul.f32 %v323, %v332
    %v335 = vmul.f32 %v325, %v333
    %336 = vrot.lane.b32.xlu0 %v262, 64
    %v337 = vpop.permute.xlu0 %336
    %338 = vrot.lane.b32.xlu0 %v265, 64
    %v339 = vpop.permute.xlu0 %338
    %v343 = vsel %vm313, %v334, 0
    %v346 = vsel %vm313, %v335, 0
    %348 = vmatpush.msra.mxu0 0.0
    %349 = vmatpush.msra.mxu0 0.0
    %350 = vmatpush.msra.mxu0 0.0
    %351 = vmatpush.msra.mxu0 0.0
    %352 = vmatpush.msra.mxu0 0.0
    %353 = vmatpush.msra.mxu0 0.0
    %354 = vmatpush.msra.mxu0 0.0
    %355 = vmatpush.msra.mxu0 0.0
    %356 = vmatpush.msra.mxu0 0.0
    %357 = vmatpush.msra.mxu0 0.0
    %358 = vmatpush.msra.mxu0 0.0
    %359 = vmatpush.msra.mxu0 0.0
    %360 = vmatpush.msra.mxu0 0.0
    %361 = vmatpush.msra.mxu0 0.0
    %362 = vmatpush.msra.mxu0 %v339
    %363 = vmatpush.msra.mxu0 %v337
    %364 = vmatmul.f32.gmra.mxu0 %v343
    %v365 = vpop.f32.mrf.mxu0
    %v366 = vadd.f32 0.0, %v365
    %367 = vmatmul.f32.gmra.mxu0 %v346
    %v368 = vpop.f32.mrf.mxu0
    %v369 = vadd.f32 0.0, %v368
    %370 = vdwg.mxu0
    %371 = vrot.lane.b32.xlu0 %v262, 120
    %v372 = vpop.permute.xlu0 %371
    %373 = vrot.lane.b32.xlu0 %v265, 120
    %v374 = vpop.permute.xlu0 %373
    %375 = vrot.lane.b32.xlu0 %v262, 88
    %v376 = vpop.permute.xlu0 %375
    %377 = vrot.lane.b32.xlu0 %v265, 88
    %v378 = vpop.permute.xlu0 %377
    %v379 = vsel %vm279, %v372, 0
    %v381 = vsel %vm279, %v374, 0
    %v383 = vsel %vm279, %v376, 0
    %v385 = vsel %vm279, %v378, 0
    %387 = vmatpush.xpose.msra.mxu0 0.0
    %388 = vmatpush.xpose.msra.mxu0 0.0
    %389 = vmatpush.xpose.msra.mxu0 0.0
    %390 = vmatpush.xpose.msra.mxu0 0.0
    %391 = vmatpush.xpose.msra.mxu0 0.0
    %392 = vmatpush.xpose.msra.mxu0 0.0
    %393 = vmatpush.xpose.msra.mxu0 0.0
    %394 = vmatpush.xpose.msra.mxu0 0.0
    %395 = vmatpush.xpose.msra.mxu0 0.0
    %396 = vmatpush.xpose.msra.mxu0 0.0
    %397 = vmatpush.xpose.msra.mxu0 0.0
    %398 = vmatpush.xpose.msra.mxu0 0.0
    %399 = vmatpush.xpose.msra.mxu0 0.0
    %400 = vmatpush.xpose.msra.mxu0 0.0
    %401 = vmatpush.xpose.msra.mxu0 %v385
    %402 = vmatpush.xpose.msra.mxu0 %v383
    %403 = vmatmul.f32.gmra.mxu0 %v379
    %v404 = vpop.f32.mrf.mxu0
    %v405 = vadd.f32 0.0, %v404
    %406 = vmatmul.f32.gmra.mxu0 %v381
    %v407 = vpop.f32.mrf.mxu0
    %v408 = vadd.f32 0.0, %v407
    %409 = vdwg.mxu0
    %v410 = vmul.f32 %v405, 0.35355338
    %v411 = vmul.f32 %v408, 0.35355338
    %v412 = vsel %vm313, %v410, -inf
    %413 = vmax.xlane.f32.xlu0 %v412
    %v414 = vpop.xlane.xlu0 %413
    %v415 = vsel %vm313, %v411, -inf
    %416 = vmax.xlane.f32.xlu0 %v415
    %v417 = vpop.xlane.xlu0 %416
    %v418 = vsub.f32 %v410, %v414
    %v419 = vsub.f32 %v411, %v417
    %v420 = vmul.f32 %v418, 1.442695
    %v421 = vpow.pop %v420
    %v422 = vmul.f32 %v419, 1.442695
    %v423 = vpow.pop %v422
    %v424 = vsel %vm313, %v421, 0.0
    %425 = vadd.xlane.f32.xlu0 %v424
    %v426 = vpop.xlane.xlu0 %425
    %v427 = vsel %vm313, %v423, 0.0
    %428 = vadd.xlane.f32.xlu0 %v427
    %v429 = vpop.xlane.xlu0 %428
    %v430 = vrcp.pop %v426
    %v431 = vrcp.pop %v429
    %v432 = vmul.f32 %v421, %v430
    %v433 = vmul.f32 %v423, %v431
    %434 = vrot.lane.b32.xlu0 %v262, 56
    %v435 = vpop.permute.xlu0 %434
    %436 = vrot.lane.b32.xlu0 %v265, 56
    %v437 = vpop.permute.xlu0 %436
    %v441 = vsel %vm313, %v432, 0
    %v444 = vsel %vm313, %v433, 0
    %446 = vmatpush.msra.mxu0 0.0
    %447 = vmatpush.msra.mxu0 0.0
    %448 = vmatpush.msra.mxu0 0.0
    %449 = vmatpush.msra.mxu0 0.0
    %450 = vmatpush.msra.mxu0 0.0
    %451 = vmatpush.msra.mxu0 0.0
    %452 = vmatpush.msra.mxu0 0.0
    %453 = vmatpush.msra.mxu0 0.0
    %454 = vmatpush.msra.mxu0 0.0
    %455 = vmatpush.msra.mxu0 0.0
    %456 = vmatpush.msra.mxu0 0.0
    %457 = vmatpush.msra.mxu0 0.0
    %458 = vmatpush.msra.mxu0 0.0
    %459 = vmatpush.msra.mxu0 0.0
    %460 = vmatpush.msra.mxu0 %v437
    %461 = vmatpush.msra.mxu0 %v435
    %462 = vmatmul.f32.gmra.mxu0 %v441
    %v463 = vpop.f32.mrf.mxu0
    %v464 = vadd.f32 0.0, %v463
    %465 = vmatmul.f32.gmra.mxu0 %v444
    %v466 = vpop.f32.mrf.mxu0
    %v467 = vadd.f32 0.0, %v466
    %468 = vdwg.mxu0
    %v470 = vsel %vm279, %v464, 0
    %v473 = vsel %vm279, %v467, 0
    %475 = vmatpush.msra.mxu0 0.0
    %476 = vmatpush.msra.mxu0 0.0
    %477 = vmatpush.msra.mxu0 0.0
    %478 = vmatpush.msra.mxu0 0.0
    %479 = vmatpush.msra.mxu0 0.0
    %480 = vmatpush.msra.mxu0 0.0
    %481 = vmatpush.msra.mxu0 0.0
    %482 = vmatpush.msra.mxu0 0.0
    %483 = vmatpush.msra.mxu0 0.0
    %484 = vmatpush.msra.mxu0 0.0
    %485 = vmatpush.msra.mxu0 0.0
    %486 = vmatpush.msra.mxu0 0.0
    %487 = vmatpush.msra.mxu0 0.0
    %488 = vmatpush.msra.mxu0 0.0
    %489 = vmatpush.msra.mxu0 0.0
    %490 = vmatpush.msra.mxu0 %v115
    %491 = vmatmul.f32.gmra.mxu0 %v470
    %v492 = vpop.f32.mrf.mxu0
    %v493 = vadd.f32 0.0, %v492
    %494 = vmatmul.f32.gmra.mxu0 %v473
    %v495 = vpop.f32.mrf.mxu0
    %v496 = vadd.f32 0.0, %v495
    %497 = vdwg.mxu0
    %v499 = vsel %vm279, %v366, 0
    %v502 = vsel %vm279, %v369, 0
    %504 = vmatpush.msra.mxu0 0.0
    %505 = vmatpush.msra.mxu0 0.0
    %506 = vmatpush.msra.mxu0 0.0
    %507 = vmatpush.msra.mxu0 0.0
    %508 = vmatpush.msra.mxu0 0.0
    %509 = vmatpush.msra.mxu0 0.0
    %510 = vmatpush.msra.mxu0 0.0
    %511 = vmatpush.msra.mxu0 0.0
    %512 = vmatpush.msra.mxu0 0.0
    %513 = vmatpush.msra.mxu0 0.0
    %514 = vmatpush.msra.mxu0 0.0
    %515 = vmatpush.msra.mxu0 0.0
    %516 = vmatpush.msra.mxu0 0.0
    %517 = vmatpush.msra.mxu0 0.0
    %518 = vmatpush.msra.mxu0 0.0
    %519 = vmatpush.msra.mxu0 %v114
    %520 = vmatmul.f32.gmra.mxu0 %v499
    %v521 = vpop.f32.mrf.mxu0
    %v522 = vadd.f32 %v493, %v521
    %523 = vmatmul.f32.gmra.mxu0 %v502
    %v524 = vpop.f32.mrf.mxu0
    %v525 = vadd.f32 %v496, %v524
    %526 = vdwg.mxu0
    %527 = vrot.lane.b32.xlu0 %v262, 112
    %v528 = vpop.permute.xlu0 %527
    %529 = vrot.lane.b32.xlu0 %v265, 112
    %v530 = vpop.permute.xlu0 %529
    %531 = vrot.lane.b32.xlu0 %v262, 80
    %v532 = vpop.permute.xlu0 %531
    %533 = vrot.lane.b32.xlu0 %v265, 80
    %v534 = vpop.permute.xlu0 %533
    %v535 = vsel %vm279, %v528, 0
    %v537 = vsel %vm279, %v530, 0
    %v539 = vsel %vm279, %v532, 0
    %v541 = vsel %vm279, %v534, 0
    %543 = vmatpush.xpose.msra.mxu0 0.0
    %544 = vmatpush.xpose.msra.mxu0 0.0
    %545 = vmatpush.xpose.msra.mxu0 0.0
    %546 = vmatpush.xpose.msra.mxu0 0.0
    %547 = vmatpush.xpose.msra.mxu0 0.0
    %548 = vmatpush.xpose.msra.mxu0 0.0
    %549 = vmatpush.xpose.msra.mxu0 0.0
    %550 = vmatpush.xpose.msra.mxu0 0.0
    %551 = vmatpush.xpose.msra.mxu0 0.0
    %552 = vmatpush.xpose.msra.mxu0 0.0
    %553 = vmatpush.xpose.msra.mxu0 0.0
    %554 = vmatpush.xpose.msra.mxu0 0.0
    %555 = vmatpush.xpose.msra.mxu0 0.0
    %556 = vmatpush.xpose.msra.mxu0 0.0
    %557 = vmatpush.xpose.msra.mxu0 %v541
    %558 = vmatpush.xpose.msra.mxu0 %v539
    %559 = vmatmul.f32.gmra.mxu0 %v535
    %v560 = vpop.f32.mrf.mxu0
    %v561 = vadd.f32 0.0, %v560
    %562 = vmatmul.f32.gmra.mxu0 %v537
    %v563 = vpop.f32.mrf.mxu0
    %v564 = vadd.f32 0.0, %v563
    %565 = vdwg.mxu0
    %v566 = vmul.f32 %v561, 0.35355338
    %v567 = vmul.f32 %v564, 0.35355338
    %v568 = vsel %vm313, %v566, -inf
    %569 = vmax.xlane.f32.xlu0 %v568
    %v570 = vpop.xlane.xlu0 %569
    %v571 = vsel %vm313, %v567, -inf
    %572 = vmax.xlane.f32.xlu0 %v571
    %v573 = vpop.xlane.xlu0 %572
    %v574 = vsub.f32 %v566, %v570
    %v575 = vsub.f32 %v567, %v573
    %v576 = vmul.f32 %v574, 1.442695
    %v577 = vpow.pop %v576
    %v578 = vmul.f32 %v575, 1.442695
    %v579 = vpow.pop %v578
    %v580 = vsel %vm313, %v577, 0.0
    %581 = vadd.xlane.f32.xlu0 %v580
    %v582 = vpop.xlane.xlu0 %581
    %v583 = vsel %vm313, %v579, 0.0
    %584 = vadd.xlane.f32.xlu0 %v583
    %v585 = vpop.xlane.xlu0 %584
    %v586 = vrcp.pop %v582
    %v587 = vrcp.pop %v585
    %v588 = vmul.f32 %v577, %v586
    %v589 = vmul.f32 %v579, %v587
    %590 = vrot.lane.b32.xlu0 %v262, 48
    %v591 = vpop.permute.xlu0 %590
    %592 = vrot.lane.b32.xlu0 %v265, 48
    %v593 = vpop.permute.xlu0 %592
    %v597 = vsel %vm313, %v588, 0
    %v600 = vsel %vm313, %v589, 0
    %602 = vmatpush.msra.mxu0 0.0
    %603 = vmatpush.msra.mxu0 0.0
    %604 = vmatpush.msra.mxu0 0.0
    %605 = vmatpush.msra.mxu0 0.0
    %606 = vmatpush.msra.mxu0 0.0
    %607 = vmatpush.msra.mxu0 0.0
    %608 = vmatpush.msra.mxu0 0.0
    %609 = vmatpush.msra.mxu0 0.0
    %610 = vmatpush.msra.mxu0 0.0
    %611 = vmatpush.msra.mxu0 0.0
    %612 = vmatpush.msra.mxu0 0.0
    %613 = vmatpush.msra.mxu0 0.0
    %614 = vmatpush.msra.mxu0 0.0
    %615 = vmatpush.msra.mxu0 0.0
    %616 = vmatpush.msra.mxu0 %v593
    %617 = vmatpush.msra.mxu0 %v591
    %618 = vmatmul.f32.gmra.mxu0 %v597
    %v619 = vpop.f32.mrf.mxu0
    %v620 = vadd.f32 0.0, %v619
    %621 = vmatmul.f32.gmra.mxu0 %v600
    %v622 = vpop.f32.mrf.mxu0
    %v623 = vadd.f32 0.0, %v622
    %624 = vdwg.mxu0
    %v626 = vsel %vm279, %v620, 0
    %v629 = vsel %vm279, %v623, 0
    %631 = vmatpush.msra.mxu0 0.0
    %632 = vmatpush.msra.mxu0 0.0
    %633 = vmatpush.msra.mxu0 0.0
    %634 = vmatpush.msra.mxu0 0.0
    %635 = vmatpush.msra.mxu0 0.0
    %636 = vmatpush.msra.mxu0 0.0
    %637 = vmatpush.msra.mxu0 0.0
    %638 = vmatpush.msra.mxu0 0.0
    %639 = vmatpush.msra.mxu0 0.0
    %640 = vmatpush.msra.mxu0 0.0
    %641 = vmatpush.msra.mxu0 0.0
    %642 = vmatpush.msra.mxu0 0.0
    %643 = vmatpush.msra.mxu0 0.0
    %644 = vmatpush.msra.mxu0 0.0
    %645 = vmatpush.msra.mxu0 0.0
    %646 = vmatpush.msra.mxu0 %v116
    %647 = vmatmul.f32.gmra.mxu0 %v626
    %v648 = vpop.f32.mrf.mxu0
    %v649 = vadd.f32 0.0, %v648
    %650 = vmatmul.f32.gmra.mxu0 %v629
    %v651 = vpop.f32.mrf.mxu0
    %v652 = vadd.f32 0.0, %v651
    %653 = vdwg.mxu0
    %v654 = vadd.f32 %v522, %v649
    %v655 = vadd.f32 %v525, %v652
    %656 = vrot.lane.b32.xlu0 %v262, 104
    %v657 = vpop.permute.xlu0 %656
    %658 = vrot.lane.b32.xlu0 %v265, 104
    %v659 = vpop.permute.xlu0 %658
    %660 = vrot.lane.b32.xlu0 %v262, 72
    %v661 = vpop.permute.xlu0 %660
    %662 = vrot.lane.b32.xlu0 %v265, 72
    %v663 = vpop.permute.xlu0 %662
    %v664 = vsel %vm279, %v657, 0
    %v666 = vsel %vm279, %v659, 0
    %v668 = vsel %vm279, %v661, 0
    %v670 = vsel %vm279, %v663, 0
    %672 = vmatpush.xpose.msra.mxu0 0.0
    %673 = vmatpush.xpose.msra.mxu0 0.0
    %674 = vmatpush.xpose.msra.mxu0 0.0
    %675 = vmatpush.xpose.msra.mxu0 0.0
    %676 = vmatpush.xpose.msra.mxu0 0.0
    %677 = vmatpush.xpose.msra.mxu0 0.0
    %678 = vmatpush.xpose.msra.mxu0 0.0
    %679 = vmatpush.xpose.msra.mxu0 0.0
    %680 = vmatpush.xpose.msra.mxu0 0.0
    %681 = vmatpush.xpose.msra.mxu0 0.0
    %682 = vmatpush.xpose.msra.mxu0 0.0
    %683 = vmatpush.xpose.msra.mxu0 0.0
    %684 = vmatpush.xpose.msra.mxu0 0.0
    %685 = vmatpush.xpose.msra.mxu0 0.0
    %686 = vmatpush.xpose.msra.mxu0 %v670
    %687 = vmatpush.xpose.msra.mxu0 %v668
    %688 = vmatmul.f32.gmra.mxu0 %v664
    %v689 = vpop.f32.mrf.mxu0
    %v690 = vadd.f32 0.0, %v689
    %691 = vmatmul.f32.gmra.mxu0 %v666
    %v692 = vpop.f32.mrf.mxu0
    %v693 = vadd.f32 0.0, %v692
    %694 = vdwg.mxu0
    %v695 = vmul.f32 %v690, 0.35355338
    %v696 = vmul.f32 %v693, 0.35355338
    %v697 = vsel %vm313, %v695, -inf
    %698 = vmax.xlane.f32.xlu0 %v697
    %v699 = vpop.xlane.xlu0 %698
    %v700 = vsel %vm313, %v696, -inf
    %701 = vmax.xlane.f32.xlu0 %v700
    %v702 = vpop.xlane.xlu0 %701
    %v703 = vsub.f32 %v695, %v699
    %v704 = vsub.f32 %v696, %v702
    %v705 = vmul.f32 %v703, 1.442695
    %v706 = vpow.pop %v705
    %v707 = vmul.f32 %v704, 1.442695
    %v708 = vpow.pop %v707
    %v709 = vsel %vm313, %v706, 0.0
    %710 = vadd.xlane.f32.xlu0 %v709
    %v711 = vpop.xlane.xlu0 %710
    %v712 = vsel %vm313, %v708, 0.0
    %713 = vadd.xlane.f32.xlu0 %v712
    %v714 = vpop.xlane.xlu0 %713
    %v715 = vrcp.pop %v711
    %v716 = vrcp.pop %v714
    %v717 = vmul.f32 %v706, %v715
    %v718 = vmul.f32 %v708, %v716
    %719 = vrot.lane.b32.xlu0 %v262, 40
    %v720 = vpop.permute.xlu0 %719
    %721 = vrot.lane.b32.xlu0 %v265, 40
    %v722 = vpop.permute.xlu0 %721
    %v726 = vsel %vm313, %v717, 0
    %v729 = vsel %vm313, %v718, 0
    %731 = vmatpush.msra.mxu0 0.0
    %732 = vmatpush.msra.mxu0 0.0
    %733 = vmatpush.msra.mxu0 0.0
    %734 = vmatpush.msra.mxu0 0.0
    %735 = vmatpush.msra.mxu0 0.0
    %736 = vmatpush.msra.mxu0 0.0
    %737 = vmatpush.msra.mxu0 0.0
    %738 = vmatpush.msra.mxu0 0.0
    %739 = vmatpush.msra.mxu0 0.0
    %740 = vmatpush.msra.mxu0 0.0
    %741 = vmatpush.msra.mxu0 0.0
    %742 = vmatpush.msra.mxu0 0.0
    %743 = vmatpush.msra.mxu0 0.0
    %744 = vmatpush.msra.mxu0 0.0
    %745 = vmatpush.msra.mxu0 %v722
    %746 = vmatpush.msra.mxu0 %v720
    %747 = vmatmul.f32.gmra.mxu0 %v726
    %v748 = vpop.f32.mrf.mxu0
    %v749 = vadd.f32 0.0, %v748
    %750 = vmatmul.f32.gmra.mxu0 %v729
    %v751 = vpop.f32.mrf.mxu0
    %v752 = vadd.f32 0.0, %v751
    %753 = vdwg.mxu0
    %v755 = vsel %vm279, %v749, 0
    %v758 = vsel %vm279, %v752, 0
    %760 = vmatpush.msra.mxu0 0.0
    %761 = vmatpush.msra.mxu0 0.0
    %762 = vmatpush.msra.mxu0 0.0
    %763 = vmatpush.msra.mxu0 0.0
    %764 = vmatpush.msra.mxu0 0.0
    %765 = vmatpush.msra.mxu0 0.0
    %766 = vmatpush.msra.mxu0 0.0
    %767 = vmatpush.msra.mxu0 0.0
    %768 = vmatpush.msra.mxu0 0.0
    %769 = vmatpush.msra.mxu0 0.0
    %770 = vmatpush.msra.mxu0 0.0
    %771 = vmatpush.msra.mxu0 0.0
    %772 = vmatpush.msra.mxu0 0.0
    %773 = vmatpush.msra.mxu0 0.0
    %774 = vmatpush.msra.mxu0 0.0
    %775 = vmatpush.msra.mxu0 %v117
    %776 = vmatmul.f32.gmra.mxu0 %v755
    %v777 = vpop.f32.mrf.mxu0
    %v778 = vadd.f32 0.0, %v777
    %779 = vmatmul.f32.gmra.mxu0 %v758
    %v780 = vpop.f32.mrf.mxu0
    %v781 = vadd.f32 0.0, %v780
    %782 = vdwg.mxu0
    %v783 = vadd.f32 %v654, %v778
    %v784 = vadd.f32 %v655, %v781
    %787 = vrot.lane.b32.xlu0 %v268, 96
    %v788 = vpop.permute.xlu0 %787
    %789 = vrot.lane.b32.xlu0 %v271, 96
    %v790 = vpop.permute.xlu0 %789
    %v791 = vsel %vm279, %v268, 0
    %v793 = vsel %vm279, %v271, 0
    %v795 = vsel %vm279, %v788, 0
    %v797 = vsel %vm279, %v790, 0
    %799 = vmatpush.xpose.msra.mxu0 0.0
    %800 = vmatpush.xpose.msra.mxu0 0.0
    %801 = vmatpush.xpose.msra.mxu0 0.0
    %802 = vmatpush.xpose.msra.mxu0 0.0
    %803 = vmatpush.xpose.msra.mxu0 0.0
    %804 = vmatpush.xpose.msra.mxu0 0.0
    %805 = vmatpush.xpose.msra.mxu0 0.0
    %806 = vmatpush.xpose.msra.mxu0 0.0
    %807 = vmatpush.xpose.msra.mxu0 0.0
    %808 = vmatpush.xpose.msra.mxu0 0.0
    %809 = vmatpush.xpose.msra.mxu0 0.0
    %810 = vmatpush.xpose.msra.mxu0 0.0
    %811 = vmatpush.xpose.msra.mxu0 0.0
    %812 = vmatpush.xpose.msra.mxu0 0.0
    %813 = vmatpush.xpose.msra.mxu0 %v797
    %814 = vmatpush.xpose.msra.mxu0 %v795
    %815 = vmatmul.f32.gmra.mxu0 %v791
    %v816 = vpop.f32.mrf.mxu0
    %v817 = vadd.f32 0.0, %v816
    %818 = vmatmul.f32.gmra.mxu0 %v793
    %v819 = vpop.f32.mrf.mxu0
    %v820 = vadd.f32 0.0, %v819
    %821 = vdwg.mxu0
    %v822 = vmul.f32 %v817, 0.35355338
    %v823 = vmul.f32 %v820, 0.35355338
    %v824 = vsel %vm313, %v822, -inf
    %825 = vmax.xlane.f32.xlu0 %v824
    %v826 = vpop.xlane.xlu0 %825
    %v827 = vsel %vm313, %v823, -inf
    %828 = vmax.xlane.f32.xlu0 %v827
    %v829 = vpop.xlane.xlu0 %828
    %v830 = vsub.f32 %v822, %v826
    %v831 = vsub.f32 %v823, %v829
    %v832 = vmul.f32 %v830, 1.442695
    %v833 = vpow.pop %v832
    %v834 = vmul.f32 %v831, 1.442695
    %v835 = vpow.pop %v834
    %v836 = vsel %vm313, %v833, 0.0
    %837 = vadd.xlane.f32.xlu0 %v836
    %v838 = vpop.xlane.xlu0 %837
    %v839 = vsel %vm313, %v835, 0.0
    %840 = vadd.xlane.f32.xlu0 %v839
    %v841 = vpop.xlane.xlu0 %840
    %v842 = vrcp.pop %v838
    %v843 = vrcp.pop %v841
    %v844 = vmul.f32 %v833, %v842
    %v845 = vmul.f32 %v835, %v843
    %846 = vrot.lane.b32.xlu0 %v268, 64
    %v847 = vpop.permute.xlu0 %846
    %848 = vrot.lane.b32.xlu0 %v271, 64
    %v849 = vpop.permute.xlu0 %848
    %v853 = vsel %vm313, %v844, 0
    %v856 = vsel %vm313, %v845, 0
    %858 = vmatpush.msra.mxu0 0.0
    %859 = vmatpush.msra.mxu0 0.0
    %860 = vmatpush.msra.mxu0 0.0
    %861 = vmatpush.msra.mxu0 0.0
    %862 = vmatpush.msra.mxu0 0.0
    %863 = vmatpush.msra.mxu0 0.0
    %864 = vmatpush.msra.mxu0 0.0
    %865 = vmatpush.msra.mxu0 0.0
    %866 = vmatpush.msra.mxu0 0.0
    %867 = vmatpush.msra.mxu0 0.0
    %868 = vmatpush.msra.mxu0 0.0
    %869 = vmatpush.msra.mxu0 0.0
    %870 = vmatpush.msra.mxu0 0.0
    %871 = vmatpush.msra.mxu0 0.0
    %872 = vmatpush.msra.mxu0 %v849
    %873 = vmatpush.msra.mxu0 %v847
    %874 = vmatmul.f32.gmra.mxu0 %v853
    %v875 = vpop.f32.mrf.mxu0
    %v876 = vadd.f32 0.0, %v875
    %877 = vmatmul.f32.gmra.mxu0 %v856
    %v878 = vpop.f32.mrf.mxu0
    %v879 = vadd.f32 0.0, %v878
    %880 = vdwg.mxu0
    %881 = vrot.lane.b32.xlu0 %v268, 120
    %v882 = vpop.permute.xlu0 %881
    %883 = vrot.lane.b32.xlu0 %v271, 120
    %v884 = vpop.permute.xlu0 %883
    %885 = vrot.lane.b32.xlu0 %v268, 88
    %v886 = vpop.permute.xlu0 %885
    %887 = vrot.lane.b32.xlu0 %v271, 88
    %v888 = vpop.permute.xlu0 %887
    %v889 = vsel %vm279, %v882, 0
    %v891 = vsel %vm279, %v884, 0
    %v893 = vsel %vm279, %v886, 0
    %v895 = vsel %vm279, %v888, 0
    %897 = vmatpush.xpose.msra.mxu0 0.0
    %898 = vmatpush.xpose.msra.mxu0 0.0
    %899 = vmatpush.xpose.msra.mxu0 0.0
    %900 = vmatpush.xpose.msra.mxu0 0.0
    %901 = vmatpush.xpose.msra.mxu0 0.0
    %902 = vmatpush.xpose.msra.mxu0 0.0
    %903 = vmatpush.xpose.msra.mxu0 0.0
    %904 = vmatpush.xpose.msra.mxu0 0.0
    %905 = vmatpush.xpose.msra.mxu0 0.0
    %906 = vmatpush.xpose.msra.mxu0 0.0
    %907 = vmatpush.xpose.msra.mxu0 0.0
    %908 = vmatpush.xpose.msra.mxu0 0.0
    %909 = vmatpush.xpose.msra.mxu0 0.0
    %910 = vmatpush.xpose.msra.mxu0 0.0
    %911 = vmatpush.xpose.msra.mxu0 %v895
    %912 = vmatpush.xpose.msra.mxu0 %v893
    %913 = vmatmul.f32.gmra.mxu0 %v889
    %v914 = vpop.f32.mrf.mxu0
    %v915 = vadd.f32 0.0, %v914
    %916 = vmatmul.f32.gmra.mxu0 %v891
    %v917 = vpop.f32.mrf.mxu0
    %v918 = vadd.f32 0.0, %v917
    %919 = vdwg.mxu0
    %v920 = vmul.f32 %v915, 0.35355338
    %v921 = vmul.f32 %v918, 0.35355338
    %v922 = vsel %vm313, %v920, -inf
    %923 = vmax.xlane.f32.xlu0 %v922
    %v924 = vpop.xlane.xlu0 %923
    %v925 = vsel %vm313, %v921, -inf
    %926 = vmax.xlane.f32.xlu0 %v925
    %v927 = vpop.xlane.xlu0 %926
    %v928 = vsub.f32 %v920, %v924
    %v929 = vsub.f32 %v921, %v927
    %v930 = vmul.f32 %v928, 1.442695
    %v931 = vpow.pop %v930
    %v932 = vmul.f32 %v929, 1.442695
    %v933 = vpow.pop %v932
    %v934 = vsel %vm313, %v931, 0.0
    %935 = vadd.xlane.f32.xlu0 %v934
    %v936 = vpop.xlane.xlu0 %935
    %v937 = vsel %vm313, %v933, 0.0
    %938 = vadd.xlane.f32.xlu0 %v937
    %v939 = vpop.xlane.xlu0 %938
    %v940 = vrcp.pop %v936
    %v941 = vrcp.pop %v939
    %v942 = vmul.f32 %v931, %v940
    %v943 = vmul.f32 %v933, %v941
    %944 = vrot.lane.b32.xlu0 %v268, 56
    %v945 = vpop.permute.xlu0 %944
    %946 = vrot.lane.b32.xlu0 %v271, 56
    %v947 = vpop.permute.xlu0 %946
    %v951 = vsel %vm313, %v942, 0
    %v954 = vsel %vm313, %v943, 0
    %956 = vmatpush.msra.mxu0 0.0
    %957 = vmatpush.msra.mxu0 0.0
    %958 = vmatpush.msra.mxu0 0.0
    %959 = vmatpush.msra.mxu0 0.0
    %960 = vmatpush.msra.mxu0 0.0
    %961 = vmatpush.msra.mxu0 0.0
    %962 = vmatpush.msra.mxu0 0.0
    %963 = vmatpush.msra.mxu0 0.0
    %964 = vmatpush.msra.mxu0 0.0
    %965 = vmatpush.msra.mxu0 0.0
    %966 = vmatpush.msra.mxu0 0.0
    %967 = vmatpush.msra.mxu0 0.0
    %968 = vmatpush.msra.mxu0 0.0
    %969 = vmatpush.msra.mxu0 0.0
    %970 = vmatpush.msra.mxu0 %v947
    %971 = vmatpush.msra.mxu0 %v945
    %972 = vmatmul.f32.gmra.mxu0 %v951
    %v973 = vpop.f32.mrf.mxu0
    %v974 = vadd.f32 0.0, %v973
    %975 = vmatmul.f32.gmra.mxu0 %v954
    %v976 = vpop.f32.mrf.mxu0
    %v977 = vadd.f32 0.0, %v976
    %978 = vdwg.mxu0
    %v980 = vsel %vm279, %v974, 0
    %v983 = vsel %vm279, %v977, 0
    %985 = vmatpush.msra.mxu0 0.0
    %986 = vmatpush.msra.mxu0 0.0
    %987 = vmatpush.msra.mxu0 0.0
    %988 = vmatpush.msra.mxu0 0.0
    %989 = vmatpush.msra.mxu0 0.0
    %990 = vmatpush.msra.mxu0 0.0
    %991 = vmatpush.msra.mxu0 0.0
    %992 = vmatpush.msra.mxu0 0.0
    %993 = vmatpush.msra.mxu0 0.0
    %994 = vmatpush.msra.mxu0 0.0
    %995 = vmatpush.msra.mxu0 0.0
    %996 = vmatpush.msra.mxu0 0.0
    %997 = vmatpush.msra.mxu0 0.0
    %998 = vmatpush.msra.mxu0 0.0
    %999 = vmatpush.msra.mxu0 0.0
    %1000 = vmatpush.msra.mxu0 %v115
    %1001 = vmatmul.f32.gmra.mxu0 %v980
    %v1002 = vpop.f32.mrf.mxu0
    %v1003 = vadd.f32 0.0, %v1002
    %1004 = vmatmul.f32.gmra.mxu0 %v983
    %v1005 = vpop.f32.mrf.mxu0
    %v1006 = vadd.f32 0.0, %v1005
    %1007 = vdwg.mxu0
    %v1009 = vsel %vm279, %v876, 0
    %v1012 = vsel %vm279, %v879, 0
    %1014 = vmatpush.msra.mxu0 0.0
    %1015 = vmatpush.msra.mxu0 0.0
    %1016 = vmatpush.msra.mxu0 0.0
    %1017 = vmatpush.msra.mxu0 0.0
    %1018 = vmatpush.msra.mxu0 0.0
    %1019 = vmatpush.msra.mxu0 0.0
    %1020 = vmatpush.msra.mxu0 0.0
    %1021 = vmatpush.msra.mxu0 0.0
    %1022 = vmatpush.msra.mxu0 0.0
    %1023 = vmatpush.msra.mxu0 0.0
    %1024 = vmatpush.msra.mxu0 0.0
    %1025 = vmatpush.msra.mxu0 0.0
    %1026 = vmatpush.msra.mxu0 0.0
    %1027 = vmatpush.msra.mxu0 0.0
    %1028 = vmatpush.msra.mxu0 0.0
    %1029 = vmatpush.msra.mxu0 %v114
    %1030 = vmatmul.f32.gmra.mxu0 %v1009
    %v1031 = vpop.f32.mrf.mxu0
    %v1032 = vadd.f32 %v1003, %v1031
    %1033 = vmatmul.f32.gmra.mxu0 %v1012
    %v1034 = vpop.f32.mrf.mxu0
    %v1035 = vadd.f32 %v1006, %v1034
    %1036 = vdwg.mxu0
    %1037 = vrot.lane.b32.xlu0 %v268, 112
    %v1038 = vpop.permute.xlu0 %1037
    %1039 = vrot.lane.b32.xlu0 %v271, 112
    %v1040 = vpop.permute.xlu0 %1039
    %1041 = vrot.lane.b32.xlu0 %v268, 80
    %v1042 = vpop.permute.xlu0 %1041
    %1043 = vrot.lane.b32.xlu0 %v271, 80
    %v1044 = vpop.permute.xlu0 %1043
    %v1045 = vsel %vm279, %v1038, 0
    %v1047 = vsel %vm279, %v1040, 0
    %v1049 = vsel %vm279, %v1042, 0
    %v1051 = vsel %vm279, %v1044, 0
    %1053 = vmatpush.xpose.msra.mxu0 0.0
    %1054 = vmatpush.xpose.msra.mxu0 0.0
    %1055 = vmatpush.xpose.msra.mxu0 0.0
    %1056 = vmatpush.xpose.msra.mxu0 0.0
    %1057 = vmatpush.xpose.msra.mxu0 0.0
    %1058 = vmatpush.xpose.msra.mxu0 0.0
    %1059 = vmatpush.xpose.msra.mxu0 0.0
    %1060 = vmatpush.xpose.msra.mxu0 0.0
    %1061 = vmatpush.xpose.msra.mxu0 0.0
    %1062 = vmatpush.xpose.msra.mxu0 0.0
    %1063 = vmatpush.xpose.msra.mxu0 0.0
    %1064 = vmatpush.xpose.msra.mxu0 0.0
    %1065 = vmatpush.xpose.msra.mxu0 0.0
    %1066 = vmatpush.xpose.msra.mxu0 0.0
    %1067 = vmatpush.xpose.msra.mxu0 %v1051
    %1068 = vmatpush.xpose.msra.mxu0 %v1049
    %1069 = vmatmul.f32.gmra.mxu0 %v1045
    %v1070 = vpop.f32.mrf.mxu0
    %v1071 = vadd.f32 0.0, %v1070
    %1072 = vmatmul.f32.gmra.mxu0 %v1047
    %v1073 = vpop.f32.mrf.mxu0
    %v1074 = vadd.f32 0.0, %v1073
    %1075 = vdwg.mxu0
    %v1076 = vmul.f32 %v1071, 0.35355338
    %v1077 = vmul.f32 %v1074, 0.35355338
    %v1078 = vsel %vm313, %v1076, -inf
    %1079 = vmax.xlane.f32.xlu0 %v1078
    %v1080 = vpop.xlane.xlu0 %1079
    %v1081 = vsel %vm313, %v1077, -inf
    %1082 = vmax.xlane.f32.xlu0 %v1081
    %v1083 = vpop.xlane.xlu0 %1082
    %v1084 = vsub.f32 %v1076, %v1080
    %v1085 = vsub.f32 %v1077, %v1083
    %v1086 = vmul.f32 %v1084, 1.442695
    %v1087 = vpow.pop %v1086
    %v1088 = vmul.f32 %v1085, 1.442695
    %v1089 = vpow.pop %v1088
    %v1090 = vsel %vm313, %v1087, 0.0
    %1091 = vadd.xlane.f32.xlu0 %v1090
    %v1092 = vpop.xlane.xlu0 %1091
    %v1093 = vsel %vm313, %v1089, 0.0
    %1094 = vadd.xlane.f32.xlu0 %v1093
    %v1095 = vpop.xlane.xlu0 %1094
    %v1096 = vrcp.pop %v1092
    %v1097 = vrcp.pop %v1095
    %v1098 = vmul.f32 %v1087, %v1096
    %v1099 = vmul.f32 %v1089, %v1097
    %1100 = vrot.lane.b32.xlu0 %v268, 48
    %v1101 = vpop.permute.xlu0 %1100
    %1102 = vrot.lane.b32.xlu0 %v271, 48
    %v1103 = vpop.permute.xlu0 %1102
    %v1107 = vsel %vm313, %v1098, 0
    %v1110 = vsel %vm313, %v1099, 0
    %1112 = vmatpush.msra.mxu0 0.0
    %1113 = vmatpush.msra.mxu0 0.0
    %1114 = vmatpush.msra.mxu0 0.0
    %1115 = vmatpush.msra.mxu0 0.0
    %1116 = vmatpush.msra.mxu0 0.0
    %1117 = vmatpush.msra.mxu0 0.0
    %1118 = vmatpush.msra.mxu0 0.0
    %1119 = vmatpush.msra.mxu0 0.0
    %1120 = vmatpush.msra.mxu0 0.0
    %1121 = vmatpush.msra.mxu0 0.0
    %1122 = vmatpush.msra.mxu0 0.0
    %1123 = vmatpush.msra.mxu0 0.0
    %1124 = vmatpush.msra.mxu0 0.0
    %1125 = vmatpush.msra.mxu0 0.0
    %1126 = vmatpush.msra.mxu0 %v1103
    %1127 = vmatpush.msra.mxu0 %v1101
    %1128 = vmatmul.f32.gmra.mxu0 %v1107
    %v1129 = vpop.f32.mrf.mxu0
    %v1130 = vadd.f32 0.0, %v1129
    %1131 = vmatmul.f32.gmra.mxu0 %v1110
    %v1132 = vpop.f32.mrf.mxu0
    %v1133 = vadd.f32 0.0, %v1132
    %1134 = vdwg.mxu0
    %v1136 = vsel %vm279, %v1130, 0
    %v1139 = vsel %vm279, %v1133, 0
    %1141 = vmatpush.msra.mxu0 0.0
    %1142 = vmatpush.msra.mxu0 0.0
    %1143 = vmatpush.msra.mxu0 0.0
    %1144 = vmatpush.msra.mxu0 0.0
    %1145 = vmatpush.msra.mxu0 0.0
    %1146 = vmatpush.msra.mxu0 0.0
    %1147 = vmatpush.msra.mxu0 0.0
    %1148 = vmatpush.msra.mxu0 0.0
    %1149 = vmatpush.msra.mxu0 0.0
    %1150 = vmatpush.msra.mxu0 0.0
    %1151 = vmatpush.msra.mxu0 0.0
    %1152 = vmatpush.msra.mxu0 0.0
    %1153 = vmatpush.msra.mxu0 0.0
    %1154 = vmatpush.msra.mxu0 0.0
    %1155 = vmatpush.msra.mxu0 0.0
    %1156 = vmatpush.msra.mxu0 %v116
    %1157 = vmatmul.f32.gmra.mxu0 %v1136
    %v1158 = vpop.f32.mrf.mxu0
    %v1159 = vadd.f32 0.0, %v1158
    %1160 = vmatmul.f32.gmra.mxu0 %v1139
    %v1161 = vpop.f32.mrf.mxu0
    %v1162 = vadd.f32 0.0, %v1161
    %1163 = vdwg.mxu0
    %v1164 = vadd.f32 %v1032, %v1159
    %v1165 = vadd.f32 %v1035, %v1162
    %1166 = vrot.lane.b32.xlu0 %v268, 104
    %v1167 = vpop.permute.xlu0 %1166
    %1168 = vrot.lane.b32.xlu0 %v271, 104
    %v1169 = vpop.permute.xlu0 %1168
    %1170 = vrot.lane.b32.xlu0 %v268, 72
    %v1171 = vpop.permute.xlu0 %1170
    %1172 = vrot.lane.b32.xlu0 %v271, 72
    %v1173 = vpop.permute.xlu0 %1172
    %v1174 = vsel %vm279, %v1167, 0
    %v1176 = vsel %vm279, %v1169, 0
    %v1178 = vsel %vm279, %v1171, 0
    %v1180 = vsel %vm279, %v1173, 0
    %1182 = vmatpush.xpose.msra.mxu0 0.0
    %1183 = vmatpush.xpose.msra.mxu0 0.0
    %1184 = vmatpush.xpose.msra.mxu0 0.0
    %1185 = vmatpush.xpose.msra.mxu0 0.0
    %1186 = vmatpush.xpose.msra.mxu0 0.0
    %1187 = vmatpush.xpose.msra.mxu0 0.0
    %1188 = vmatpush.xpose.msra.mxu0 0.0
    %1189 = vmatpush.xpose.msra.mxu0 0.0
    %1190 = vmatpush.xpose.msra.mxu0 0.0
    %1191 = vmatpush.xpose.msra.mxu0 0.0
    %1192 = vmatpush.xpose.msra.mxu0 0.0
    %1193 = vmatpush.xpose.msra.mxu0 0.0
    %1194 = vmatpush.xpose.msra.mxu0 0.0
    %1195 = vmatpush.xpose.msra.mxu0 0.0
    %1196 = vmatpush.xpose.msra.mxu0 %v1180
    %1197 = vmatpush.xpose.msra.mxu0 %v1178
    %1198 = vmatmul.f32.gmra.mxu0 %v1174
    %v1199 = vpop.f32.mrf.mxu0
    %v1200 = vadd.f32 0.0, %v1199
    %1201 = vmatmul.f32.gmra.mxu0 %v1176
    %v1202 = vpop.f32.mrf.mxu0
    %v1203 = vadd.f32 0.0, %v1202
    %1204 = vdwg.mxu0
    %v1205 = vmul.f32 %v1200, 0.35355338
    %v1206 = vmul.f32 %v1203, 0.35355338
    %v1207 = vsel %vm313, %v1205, -inf
    %1208 = vmax.xlane.f32.xlu0 %v1207
    %v1209 = vpop.xlane.xlu0 %1208
    %v1210 = vsel %vm313, %v1206, -inf
    %1211 = vmax.xlane.f32.xlu0 %v1210
    %v1212 = vpop.xlane.xlu0 %1211
    %v1213 = vsub.f32 %v1205, %v1209
    %v1214 = vsub.f32 %v1206, %v1212
    %v1215 = vmul.f32 %v1213, 1.442695
    %v1216 = vpow.pop %v1215
    %v1217 = vmul.f32 %v1214, 1.442695
    %v1218 = vpow.pop %v1217
    %v1219 = vsel %vm313, %v1216, 0.0
    %1220 = vadd.xlane.f32.xlu0 %v1219
    %v1221 = vpop.xlane.xlu0 %1220
    %v1222 = vsel %vm313, %v1218, 0.0
    %1223 = vadd.xlane.f32.xlu0 %v1222
    %v1224 = vpop.xlane.xlu0 %1223
    %v1225 = vrcp.pop %v1221
    %v1226 = vrcp.pop %v1224
    %v1227 = vmul.f32 %v1216, %v1225
    %v1228 = vmul.f32 %v1218, %v1226
    %1229 = vrot.lane.b32.xlu0 %v268, 40
    %v1230 = vpop.permute.xlu0 %1229
    %1231 = vrot.lane.b32.xlu0 %v271, 40
    %v1232 = vpop.permute.xlu0 %1231
    %v1236 = vsel %vm313, %v1227, 0
    %v1239 = vsel %vm313, %v1228, 0
    %1241 = vmatpush.msra.mxu0 0.0
    %1242 = vmatpush.msra.mxu0 0.0
    %1243 = vmatpush.msra.mxu0 0.0
    %1244 = vmatpush.msra.mxu0 0.0
    %1245 = vmatpush.msra.mxu0 0.0
    %1246 = vmatpush.msra.mxu0 0.0
    %1247 = vmatpush.msra.mxu0 0.0
    %1248 = vmatpush.msra.mxu0 0.0
    %1249 = vmatpush.msra.mxu0 0.0
    %1250 = vmatpush.msra.mxu0 0.0
    %1251 = vmatpush.msra.mxu0 0.0
    %1252 = vmatpush.msra.mxu0 0.0
    %1253 = vmatpush.msra.mxu0 0.0
    %1254 = vmatpush.msra.mxu0 0.0
    %1255 = vmatpush.msra.mxu0 %v1232
    %1256 = vmatpush.msra.mxu0 %v1230
    %1257 = vmatmul.f32.gmra.mxu0 %v1236
    %v1258 = vpop.f32.mrf.mxu0
    %v1259 = vadd.f32 0.0, %v1258
    %1260 = vmatmul.f32.gmra.mxu0 %v1239
    %v1261 = vpop.f32.mrf.mxu0
    %v1262 = vadd.f32 0.0, %v1261
    %1263 = vdwg.mxu0
    %v1265 = vsel %vm279, %v1259, 0
    %v1268 = vsel %vm279, %v1262, 0
    %1270 = vmatpush.msra.mxu0 0.0
    %1271 = vmatpush.msra.mxu0 0.0
    %1272 = vmatpush.msra.mxu0 0.0
    %1273 = vmatpush.msra.mxu0 0.0
    %1274 = vmatpush.msra.mxu0 0.0
    %1275 = vmatpush.msra.mxu0 0.0
    %1276 = vmatpush.msra.mxu0 0.0
    %1277 = vmatpush.msra.mxu0 0.0
    %1278 = vmatpush.msra.mxu0 0.0
    %1279 = vmatpush.msra.mxu0 0.0
    %1280 = vmatpush.msra.mxu0 0.0
    %1281 = vmatpush.msra.mxu0 0.0
    %1282 = vmatpush.msra.mxu0 0.0
    %1283 = vmatpush.msra.mxu0 0.0
    %1284 = vmatpush.msra.mxu0 0.0
    %1285 = vmatpush.msra.mxu0 %v117
    %1286 = vmatmul.f32.gmra.mxu0 %v1265
    %v1287 = vpop.f32.mrf.mxu0
    %v1288 = vadd.f32 0.0, %v1287
    %1289 = vmatmul.f32.gmra.mxu0 %v1268
    %v1290 = vpop.f32.mrf.mxu0
    %v1291 = vadd.f32 0.0, %v1290
    %1292 = vdwg.mxu0
    %v1293 = vadd.f32 %v1164, %v1288
    %v1294 = vadd.f32 %v1165, %v1291
    %v1295 = vadd.f32 %v102, %v783
    %v1296 = vadd.f32 %v105, %v784
    %v1297 = vadd.f32 %v108, %v1293
    %v1298 = vadd.f32 %v111, %v1294
    %v1299 = vperm.slane %v113, 4
    %v1300 = vadd.f32 %v1295, %v1299
    %v1301 = vadd.f32 %v1296, %v1299
    %v1302 = vadd.f32 %v1297, %v1299
    %v1303 = vadd.f32 %v1298, %v1299
    %v1304 = vsel %vm118, %v1300, 0.0
    %1305 = vadd.xlane.f32.xlu0 %v1304
    %v1306 = vpop.xlane.xlu0 %1305
    %v1307 = vsel %vm118, %v1301, 0.0
    %1308 = vadd.xlane.f32.xlu0 %v1307
    %v1309 = vpop.xlane.xlu0 %1308
    %v1310 = vsel %vm118, %v1302, 0.0
    %1311 = vadd.xlane.f32.xlu0 %v1310
    %v1312 = vpop.xlane.xlu0 %1311
    %v1313 = vsel %vm118, %v1303, 0.0
    %1314 = vadd.xlane.f32.xlu0 %v1313
    %v1315 = vpop.xlane.xlu0 %1314
    %v1316 = vmul.f32 %v1306, %v137
    %v1317 = vmul.f32 %v1309, %v137
    %v1318 = vmul.f32 %v1312, %v137
    %v1319 = vmul.f32 %v1315, %v137
    %v1320 = vsub.f32 %v1300, %v1316
    %v1321 = vsub.f32 %v1301, %v1317
    %v1322 = vsub.f32 %v1302, %v1318
    %v1323 = vsub.f32 %v1303, %v1319
    %v1324 = vmul.f32 %v1320, %v1320
    %v1325 = vmul.f32 %v1321, %v1321
    %v1326 = vmul.f32 %v1322, %v1322
    %v1327 = vmul.f32 %v1323, %v1323
    %v1328 = vsel %vm118, %v1324, 0.0
    %1329 = vadd.xlane.f32.xlu0 %v1328
    %v1330 = vpop.xlane.xlu0 %1329
    %v1331 = vsel %vm118, %v1325, 0.0
    %1332 = vadd.xlane.f32.xlu0 %v1331
    %v1333 = vpop.xlane.xlu0 %1332
    %v1334 = vsel %vm118, %v1326, 0.0
    %1335 = vadd.xlane.f32.xlu0 %v1334
    %v1336 = vpop.xlane.xlu0 %1335
    %v1337 = vsel %vm118, %v1327, 0.0
    %1338 = vadd.xlane.f32.xlu0 %v1337
    %v1339 = vpop.xlane.xlu0 %1338
    %v1340 = vmul.f32 %v1330, %v137
    %v1341 = vmul.f32 %v1333, %v137
    %v1342 = vmul.f32 %v1336, %v137
    %v1343 = vmul.f32 %v1339, %v137
    %v1344 = vadd.f32 %v1340, 1e-06
    %v1345 = vadd.f32 %v1341, 1e-06
    %v1346 = vadd.f32 %v1342, 1e-06
    %v1347 = vadd.f32 %v1343, 1e-06
    %v1348 = vrsqrt.pop %v1344
    %v1349 = vmul.f32 %v1348, %v1344
    %v1350 = vmul.f32 %v1349, %v1348
    %v1351 = vmul.f32 0.5, %v1350
    %v1352 = vsub.f32 1.5, %v1351
    %v1353 = vmul.f32 %v1348, %v1352
    %vm1354 = vweird.f32 %v1344
    %vm1355 = vweird.f32 %v1348
    %vm1356 = vmor %vm1354, %vm1355
    %v1357 = vsel %vm1356, %v1348, %v1353
    %v1358 = vrsqrt.pop %v1345
    %v1359 = vmul.f32 %v1358, %v1345
    %v1360 = vmul.f32 %v1359, %v1358
    %v1361 = vmul.f32 0.5, %v1360
    %v1362 = vsub.f32 1.5, %v1361
    %v1363 = vmul.f32 %v1358, %v1362
    %vm1364 = vweird.f32 %v1345
    %vm1365 = vweird.f32 %v1358
    %vm1366 = vmor %vm1364, %vm1365
    %v1367 = vsel %vm1366, %v1358, %v1363
    %v1368 = vrsqrt.pop %v1346
    %v1369 = vmul.f32 %v1368, %v1346
    %v1370 = vmul.f32 %v1369, %v1368
    %v1371 = vmul.f32 0.5, %v1370
    %v1372 = vsub.f32 1.5, %v1371
    %v1373 = vmul.f32 %v1368, %v1372
    %vm1374 = vweird.f32 %v1346
    %vm1375 = vweird.f32 %v1368
    %vm1376 = vmor %vm1374, %vm1375
    %v1377 = vsel %vm1376, %v1368, %v1373
    %v1378 = vrsqrt.pop %v1347
    %v1379 = vmul.f32 %v1378, %v1347
    %v1380 = vmul.f32 %v1379, %v1378
    %v1381 = vmul.f32 0.5, %v1380
    %v1382 = vsub.f32 1.5, %v1381
    %v1383 = vmul.f32 %v1378, %v1382
    %vm1384 = vweird.f32 %v1347
    %vm1385 = vweird.f32 %v1378
    %vm1386 = vmor %vm1384, %vm1385
    %v1387 = vsel %vm1386, %v1378, %v1383
    %v1388 = vmul.f32 %v1320, %v1357
    %v1389 = vmul.f32 %v1321, %v1367
    %v1390 = vmul.f32 %v1322, %v1377
    %v1391 = vmul.f32 %v1323, %v1387
    %v1392 = vperm.slane %v113, 2
    %v1393 = vmul.f32 %v1388, %v1392
    %v1394 = vmul.f32 %v1389, %v1392
    %v1395 = vmul.f32 %v1390, %v1392
    %v1396 = vmul.f32 %v1391, %v1392
    %v1397 = vperm.slane %v113, 3
    %v1398 = vadd.f32 %v1393, %v1397
    %v1399 = vadd.f32 %v1394, %v1397
    %v1400 = vadd.f32 %v1395, %v1397
    %v1401 = vadd.f32 %v1396, %v1397
    %v1402 = vld [vmem:[%s7] sm:$0xff]
    %v1403 = vld [vmem:[%s7 + $0x8] sm:$0xff]
    %v1404 = vld [vmem:[%s7 + $0x10] sm:$0xff]
    %v1405 = vld [vmem:[%s7 + $0x18] sm:$0xff]
    %v1406 = vld [vmem:[%s8] sm:$0x1]
    %v1408 = vperm.slane %v1406, 0
    %v1411 = vsel %vm118, %v1398, 0
    %v1414 = vsel %vm118, %v1399, 0
    %v1417 = vsel %vm118, %v1400, 0
    %v1420 = vsel %vm118, %v1401, 0
    %1422 = vmatpush.msra.mxu0 0.0
    %1423 = vmatpush.msra.mxu0 0.0
    %1424 = vmatpush.msra.mxu0 0.0
    %1425 = vmatpush.msra.mxu0 0.0
    %1426 = vmatpush.msra.mxu0 0.0
    %1427 = vmatpush.msra.mxu0 0.0
    %1428 = vmatpush.msra.mxu0 0.0
    %1429 = vmatpush.msra.mxu0 0.0
    %1430 = vmatpush.msra.mxu0 0.0
    %1431 = vmatpush.msra.mxu0 0.0
    %1432 = vmatpush.msra.mxu0 0.0
    %1433 = vmatpush.msra.mxu0 0.0
    %1434 = vmatpush.msra.mxu0 %v1405
    %1435 = vmatpush.msra.mxu0 %v1404
    %1436 = vmatpush.msra.mxu0 %v1403
    %1437 = vmatpush.msra.mxu0 %v1402
    %1438 = vmatmul.f32.gmra.mxu0 %v1411
    %v1439 = vpop.f32.mrf.mxu0
    %v1440 = vadd.f32 %v1408, %v1439
    %1441 = vmatmul.f32.gmra.mxu0 %v1414
    %v1442 = vpop.f32.mrf.mxu0
    %v1443 = vadd.f32 %v1408, %v1442
    %1444 = vmatmul.f32.gmra.mxu0 %v1417
    %v1445 = vpop.f32.mrf.mxu0
    %v1446 = vadd.f32 %v1408, %v1445
    %1447 = vmatmul.f32.gmra.mxu0 %v1420
    %v1448 = vpop.f32.mrf.mxu0
    %v1449 = vadd.f32 %v1408, %v1448
    %1450 = vdwg.mxu0
    %v1451 = vmul.f32 %v1440, 0.5
    %v1452 = vmul.f32 %v1443, 0.5
    %v1453 = vmul.f32 %v1446, 0.5
    %v1454 = vmul.f32 %v1449, 0.5
    %v1455 = vmul.f32 %v1440, 0.70710677
    %v1456 = vmul.f32 %v1443, 0.70710677
    %v1457 = vmul.f32 %v1446, 0.70710677
    %v1458 = vmul.f32 %v1449, 0.70710677
    %v1459 = vmul.f32 %v1455, %v1455
    %v1460 = vmin.f32 16.0, %v1459
    %v1461 = vmul.f32 %v1460, 2.1237322e-06
    %v1462 = vadd.f32 %v1461, 0.00028619796
    %v1463 = vmul.f32 %v1460, %v1462
    %v1464 = vadd.f32 %v1463, 0.0036580483
    %v1465 = vmul.f32 %v1460, %v1464
    %v1466 = vadd.f32 %v1465, 0.05243302
    %v1467 = vmul.f32 %v1460, %v1466
    %v1468 = vadd.f32 %v1467, 0.18741608
    %v1469 = vmul.f32 %v1460, %v1468
    %v1470 = vadd.f32 %v1469, 1.1283791
    %v1471 = vmul.f32 %v1455, %v1470
    %v1472 = vmul.f32 %v1460, 3.8918573e-05
    %v1473 = vadd.f32 %v1472, 0.001143296
    %v1474 = vmul.f32 %v1460, %v1473
    %v1475 = vadd.f32 %v1474, 0.014752088
    %v1476 = vmul.f32 %v1460, %v1475
    %v1477 = vadd.f32 %v1476, 0.112945676
    %v1478 = vmul.f32 %v1460, %v1477
    %v1479 = vadd.f32 %v1478, 0.4994258
    %v1480 = vmul.f32 %v1460, %v1479
    %v1481 = vadd.f32 %v1480, 1.0
    %v1482 = vrcp.pop %v1481
    %v1483 = vmul.f32 %v1481, %v1482
    %v1484 = vsub.f32 1.0, %v1483
    %v1485 = vmul.f32 %v1482, %v1484
    %v1486 = vadd.f32 %v1482, %v1485
    %vm1487 = vweird.f32 %v1481
    %vm1488 = vweird.f32 %v1482
    %vm1489 = vmor %vm1487, %vm1488
    %v1490 = vsel %vm1489, %v1482, %v1486
    %v1491 = vand.u32 2147483647, %v1481
    %vm1492 = vcmp.eq.f32.partialorder %v1491, 8.507059e+37
    %v1493 = vand.u32 %v1481, 2147483648
    %v1494 = vor.u32 1.1754944e-38, %v1493
    %v1495 = vsel %vm1492, %v1494, %v1490
    %v1496 = vmul.f32 %v1471, %v1495
    %v1497 = vmin.f32 %v1496, 1.0
    %v1498 = vmax.f32 %v1497, -1.0
    %v1499 = vmul.f32 %v1456, %v1456
    %v1500 = vmin.f32 16.0, %v1499
    %v1501 = vmul.f32 %v1500, 2.1237322e-06
    %v1502 = vadd.f32 %v1501, 0.00028619796
    %v1503 = vmul.f32 %v1500, %v1502
    %v1504 = vadd.f32 %v1503, 0.0036580483
    %v1505 = vmul.f32 %v1500, %v1504
    %v1506 = vadd.f32 %v1505, 0.05243302
    %v1507 = vmul.f32 %v1500, %v1506
    %v1508 = vadd.f32 %v1507, 0.18741608
    %v1509 = vmul.f32 %v1500, %v1508
    %v1510 = vadd.f32 %v1509, 1.1283791
    %v1511 = vmul.f32 %v1456, %v1510
    %v1512 = vmul.f32 %v1500, 3.8918573e-05
    %v1513 = vadd.f32 %v1512, 0.001143296
    %v1514 = vmul.f32 %v1500, %v1513
    %v1515 = vadd.f32 %v1514, 0.014752088
    %v1516 = vmul.f32 %v1500, %v1515
    %v1517 = vadd.f32 %v1516, 0.112945676
    %v1518 = vmul.f32 %v1500, %v1517
    %v1519 = vadd.f32 %v1518, 0.4994258
    %v1520 = vmul.f32 %v1500, %v1519
    %v1521 = vadd.f32 %v1520, 1.0
    %v1522 = vrcp.pop %v1521
    %v1523 = vmul.f32 %v1521, %v1522
    %v1524 = vsub.f32 1.0, %v1523
    %v1525 = vmul.f32 %v1522, %v1524
    %v1526 = vadd.f32 %v1522, %v1525
    %vm1527 = vweird.f32 %v1521
    %vm1528 = vweird.f32 %v1522
    %vm1529 = vmor %vm1527, %vm1528
    %v1530 = vsel %vm1529, %v1522, %v1526
    %v1531 = vand.u32 2147483647, %v1521
    %vm1532 = vcmp.eq.f32.partialorder %v1531, 8.507059e+37
    %v1533 = vand.u32 %v1521, 2147483648
    %v1534 = vor.u32 1.1754944e-38, %v1533
    %v1535 = vsel %vm1532, %v1534, %v1530
    %v1536 = vmul.f32 %v1511, %v1535
    %v1537 = vmin.f32 %v1536, 1.0
    %v1538 = vmax.f32 %v1537, -1.0
    %v1539 = vmul.f32 %v1457, %v1457
    %v1540 = vmin.f32 16.0, %v1539
    %v1541 = vmul.f32 %v1540, 2.1237322e-06
    %v1542 = vadd.f32 %v1541, 0.00028619796
    %v1543 = vmul.f32 %v1540, %v1542
    %v1544 = vadd.f32 %v1543, 0.0036580483
    %v1545 = vmul.f32 %v1540, %v1544
    %v1546 = vadd.f32 %v1545, 0.05243302
    %v1547 = vmul.f32 %v1540, %v1546
    %v1548 = vadd.f32 %v1547, 0.18741608
    %v1549 = vmul.f32 %v1540, %v1548
    %v1550 = vadd.f32 %v1549, 1.1283791
    %v1551 = vmul.f32 %v1457, %v1550
    %v1552 = vmul.f32 %v1540, 3.8918573e-05
    %v1553 = vadd.f32 %v1552, 0.001143296
    %v1554 = vmul.f32 %v1540, %v1553
    %v1555 = vadd.f32 %v1554, 0.014752088
    %v1556 = vmul.f32 %v1540, %v1555
    %v1557 = vadd.f32 %v1556, 0.112945676
    %v1558 = vmul.f32 %v1540, %v1557
    %v1559 = vadd.f32 %v1558, 0.4994258
    %v1560 = vmul.f32 %v1540, %v1559
    %v1561 = vadd.f32 %v1560, 1.0
    %v1562 = vrcp.pop %v1561
    %v1563 = vmul.f32 %v1561, %v1562
    %v1564 = vsub.f32 1.0, %v1563
    %v1565 = vmul.f32 %v1562, %v1564
    %v1566 = vadd.f32 %v1562, %v1565
    %vm1567 = vweird.f32 %v1561
    %vm1568 = vweird.f32 %v1562
    %vm1569 = vmor %vm1567, %vm1568
    %v1570 = vsel %vm1569, %v1562, %v1566
    %v1571 = vand.u32 2147483647, %v1561
    %vm1572 = vcmp.eq.f32.partialorder %v1571, 8.507059e+37
    %v1573 = vand.u32 %v1561, 2147483648
    %v1574 = vor.u32 1.1754944e-38, %v1573
    %v1575 = vsel %vm1572, %v1574, %v1570
    %v1576 = vmul.f32 %v1551, %v1575
    %v1577 = vmin.f32 %v1576, 1.0
    %v1578 = vmax.f32 %v1577, -1.0
    %v1579 = vmul.f32 %v1458, %v1458
    %v1580 = vmin.f32 16.0, %v1579
    %v1581 = vmul.f32 %v1580, 2.1237322e-06
    %v1582 = vadd.f32 %v1581, 0.00028619796
    %v1583 = vmul.f32 %v1580, %v1582
    %v1584 = vadd.f32 %v1583, 0.0036580483
    %v1585 = vmul.f32 %v1580, %v1584
    %v1586 = vadd.f32 %v1585, 0.05243302
    %v1587 = vmul.f32 %v1580, %v1586
    %v1588 = vadd.f32 %v1587, 0.18741608
    %v1589 = vmul.f32 %v1580, %v1588
    %v1590 = vadd.f32 %v1589, 1.1283791
    %v1591 = vmul.f32 %v1458, %v1590
    %v1592 = vmul.f32 %v1580, 3.8918573e-05
    %v1593 = vadd.f32 %v1592, 0.001143296
    %v1594 = vmul.f32 %v1580, %v1593
    %v1595 = vadd.f32 %v1594, 0.014752088
    %v1596 = vmul.f32 %v1580, %v1595
    %v1597 = vadd.f32 %v1596, 0.112945676
    %v1598 = vmul.f32 %v1580, %v1597
    %v1599 = vadd.f32 %v1598, 0.4994258
    %v1600 = vmul.f32 %v1580, %v1599
    %v1601 = vadd.f32 %v1600, 1.0
    %v1602 = vrcp.pop %v1601
    %v1603 = vmul.f32 %v1601, %v1602
    %v1604 = vsub.f32 1.0, %v1603
    %v1605 = vmul.f32 %v1602, %v1604
    %v1606 = vadd.f32 %v1602, %v1605
    %vm1607 = vweird.f32 %v1601
    %vm1608 = vweird.f32 %v1602
    %vm1609 = vmor %vm1607, %vm1608
    %v1610 = vsel %vm1609, %v1602, %v1606
    %v1611 = vand.u32 2147483647, %v1601
    %vm1612 = vcmp.eq.f32.partialorder %v1611, 8.507059e+37
    %v1613 = vand.u32 %v1601, 2147483648
    %v1614 = vor.u32 1.1754944e-38, %v1613
    %v1615 = vsel %vm1612, %v1614, %v1610
    %v1616 = vmul.f32 %v1591, %v1615
    %v1617 = vmin.f32 %v1616, 1.0
    %v1618 = vmax.f32 %v1617, -1.0
    %v1619 = vadd.f32 %v1498, 1.0
    %v1620 = vadd.f32 %v1538, 1.0
    %v1621 = vadd.f32 %v1578, 1.0
    %v1622 = vadd.f32 %v1618, 1.0
    %v1623 = vmul.f32 %v1451, %v1619
    %v1624 = vmul.f32 %v1452, %v1620
    %v1625 = vmul.f32 %v1453, %v1621
    %v1626 = vmul.f32 %v1454, %v1622
    %v1627 = vld [vmem:[%s9] sm:$0xff]
    %v1628 = vld [vmem:[%s9 + $0x8] sm:$0xff]
    %v1629 = vld [vmem:[%s9 + $0x10] sm:$0xff]
    %v1630 = vld [vmem:[%s9 + $0x18] sm:$0xff]
    %v1631 = vld [vmem:[%s9 + $0x20] sm:$0xff]
    %v1632 = vld [vmem:[%s9 + $0x28] sm:$0xff]
    %v1633 = vld [vmem:[%s9 + $0x30] sm:$0xff]
    %v1634 = vld [vmem:[%s9 + $0x38] sm:$0xff]
    %v1636 = vsel %vm71, %v1623, 0
    %v1639 = vsel %vm71, %v1624, 0
    %v1642 = vsel %vm71, %v1625, 0
    %v1645 = vsel %vm71, %v1626, 0
    %1647 = vmatpush.msra.mxu0 0.0
    %1648 = vmatpush.msra.mxu0 0.0
    %1649 = vmatpush.msra.mxu0 0.0
    %1650 = vmatpush.msra.mxu0 0.0
    %1651 = vmatpush.msra.mxu0 0.0
    %1652 = vmatpush.msra.mxu0 0.0
    %1653 = vmatpush.msra.mxu0 0.0
    %1654 = vmatpush.msra.mxu0 0.0
    %1655 = vmatpush.msra.mxu0 %v1634
    %1656 = vmatpush.msra.mxu0 %v1633
    %1657 = vmatpush.msra.mxu0 %v1632
    %1658 = vmatpush.msra.mxu0 %v1631
    %1659 = vmatpush.msra.mxu0 %v1630
    %1660 = vmatpush.msra.mxu0 %v1629
    %1661 = vmatpush.msra.mxu0 %v1628
    %1662 = vmatpush.msra.mxu0 %v1627
    %1663 = vmatmul.f32.gmra.mxu0 %v1636
    %v1664 = vpop.f32.mrf.mxu0
    %v1665 = vadd.f32 0.0, %v1664
    %1666 = vmatmul.f32.gmra.mxu0 %v1639
    %v1667 = vpop.f32.mrf.mxu0
    %v1668 = vadd.f32 0.0, %v1667
    %1669 = vmatmul.f32.gmra.mxu0 %v1642
    %v1670 = vpop.f32.mrf.mxu0
    %v1671 = vadd.f32 0.0, %v1670
    %1672 = vmatmul.f32.gmra.mxu0 %v1645
    %v1673 = vpop.f32.mrf.mxu0
    %v1674 = vadd.f32 0.0, %v1673
    %1675 = vdwg.mxu0
    %v1676 = vadd.f32 %v1300, %v1665
    %v1677 = vadd.f32 %v1301, %v1668
    %v1678 = vadd.f32 %v1302, %v1671
    %v1679 = vadd.f32 %v1303, %v1674
    %v1680 = vperm.slane %v113, 5
    %v1681 = vadd.f32 %v1676, %v1680
    %v1682 = vadd.f32 %v1677, %v1680
    %v1683 = vadd.f32 %v1678, %v1680
    %v1684 = vadd.f32 %v1679, %v1680
    %s1685 = scalar_lea.vmem %s3, 8
    %v1686 = vld [vmem:[%s1685] sm:$0x3f]
    %s1687 = scalar_lea.vmem %s6, 32
    %v1688 = vld [vmem:[%s1687] sm:$0xff]
    %v1689 = vld [vmem:[%s1687 + $0x8] sm:$0xff]
    %v1690 = vld [vmem:[%s1687 + $0x10] sm:$0xff]
    %v1691 = vld [vmem:[%s1687 + $0x18] sm:$0xff]
    %v1692 = vsel %vm118, %v1681, 0.0
    %1693 = vadd.xlane.f32.xlu0 %v1692
    %v1694 = vpop.xlane.xlu0 %1693
    %v1695 = vsel %vm118, %v1682, 0.0
    %1696 = vadd.xlane.f32.xlu0 %v1695
    %v1697 = vpop.xlane.xlu0 %1696
    %v1698 = vsel %vm118, %v1683, 0.0
    %1699 = vadd.xlane.f32.xlu0 %v1698
    %v1700 = vpop.xlane.xlu0 %1699
    %v1701 = vsel %vm118, %v1684, 0.0
    %1702 = vadd.xlane.f32.xlu0 %v1701
    %v1703 = vpop.xlane.xlu0 %1702
    %v1704 = vmul.f32 %v1694, %v137
    %v1705 = vmul.f32 %v1697, %v137
    %v1706 = vmul.f32 %v1700, %v137
    %v1707 = vmul.f32 %v1703, %v137
    %v1708 = vsub.f32 %v1681, %v1704
    %v1709 = vsub.f32 %v1682, %v1705
    %v1710 = vsub.f32 %v1683, %v1706
    %v1711 = vsub.f32 %v1684, %v1707
    %v1712 = vmul.f32 %v1708, %v1708
    %v1713 = vmul.f32 %v1709, %v1709
    %v1714 = vmul.f32 %v1710, %v1710
    %v1715 = vmul.f32 %v1711, %v1711
    %v1716 = vsel %vm118, %v1712, 0.0
    %1717 = vadd.xlane.f32.xlu0 %v1716
    %v1718 = vpop.xlane.xlu0 %1717
    %v1719 = vsel %vm118, %v1713, 0.0
    %1720 = vadd.xlane.f32.xlu0 %v1719
    %v1721 = vpop.xlane.xlu0 %1720
    %v1722 = vsel %vm118, %v1714, 0.0
    %1723 = vadd.xlane.f32.xlu0 %v1722
    %v1724 = vpop.xlane.xlu0 %1723
    %v1725 = vsel %vm118, %v1715, 0.0
    %1726 = vadd.xlane.f32.xlu0 %v1725
    %v1727 = vpop.xlane.xlu0 %1726
    %v1728 = vmul.f32 %v1718, %v137
    %v1729 = vmul.f32 %v1721, %v137
    %v1730 = vmul.f32 %v1724, %v137
    %v1731 = vmul.f32 %v1727, %v137
    %v1732 = vadd.f32 %v1728, 1e-06
    %v1733 = vadd.f32 %v1729, 1e-06
    %v1734 = vadd.f32 %v1730, 1e-06
    %v1735 = vadd.f32 %v1731, 1e-06
    %v1736 = vrsqrt.pop %v1732
    %v1737 = vmul.f32 %v1736, %v1732
    %v1738 = vmul.f32 %v1737, %v1736
    %v1739 = vmul.f32 0.5, %v1738
    %v1740 = vsub.f32 1.5, %v1739
    %v1741 = vmul.f32 %v1736, %v1740
    %vm1742 = vweird.f32 %v1732
    %vm1743 = vweird.f32 %v1736
    %vm1744 = vmor %vm1742, %vm1743
    %v1745 = vsel %vm1744, %v1736, %v1741
    %v1746 = vrsqrt.pop %v1733
    %v1747 = vmul.f32 %v1746, %v1733
    %v1748 = vmul.f32 %v1747, %v1746
    %v1749 = vmul.f32 0.5, %v1748
    %v1750 = vsub.f32 1.5, %v1749
    %v1751 = vmul.f32 %v1746, %v1750
    %vm1752 = vweird.f32 %v1733
    %vm1753 = vweird.f32 %v1746
    %vm1754 = vmor %vm1752, %vm1753
    %v1755 = vsel %vm1754, %v1746, %v1751
    %v1756 = vrsqrt.pop %v1734
    %v1757 = vmul.f32 %v1756, %v1734
    %v1758 = vmul.f32 %v1757, %v1756
    %v1759 = vmul.f32 0.5, %v1758
    %v1760 = vsub.f32 1.5, %v1759
    %v1761 = vmul.f32 %v1756, %v1760
    %vm1762 = vweird.f32 %v1734
    %vm1763 = vweird.f32 %v1756
    %vm1764 = vmor %vm1762, %vm1763
    %v1765 = vsel %vm1764, %v1756, %v1761
    %v1766 = vrsqrt.pop %v1735
    %v1767 = vmul.f32 %v1766, %v1735
    %v1768 = vmul.f32 %v1767, %v1766
    %v1769 = vmul.f32 0.5, %v1768
    %v1770 = vsub.f32 1.5, %v1769
    %v1771 = vmul.f32 %v1766, %v1770
    %vm1772 = vweird.f32 %v1735
    %vm1773 = vweird.f32 %v1766
    %vm1774 = vmor %vm1772, %vm1773
    %v1775 = vsel %vm1774, %v1766, %v1771
    %v1776 = vmul.f32 %v1708, %v1745
    %v1777 = vmul.f32 %v1709, %v1755
    %v1778 = vmul.f32 %v1710, %v1765
    %v1779 = vmul.f32 %v1711, %v1775
    %v1780 = vperm.slane %v1686, 0
    %v1781 = vmul.f32 %v1776, %v1780
    %v1782 = vmul.f32 %v1777, %v1780
    %v1783 = vmul.f32 %v1778, %v1780
    %v1784 = vmul.f32 %v1779, %v1780
    %v1785 = vperm.slane %v1686, 1
    %v1786 = vadd.f32 %v1781, %v1785
    %v1787 = vadd.f32 %v1782, %v1785
    %v1788 = vadd.f32 %v1783, %v1785
    %v1789 = vadd.f32 %v1784, %v1785
    %s1790 = scalar_lea.vmem %s4, 32
    %v1791 = vld [vmem:[%s1790] sm:$0xff]
    %v1792 = vld [vmem:[%s1790 + $0x8] sm:$0xff]
    %v1793 = vld [vmem:[%s1790 + $0x10] sm:$0xff]
    %v1794 = vld [vmem:[%s1790 + $0x18] sm:$0xff]
    %s1795 = scalar_lea.vmem %s5, 1
    %v1796 = vld [vmem:[%s1795] sm:$0x1]
    %v1798 = vperm.slane %v1796, 0
    %v1801 = vsel %vm118, %v1786, 0
    %v1804 = vsel %vm118, %v1787, 0
    %v1807 = vsel %vm118, %v1788, 0
    %v1810 = vsel %vm118, %v1789, 0
    %1812 = vmatpush.msra.mxu0 0.0
    %1813 = vmatpush.msra.mxu0 0.0
    %1814 = vmatpush.msra.mxu0 0.0
    %1815 = vmatpush.msra.mxu0 0.0
    %1816 = vmatpush.msra.mxu0 0.0
    %1817 = vmatpush.msra.mxu0 0.0
    %1818 = vmatpush.msra.mxu0 0.0
    %1819 = vmatpush.msra.mxu0 0.0
    %1820 = vmatpush.msra.mxu0 0.0
    %1821 = vmatpush.msra.mxu0 0.0
    %1822 = vmatpush.msra.mxu0 0.0
    %1823 = vmatpush.msra.mxu0 0.0
    %1824 = vmatpush.msra.mxu0 %v1794
    %1825 = vmatpush.msra.mxu0 %v1793
    %1826 = vmatpush.msra.mxu0 %v1792
    %1827 = vmatpush.msra.mxu0 %v1791
    %1828 = vmatmul.f32.gmra.mxu0 %v1801
    %v1829 = vpop.f32.mrf.mxu0
    %v1830 = vadd.f32 %v1798, %v1829
    %1831 = vmatmul.f32.gmra.mxu0 %v1804
    %v1832 = vpop.f32.mrf.mxu0
    %v1833 = vadd.f32 %v1798, %v1832
    %1834 = vmatmul.f32.gmra.mxu0 %v1807
    %v1835 = vpop.f32.mrf.mxu0
    %v1836 = vadd.f32 %v1798, %v1835
    %1837 = vmatmul.f32.gmra.mxu0 %v1810
    %v1838 = vpop.f32.mrf.mxu0
    %v1839 = vadd.f32 %v1798, %v1838
    %1840 = vdwg.mxu0
    %1843 = vrot.lane.b32.xlu0 %v1830, 96
    %v1844 = vpop.permute.xlu0 %1843
    %1845 = vrot.lane.b32.xlu0 %v1833, 96
    %v1846 = vpop.permute.xlu0 %1845
    %v1847 = vsel %vm279, %v1830, 0
    %v1849 = vsel %vm279, %v1833, 0
    %v1851 = vsel %vm279, %v1844, 0
    %v1853 = vsel %vm279, %v1846, 0
    %1855 = vmatpush.xpose.msra.mxu0 0.0
    %1856 = vmatpush.xpose.msra.mxu0 0.0
    %1857 = vmatpush.xpose.msra.mxu0 0.0
    %1858 = vmatpush.xpose.msra.mxu0 0.0
    %1859 = vmatpush.xpose.msra.mxu0 0.0
    %1860 = vmatpush.xpose.msra.mxu0 0.0
    %1861 = vmatpush.xpose.msra.mxu0 0.0
    %1862 = vmatpush.xpose.msra.mxu0 0.0
    %1863 = vmatpush.xpose.msra.mxu0 0.0
    %1864 = vmatpush.xpose.msra.mxu0 0.0
    %1865 = vmatpush.xpose.msra.mxu0 0.0
    %1866 = vmatpush.xpose.msra.mxu0 0.0
    %1867 = vmatpush.xpose.msra.mxu0 0.0
    %1868 = vmatpush.xpose.msra.mxu0 0.0
    %1869 = vmatpush.xpose.msra.mxu0 %v1853
    %1870 = vmatpush.xpose.msra.mxu0 %v1851
    %1871 = vmatmul.f32.gmra.mxu0 %v1847
    %v1872 = vpop.f32.mrf.mxu0
    %v1873 = vadd.f32 0.0, %v1872
    %1874 = vmatmul.f32.gmra.mxu0 %v1849
    %v1875 = vpop.f32.mrf.mxu0
    %v1876 = vadd.f32 0.0, %v1875
    %1877 = vdwg.mxu0
    %v1878 = vmul.f32 %v1873, 0.35355338
    %v1879 = vmul.f32 %v1876, 0.35355338
    %v1880 = vsel %vm313, %v1878, -inf
    %1881 = vmax.xlane.f32.xlu0 %v1880
    %v1882 = vpop.xlane.xlu0 %1881
    %v1883 = vsel %vm313, %v1879, -inf
    %1884 = vmax.xlane.f32.xlu0 %v1883
    %v1885 = vpop.xlane.xlu0 %1884
    %v1886 = vsub.f32 %v1878, %v1882
    %v1887 = vsub.f32 %v1879, %v1885
    %v1888 = vmul.f32 %v1886, 1.442695
    %v1889 = vpow.pop %v1888
    %v1890 = vmul.f32 %v1887, 1.442695
    %v1891 = vpow.pop %v1890
    %v1892 = vsel %vm313, %v1889, 0.0
    %1893 = vadd.xlane.f32.xlu0 %v1892
    %v1894 = vpop.xlane.xlu0 %1893
    %v1895 = vsel %vm313, %v1891, 0.0
    %1896 = vadd.xlane.f32.xlu0 %v1895
    %v1897 = vpop.xlane.xlu0 %1896
    %v1898 = vrcp.pop %v1894
    %v1899 = vrcp.pop %v1897
    %v1900 = vmul.f32 %v1889, %v1898
    %v1901 = vmul.f32 %v1891, %v1899
    %1902 = vrot.lane.b32.xlu0 %v1830, 64
    %v1903 = vpop.permute.xlu0 %1902
    %1904 = vrot.lane.b32.xlu0 %v1833, 64
    %v1905 = vpop.permute.xlu0 %1904
    %v1909 = vsel %vm313, %v1900, 0
    %v1912 = vsel %vm313, %v1901, 0
    %1914 = vmatpush.msra.mxu0 0.0
    %1915 = vmatpush.msra.mxu0 0.0
    %1916 = vmatpush.msra.mxu0 0.0
    %1917 = vmatpush.msra.mxu0 0.0
    %1918 = vmatpush.msra.mxu0 0.0
    %1919 = vmatpush.msra.mxu0 0.0
    %1920 = vmatpush.msra.mxu0 0.0
    %1921 = vmatpush.msra.mxu0 0.0
    %1922 = vmatpush.msra.mxu0 0.0
    %1923 = vmatpush.msra.mxu0 0.0
    %1924 = vmatpush.msra.mxu0 0.0
    %1925 = vmatpush.msra.mxu0 0.0
    %1926 = vmatpush.msra.mxu0 0.0
    %1927 = vmatpush.msra.mxu0 0.0
    %1928 = vmatpush.msra.mxu0 %v1905
    %1929 = vmatpush.msra.mxu0 %v1903
    %1930 = vmatmul.f32.gmra.mxu0 %v1909
    %v1931 = vpop.f32.mrf.mxu0
    %v1932 = vadd.f32 0.0, %v1931
    %1933 = vmatmul.f32.gmra.mxu0 %v1912
    %v1934 = vpop.f32.mrf.mxu0
    %v1935 = vadd.f32 0.0, %v1934
    %1936 = vdwg.mxu0
    %1937 = vrot.lane.b32.xlu0 %v1830, 120
    %v1938 = vpop.permute.xlu0 %1937
    %1939 = vrot.lane.b32.xlu0 %v1833, 120
    %v1940 = vpop.permute.xlu0 %1939
    %1941 = vrot.lane.b32.xlu0 %v1830, 88
    %v1942 = vpop.permute.xlu0 %1941
    %1943 = vrot.lane.b32.xlu0 %v1833, 88
    %v1944 = vpop.permute.xlu0 %1943
    %v1945 = vsel %vm279, %v1938, 0
    %v1947 = vsel %vm279, %v1940, 0
    %v1949 = vsel %vm279, %v1942, 0
    %v1951 = vsel %vm279, %v1944, 0
    %1953 = vmatpush.xpose.msra.mxu0 0.0
    %1954 = vmatpush.xpose.msra.mxu0 0.0
    %1955 = vmatpush.xpose.msra.mxu0 0.0
    %1956 = vmatpush.xpose.msra.mxu0 0.0
    %1957 = vmatpush.xpose.msra.mxu0 0.0
    %1958 = vmatpush.xpose.msra.mxu0 0.0
    %1959 = vmatpush.xpose.msra.mxu0 0.0
    %1960 = vmatpush.xpose.msra.mxu0 0.0
    %1961 = vmatpush.xpose.msra.mxu0 0.0
    %1962 = vmatpush.xpose.msra.mxu0 0.0
    %1963 = vmatpush.xpose.msra.mxu0 0.0
    %1964 = vmatpush.xpose.msra.mxu0 0.0
    %1965 = vmatpush.xpose.msra.mxu0 0.0
    %1966 = vmatpush.xpose.msra.mxu0 0.0
    %1967 = vmatpush.xpose.msra.mxu0 %v1951
    %1968 = vmatpush.xpose.msra.mxu0 %v1949
    %1969 = vmatmul.f32.gmra.mxu0 %v1945
    %v1970 = vpop.f32.mrf.mxu0
    %v1971 = vadd.f32 0.0, %v1970
    %1972 = vmatmul.f32.gmra.mxu0 %v1947
    %v1973 = vpop.f32.mrf.mxu0
    %v1974 = vadd.f32 0.0, %v1973
    %1975 = vdwg.mxu0
    %v1976 = vmul.f32 %v1971, 0.35355338
    %v1977 = vmul.f32 %v1974, 0.35355338
    %v1978 = vsel %vm313, %v1976, -inf
    %1979 = vmax.xlane.f32.xlu0 %v1978
    %v1980 = vpop.xlane.xlu0 %1979
    %v1981 = vsel %vm313, %v1977, -inf
    %1982 = vmax.xlane.f32.xlu0 %v1981
    %v1983 = vpop.xlane.xlu0 %1982
    %v1984 = vsub.f32 %v1976, %v1980
    %v1985 = vsub.f32 %v1977, %v1983
    %v1986 = vmul.f32 %v1984, 1.442695
    %v1987 = vpow.pop %v1986
    %v1988 = vmul.f32 %v1985, 1.442695
    %v1989 = vpow.pop %v1988
    %v1990 = vsel %vm313, %v1987, 0.0
    %1991 = vadd.xlane.f32.xlu0 %v1990
    %v1992 = vpop.xlane.xlu0 %1991
    %v1993 = vsel %vm313, %v1989, 0.0
    %1994 = vadd.xlane.f32.xlu0 %v1993
    %v1995 = vpop.xlane.xlu0 %1994
    %v1996 = vrcp.pop %v1992
    %v1997 = vrcp.pop %v1995
    %v1998 = vmul.f32 %v1987, %v1996
    %v1999 = vmul.f32 %v1989, %v1997
    %2000 = vrot.lane.b32.xlu0 %v1830, 56
    %v2001 = vpop.permute.xlu0 %2000
    %2002 = vrot.lane.b32.xlu0 %v1833, 56
    %v2003 = vpop.permute.xlu0 %2002
    %v2007 = vsel %vm313, %v1998, 0
    %v2010 = vsel %vm313, %v1999, 0
    %2012 = vmatpush.msra.mxu0 0.0
    %2013 = vmatpush.msra.mxu0 0.0
    %2014 = vmatpush.msra.mxu0 0.0
    %2015 = vmatpush.msra.mxu0 0.0
    %2016 = vmatpush.msra.mxu0 0.0
    %2017 = vmatpush.msra.mxu0 0.0
    %2018 = vmatpush.msra.mxu0 0.0
    %2019 = vmatpush.msra.mxu0 0.0
    %2020 = vmatpush.msra.mxu0 0.0
    %2021 = vmatpush.msra.mxu0 0.0
    %2022 = vmatpush.msra.mxu0 0.0
    %2023 = vmatpush.msra.mxu0 0.0
    %2024 = vmatpush.msra.mxu0 0.0
    %2025 = vmatpush.msra.mxu0 0.0
    %2026 = vmatpush.msra.mxu0 %v2003
    %2027 = vmatpush.msra.mxu0 %v2001
    %2028 = vmatmul.f32.gmra.mxu0 %v2007
    %v2029 = vpop.f32.mrf.mxu0
    %v2030 = vadd.f32 0.0, %v2029
    %2031 = vmatmul.f32.gmra.mxu0 %v2010
    %v2032 = vpop.f32.mrf.mxu0
    %v2033 = vadd.f32 0.0, %v2032
    %2034 = vdwg.mxu0
    %v2036 = vsel %vm279, %v2030, 0
    %v2039 = vsel %vm279, %v2033, 0
    %2041 = vmatpush.msra.mxu0 0.0
    %2042 = vmatpush.msra.mxu0 0.0
    %2043 = vmatpush.msra.mxu0 0.0
    %2044 = vmatpush.msra.mxu0 0.0
    %2045 = vmatpush.msra.mxu0 0.0
    %2046 = vmatpush.msra.mxu0 0.0
    %2047 = vmatpush.msra.mxu0 0.0
    %2048 = vmatpush.msra.mxu0 0.0
    %2049 = vmatpush.msra.mxu0 0.0
    %2050 = vmatpush.msra.mxu0 0.0
    %2051 = vmatpush.msra.mxu0 0.0
    %2052 = vmatpush.msra.mxu0 0.0
    %2053 = vmatpush.msra.mxu0 0.0
    %2054 = vmatpush.msra.mxu0 0.0
    %2055 = vmatpush.msra.mxu0 0.0
    %2056 = vmatpush.msra.mxu0 %v1689
    %2057 = vmatmul.f32.gmra.mxu0 %v2036
    %v2058 = vpop.f32.mrf.mxu0
    %v2059 = vadd.f32 0.0, %v2058
    %2060 = vmatmul.f32.gmra.mxu0 %v2039
    %v2061 = vpop.f32.mrf.mxu0
    %v2062 = vadd.f32 0.0, %v2061
    %2063 = vdwg.mxu0
    %v2065 = vsel %vm279, %v1932, 0
    %v2068 = vsel %vm279, %v1935, 0
    %2070 = vmatpush.msra.mxu0 0.0
    %2071 = vmatpush.msra.mxu0 0.0
    %2072 = vmatpush.msra.mxu0 0.0
    %2073 = vmatpush.msra.mxu0 0.0
    %2074 = vmatpush.msra.mxu0 0.0
    %2075 = vmatpush.msra.mxu0 0.0
    %2076 = vmatpush.msra.mxu0 0.0
    %2077 = vmatpush.msra.mxu0 0.0
    %2078 = vmatpush.msra.mxu0 0.0
    %2079 = vmatpush.msra.mxu0 0.0
    %2080 = vmatpush.msra.mxu0 0.0
    %2081 = vmatpush.msra.mxu0 0.0
    %2082 = vmatpush.msra.mxu0 0.0
    %2083 = vmatpush.msra.mxu0 0.0
    %2084 = vmatpush.msra.mxu0 0.0
    %2085 = vmatpush.msra.mxu0 %v1688
    %2086 = vmatmul.f32.gmra.mxu0 %v2065
    %v2087 = vpop.f32.mrf.mxu0
    %v2088 = vadd.f32 %v2059, %v2087
    %2089 = vmatmul.f32.gmra.mxu0 %v2068
    %v2090 = vpop.f32.mrf.mxu0
    %v2091 = vadd.f32 %v2062, %v2090
    %2092 = vdwg.mxu0
    %2093 = vrot.lane.b32.xlu0 %v1830, 112
    %v2094 = vpop.permute.xlu0 %2093
    %2095 = vrot.lane.b32.xlu0 %v1833, 112
    %v2096 = vpop.permute.xlu0 %2095
    %2097 = vrot.lane.b32.xlu0 %v1830, 80
    %v2098 = vpop.permute.xlu0 %2097
    %2099 = vrot.lane.b32.xlu0 %v1833, 80
    %v2100 = vpop.permute.xlu0 %2099
    %v2101 = vsel %vm279, %v2094, 0
    %v2103 = vsel %vm279, %v2096, 0
    %v2105 = vsel %vm279, %v2098, 0
    %v2107 = vsel %vm279, %v2100, 0
    %2109 = vmatpush.xpose.msra.mxu0 0.0
    %2110 = vmatpush.xpose.msra.mxu0 0.0
    %2111 = vmatpush.xpose.msra.mxu0 0.0
    %2112 = vmatpush.xpose.msra.mxu0 0.0
    %2113 = vmatpush.xpose.msra.mxu0 0.0
    %2114 = vmatpush.xpose.msra.mxu0 0.0
    %2115 = vmatpush.xpose.msra.mxu0 0.0
    %2116 = vmatpush.xpose.msra.mxu0 0.0
    %2117 = vmatpush.xpose.msra.mxu0 0.0
    %2118 = vmatpush.xpose.msra.mxu0 0.0
    %2119 = vmatpush.xpose.msra.mxu0 0.0
    %2120 = vmatpush.xpose.msra.mxu0 0.0
    %2121 = vmatpush.xpose.msra.mxu0 0.0
    %2122 = vmatpush.xpose.msra.mxu0 0.0
    %2123 = vmatpush.xpose.msra.mxu0 %v2107
    %2124 = vmatpush.xpose.msra.mxu0 %v2105
    %2125 = vmatmul.f32.gmra.mxu0 %v2101
    %v2126 = vpop.f32.mrf.mxu0
    %v2127 = vadd.f32 0.0, %v2126
    %2128 = vmatmul.f32.gmra.mxu0 %v2103
    %v2129 = vpop.f32.mrf.mxu0
    %v2130 = vadd.f32 0.0, %v2129
    %2131 = vdwg.mxu0
    %v2132 = vmul.f32 %v2127, 0.35355338
    %v2133 = vmul.f32 %v2130, 0.35355338
    %v2134 = vsel %vm313, %v2132, -inf
    %2135 = vmax.xlane.f32.xlu0 %v2134
    %v2136 = vpop.xlane.xlu0 %2135
    %v2137 = vsel %vm313, %v2133, -inf
    %2138 = vmax.xlane.f32.xlu0 %v2137
    %v2139 = vpop.xlane.xlu0 %2138
    %v2140 = vsub.f32 %v2132, %v2136
    %v2141 = vsub.f32 %v2133, %v2139
    %v2142 = vmul.f32 %v2140, 1.442695
    %v2143 = vpow.pop %v2142
    %v2144 = vmul.f32 %v2141, 1.442695
    %v2145 = vpow.pop %v2144
    %v2146 = vsel %vm313, %v2143, 0.0
    %2147 = vadd.xlane.f32.xlu0 %v2146
    %v2148 = vpop.xlane.xlu0 %2147
    %v2149 = vsel %vm313, %v2145, 0.0
    %2150 = vadd.xlane.f32.xlu0 %v2149
    %v2151 = vpop.xlane.xlu0 %2150
    %v2152 = vrcp.pop %v2148
    %v2153 = vrcp.pop %v2151
    %v2154 = vmul.f32 %v2143, %v2152
    %v2155 = vmul.f32 %v2145, %v2153
    %2156 = vrot.lane.b32.xlu0 %v1830, 48
    %v2157 = vpop.permute.xlu0 %2156
    %2158 = vrot.lane.b32.xlu0 %v1833, 48
    %v2159 = vpop.permute.xlu0 %2158
    %v2163 = vsel %vm313, %v2154, 0
    %v2166 = vsel %vm313, %v2155, 0
    %2168 = vmatpush.msra.mxu0 0.0
    %2169 = vmatpush.msra.mxu0 0.0
    %2170 = vmatpush.msra.mxu0 0.0
    %2171 = vmatpush.msra.mxu0 0.0
    %2172 = vmatpush.msra.mxu0 0.0
    %2173 = vmatpush.msra.mxu0 0.0
    %2174 = vmatpush.msra.mxu0 0.0
    %2175 = vmatpush.msra.mxu0 0.0
    %2176 = vmatpush.msra.mxu0 0.0
    %2177 = vmatpush.msra.mxu0 0.0
    %2178 = vmatpush.msra.mxu0 0.0
    %2179 = vmatpush.msra.mxu0 0.0
    %2180 = vmatpush.msra.mxu0 0.0
    %2181 = vmatpush.msra.mxu0 0.0
    %2182 = vmatpush.msra.mxu0 %v2159
    %2183 = vmatpush.msra.mxu0 %v2157
    %2184 = vmatmul.f32.gmra.mxu0 %v2163
    %v2185 = vpop.f32.mrf.mxu0
    %v2186 = vadd.f32 0.0, %v2185
    %2187 = vmatmul.f32.gmra.mxu0 %v2166
    %v2188 = vpop.f32.mrf.mxu0
    %v2189 = vadd.f32 0.0, %v2188
    %2190 = vdwg.mxu0
    %v2192 = vsel %vm279, %v2186, 0
    %v2195 = vsel %vm279, %v2189, 0
    %2197 = vmatpush.msra.mxu0 0.0
    %2198 = vmatpush.msra.mxu0 0.0
    %2199 = vmatpush.msra.mxu0 0.0
    %2200 = vmatpush.msra.mxu0 0.0
    %2201 = vmatpush.msra.mxu0 0.0
    %2202 = vmatpush.msra.mxu0 0.0
    %2203 = vmatpush.msra.mxu0 0.0
    %2204 = vmatpush.msra.mxu0 0.0
    %2205 = vmatpush.msra.mxu0 0.0
    %2206 = vmatpush.msra.mxu0 0.0
    %2207 = vmatpush.msra.mxu0 0.0
    %2208 = vmatpush.msra.mxu0 0.0
    %2209 = vmatpush.msra.mxu0 0.0
    %2210 = vmatpush.msra.mxu0 0.0
    %2211 = vmatpush.msra.mxu0 0.0
    %2212 = vmatpush.msra.mxu0 %v1690
    %2213 = vmatmul.f32.gmra.mxu0 %v2192
    %v2214 = vpop.f32.mrf.mxu0
    %v2215 = vadd.f32 0.0, %v2214
    %2216 = vmatmul.f32.gmra.mxu0 %v2195
    %v2217 = vpop.f32.mrf.mxu0
    %v2218 = vadd.f32 0.0, %v2217
    %2219 = vdwg.mxu0
    %v2220 = vadd.f32 %v2088, %v2215
    %v2221 = vadd.f32 %v2091, %v2218
    %2222 = vrot.lane.b32.xlu0 %v1830, 104
    %v2223 = vpop.permute.xlu0 %2222
    %2224 = vrot.lane.b32.xlu0 %v1833, 104
    %v2225 = vpop.permute.xlu0 %2224
    %2226 = vrot.lane.b32.xlu0 %v1830, 72
    %v2227 = vpop.permute.xlu0 %2226
    %2228 = vrot.lane.b32.xlu0 %v1833, 72
    %v2229 = vpop.permute.xlu0 %2228
    %v2230 = vsel %vm279, %v2223, 0
    %v2232 = vsel %vm279, %v2225, 0
    %v2234 = vsel %vm279, %v2227, 0
    %v2236 = vsel %vm279, %v2229, 0
    %2238 = vmatpush.xpose.msra.mxu0 0.0
    %2239 = vmatpush.xpose.msra.mxu0 0.0
    %2240 = vmatpush.xpose.msra.mxu0 0.0
    %2241 = vmatpush.xpose.msra.mxu0 0.0
    %2242 = vmatpush.xpose.msra.mxu0 0.0
    %2243 = vmatpush.xpose.msra.mxu0 0.0
    %2244 = vmatpush.xpose.msra.mxu0 0.0
    %2245 = vmatpush.xpose.msra.mxu0 0.0
    %2246 = vmatpush.xpose.msra.mxu0 0.0
    %2247 = vmatpush.xpose.msra.mxu0 0.0
    %2248 = vmatpush.xpose.msra.mxu0 0.0
    %2249 = vmatpush.xpose.msra.mxu0 0.0
    %2250 = vmatpush.xpose.msra.mxu0 0.0
    %2251 = vmatpush.xpose.msra.mxu0 0.0
    %2252 = vmatpush.xpose.msra.mxu0 %v2236
    %2253 = vmatpush.xpose.msra.mxu0 %v2234
    %2254 = vmatmul.f32.gmra.mxu0 %v2230
    %v2255 = vpop.f32.mrf.mxu0
    %v2256 = vadd.f32 0.0, %v2255
    %2257 = vmatmul.f32.gmra.mxu0 %v2232
    %v2258 = vpop.f32.mrf.mxu0
    %v2259 = vadd.f32 0.0, %v2258
    %2260 = vdwg.mxu0
    %v2261 = vmul.f32 %v2256, 0.35355338
    %v2262 = vmul.f32 %v2259, 0.35355338
    %v2263 = vsel %vm313, %v2261, -inf
    %2264 = vmax.xlane.f32.xlu0 %v2263
    %v2265 = vpop.xlane.xlu0 %2264
    %v2266 = vsel %vm313, %v2262, -inf
    %2267 = vmax.xlane.f32.xlu0 %v2266
    %v2268 = vpop.xlane.xlu0 %2267
    %v2269 = vsub.f32 %v2261, %v2265
    %v2270 = vsub.f32 %v2262, %v2268
    %v2271 = vmul.f32 %v2269, 1.442695
    %v2272 = vpow.pop %v2271
    %v2273 = vmul.f32 %v2270, 1.442695
    %v2274 = vpow.pop %v2273
    %v2275 = vsel %vm313, %v2272, 0.0
    %2276 = vadd.xlane.f32.xlu0 %v2275
    %v2277 = vpop.xlane.xlu0 %2276
    %v2278 = vsel %vm313, %v2274, 0.0
    %2279 = vadd.xlane.f32.xlu0 %v2278
    %v2280 = vpop.xlane.xlu0 %2279
    %v2281 = vrcp.pop %v2277
    %v2282 = vrcp.pop %v2280
    %v2283 = vmul.f32 %v2272, %v2281
    %v2284 = vmul.f32 %v2274, %v2282
    %2285 = vrot.lane.b32.xlu0 %v1830, 40
    %v2286 = vpop.permute.xlu0 %2285
    %2287 = vrot.lane.b32.xlu0 %v1833, 40
    %v2288 = vpop.permute.xlu0 %2287
    %v2292 = vsel %vm313, %v2283, 0
    %v2295 = vsel %vm313, %v2284, 0
    %2297 = vmatpush.msra.mxu0 0.0
    %2298 = vmatpush.msra.mxu0 0.0
    %2299 = vmatpush.msra.mxu0 0.0
    %2300 = vmatpush.msra.mxu0 0.0
    %2301 = vmatpush.msra.mxu0 0.0
    %2302 = vmatpush.msra.mxu0 0.0
    %2303 = vmatpush.msra.mxu0 0.0
    %2304 = vmatpush.msra.mxu0 0.0
    %2305 = vmatpush.msra.mxu0 0.0
    %2306 = vmatpush.msra.mxu0 0.0
    %2307 = vmatpush.msra.mxu0 0.0
    %2308 = vmatpush.msra.mxu0 0.0
    %2309 = vmatpush.msra.mxu0 0.0
    %2310 = vmatpush.msra.mxu0 0.0
    %2311 = vmatpush.msra.mxu0 %v2288
    %2312 = vmatpush.msra.mxu0 %v2286
    %2313 = vmatmul.f32.gmra.mxu0 %v2292
    %v2314 = vpop.f32.mrf.mxu0
    %v2315 = vadd.f32 0.0, %v2314
    %2316 = vmatmul.f32.gmra.mxu0 %v2295
    %v2317 = vpop.f32.mrf.mxu0
    %v2318 = vadd.f32 0.0, %v2317
    %2319 = vdwg.mxu0
    %v2321 = vsel %vm279, %v2315, 0
    %v2324 = vsel %vm279, %v2318, 0
    %2326 = vmatpush.msra.mxu0 0.0
    %2327 = vmatpush.msra.mxu0 0.0
    %2328 = vmatpush.msra.mxu0 0.0
    %2329 = vmatpush.msra.mxu0 0.0
    %2330 = vmatpush.msra.mxu0 0.0
    %2331 = vmatpush.msra.mxu0 0.0
    %2332 = vmatpush.msra.mxu0 0.0
    %2333 = vmatpush.msra.mxu0 0.0
    %2334 = vmatpush.msra.mxu0 0.0
    %2335 = vmatpush.msra.mxu0 0.0
    %2336 = vmatpush.msra.mxu0 0.0
    %2337 = vmatpush.msra.mxu0 0.0
    %2338 = vmatpush.msra.mxu0 0.0
    %2339 = vmatpush.msra.mxu0 0.0
    %2340 = vmatpush.msra.mxu0 0.0
    %2341 = vmatpush.msra.mxu0 %v1691
    %2342 = vmatmul.f32.gmra.mxu0 %v2321
    %v2343 = vpop.f32.mrf.mxu0
    %v2344 = vadd.f32 0.0, %v2343
    %2345 = vmatmul.f32.gmra.mxu0 %v2324
    %v2346 = vpop.f32.mrf.mxu0
    %v2347 = vadd.f32 0.0, %v2346
    %2348 = vdwg.mxu0
    %v2349 = vadd.f32 %v2220, %v2344
    %v2350 = vadd.f32 %v2221, %v2347
    %2353 = vrot.lane.b32.xlu0 %v1836, 96
    %v2354 = vpop.permute.xlu0 %2353
    %2355 = vrot.lane.b32.xlu0 %v1839, 96
    %v2356 = vpop.permute.xlu0 %2355
    %v2357 = vsel %vm279, %v1836, 0
    %v2359 = vsel %vm279, %v1839, 0
    %v2361 = vsel %vm279, %v2354, 0
    %v2363 = vsel %vm279, %v2356, 0
    %2365 = vmatpush.xpose.msra.mxu0 0.0
    %2366 = vmatpush.xpose.msra.mxu0 0.0
    %2367 = vmatpush.xpose.msra.mxu0 0.0
    %2368 = vmatpush.xpose.msra.mxu0 0.0
    %2369 = vmatpush.xpose.msra.mxu0 0.0
    %2370 = vmatpush.xpose.msra.mxu0 0.0
    %2371 = vmatpush.xpose.msra.mxu0 0.0
    %2372 = vmatpush.xpose.msra.mxu0 0.0
    %2373 = vmatpush.xpose.msra.mxu0 0.0
    %2374 = vmatpush.xpose.msra.mxu0 0.0
    %2375 = vmatpush.xpose.msra.mxu0 0.0
    %2376 = vmatpush.xpose.msra.mxu0 0.0
    %2377 = vmatpush.xpose.msra.mxu0 0.0
    %2378 = vmatpush.xpose.msra.mxu0 0.0
    %2379 = vmatpush.xpose.msra.mxu0 %v2363
    %2380 = vmatpush.xpose.msra.mxu0 %v2361
    %2381 = vmatmul.f32.gmra.mxu0 %v2357
    %v2382 = vpop.f32.mrf.mxu0
    %v2383 = vadd.f32 0.0, %v2382
    %2384 = vmatmul.f32.gmra.mxu0 %v2359
    %v2385 = vpop.f32.mrf.mxu0
    %v2386 = vadd.f32 0.0, %v2385
    %2387 = vdwg.mxu0
    %v2388 = vmul.f32 %v2383, 0.35355338
    %v2389 = vmul.f32 %v2386, 0.35355338
    %v2390 = vsel %vm313, %v2388, -inf
    %2391 = vmax.xlane.f32.xlu0 %v2390
    %v2392 = vpop.xlane.xlu0 %2391
    %v2393 = vsel %vm313, %v2389, -inf
    %2394 = vmax.xlane.f32.xlu0 %v2393
    %v2395 = vpop.xlane.xlu0 %2394
    %v2396 = vsub.f32 %v2388, %v2392
    %v2397 = vsub.f32 %v2389, %v2395
    %v2398 = vmul.f32 %v2396, 1.442695
    %v2399 = vpow.pop %v2398
    %v2400 = vmul.f32 %v2397, 1.442695
    %v2401 = vpow.pop %v2400
    %v2402 = vsel %vm313, %v2399, 0.0
    %2403 = vadd.xlane.f32.xlu0 %v2402
    %v2404 = vpop.xlane.xlu0 %2403
    %v2405 = vsel %vm313, %v2401, 0.0
    %2406 = vadd.xlane.f32.xlu0 %v2405
    %v2407 = vpop.xlane.xlu0 %2406
    %v2408 = vrcp.pop %v2404
    %v2409 = vrcp.pop %v2407
    %v2410 = vmul.f32 %v2399, %v2408
    %v2411 = vmul.f32 %v2401, %v2409
    %2412 = vrot.lane.b32.xlu0 %v1836, 64
    %v2413 = vpop.permute.xlu0 %2412
    %2414 = vrot.lane.b32.xlu0 %v1839, 64
    %v2415 = vpop.permute.xlu0 %2414
    %v2419 = vsel %vm313, %v2410, 0
    %v2422 = vsel %vm313, %v2411, 0
    %2424 = vmatpush.msra.mxu0 0.0
    %2425 = vmatpush.msra.mxu0 0.0
    %2426 = vmatpush.msra.mxu0 0.0
    %2427 = vmatpush.msra.mxu0 0.0
    %2428 = vmatpush.msra.mxu0 0.0
    %2429 = vmatpush.msra.mxu0 0.0
    %2430 = vmatpush.msra.mxu0 0.0
    %2431 = vmatpush.msra.mxu0 0.0
    %2432 = vmatpush.msra.mxu0 0.0
    %2433 = vmatpush.msra.mxu0 0.0
    %2434 = vmatpush.msra.mxu0 0.0
    %2435 = vmatpush.msra.mxu0 0.0
    %2436 = vmatpush.msra.mxu0 0.0
    %2437 = vmatpush.msra.mxu0 0.0
    %2438 = vmatpush.msra.mxu0 %v2415
    %2439 = vmatpush.msra.mxu0 %v2413
    %2440 = vmatmul.f32.gmra.mxu0 %v2419
    %v2441 = vpop.f32.mrf.mxu0
    %v2442 = vadd.f32 0.0, %v2441
    %2443 = vmatmul.f32.gmra.mxu0 %v2422
    %v2444 = vpop.f32.mrf.mxu0
    %v2445 = vadd.f32 0.0, %v2444
    %2446 = vdwg.mxu0
    %2447 = vrot.lane.b32.xlu0 %v1836, 120
    %v2448 = vpop.permute.xlu0 %2447
    %2449 = vrot.lane.b32.xlu0 %v1839, 120
    %v2450 = vpop.permute.xlu0 %2449
    %2451 = vrot.lane.b32.xlu0 %v1836, 88
    %v2452 = vpop.permute.xlu0 %2451
    %2453 = vrot.lane.b32.xlu0 %v1839, 88
    %v2454 = vpop.permute.xlu0 %2453
    %v2455 = vsel %vm279, %v2448, 0
    %v2457 = vsel %vm279, %v2450, 0
    %v2459 = vsel %vm279, %v2452, 0
    %v2461 = vsel %vm279, %v2454, 0
    %2463 = vmatpush.xpose.msra.mxu0 0.0
    %2464 = vmatpush.xpose.msra.mxu0 0.0
    %2465 = vmatpush.xpose.msra.mxu0 0.0
    %2466 = vmatpush.xpose.msra.mxu0 0.0
    %2467 = vmatpush.xpose.msra.mxu0 0.0
    %2468 = vmatpush.xpose.msra.mxu0 0.0
    %2469 = vmatpush.xpose.msra.mxu0 0.0
    %2470 = vmatpush.xpose.msra.mxu0 0.0
    %2471 = vmatpush.xpose.msra.mxu0 0.0
    %2472 = vmatpush.xpose.msra.mxu0 0.0
    %2473 = vmatpush.xpose.msra.mxu0 0.0
    %2474 = vmatpush.xpose.msra.mxu0 0.0
    %2475 = vmatpush.xpose.msra.mxu0 0.0
    %2476 = vmatpush.xpose.msra.mxu0 0.0
    %2477 = vmatpush.xpose.msra.mxu0 %v2461
    %2478 = vmatpush.xpose.msra.mxu0 %v2459
    %2479 = vmatmul.f32.gmra.mxu0 %v2455
    %v2480 = vpop.f32.mrf.mxu0
    %v2481 = vadd.f32 0.0, %v2480
    %2482 = vmatmul.f32.gmra.mxu0 %v2457
    %v2483 = vpop.f32.mrf.mxu0
    %v2484 = vadd.f32 0.0, %v2483
    %2485 = vdwg.mxu0
    %v2486 = vmul.f32 %v2481, 0.35355338
    %v2487 = vmul.f32 %v2484, 0.35355338
    %v2488 = vsel %vm313, %v2486, -inf
    %2489 = vmax.xlane.f32.xlu0 %v2488
    %v2490 = vpop.xlane.xlu0 %2489
    %v2491 = vsel %vm313, %v2487, -inf
    %2492 = vmax.xlane.f32.xlu0 %v2491
    %v2493 = vpop.xlane.xlu0 %2492
    %v2494 = vsub.f32 %v2486, %v2490
    %v2495 = vsub.f32 %v2487, %v2493
    %v2496 = vmul.f32 %v2494, 1.442695
    %v2497 = vpow.pop %v2496
    %v2498 = vmul.f32 %v2495, 1.442695
    %v2499 = vpow.pop %v2498
    %v2500 = vsel %vm313, %v2497, 0.0
    %2501 = vadd.xlane.f32.xlu0 %v2500
    %v2502 = vpop.xlane.xlu0 %2501
    %v2503 = vsel %vm313, %v2499, 0.0
    %2504 = vadd.xlane.f32.xlu0 %v2503
    %v2505 = vpop.xlane.xlu0 %2504
    %v2506 = vrcp.pop %v2502
    %v2507 = vrcp.pop %v2505
    %v2508 = vmul.f32 %v2497, %v2506
    %v2509 = vmul.f32 %v2499, %v2507
    %2510 = vrot.lane.b32.xlu0 %v1836, 56
    %v2511 = vpop.permute.xlu0 %2510
    %2512 = vrot.lane.b32.xlu0 %v1839, 56
    %v2513 = vpop.permute.xlu0 %2512
    %v2517 = vsel %vm313, %v2508, 0
    %v2520 = vsel %vm313, %v2509, 0
    %2522 = vmatpush.msra.mxu0 0.0
    %2523 = vmatpush.msra.mxu0 0.0
    %2524 = vmatpush.msra.mxu0 0.0
    %2525 = vmatpush.msra.mxu0 0.0
    %2526 = vmatpush.msra.mxu0 0.0
    %2527 = vmatpush.msra.mxu0 0.0
    %2528 = vmatpush.msra.mxu0 0.0
    %2529 = vmatpush.msra.mxu0 0.0
    %2530 = vmatpush.msra.mxu0 0.0
    %2531 = vmatpush.msra.mxu0 0.0
    %2532 = vmatpush.msra.mxu0 0.0
    %2533 = vmatpush.msra.mxu0 0.0
    %2534 = vmatpush.msra.mxu0 0.0
    %2535 = vmatpush.msra.mxu0 0.0
    %2536 = vmatpush.msra.mxu0 %v2513
    %2537 = vmatpush.msra.mxu0 %v2511
    %2538 = vmatmul.f32.gmra.mxu0 %v2517
    %v2539 = vpop.f32.mrf.mxu0
    %v2540 = vadd.f32 0.0, %v2539
    %2541 = vmatmul.f32.gmra.mxu0 %v2520
    %v2542 = vpop.f32.mrf.mxu0
    %v2543 = vadd.f32 0.0, %v2542
    %2544 = vdwg.mxu0
    %v2546 = vsel %vm279, %v2540, 0
    %v2549 = vsel %vm279, %v2543, 0
    %2551 = vmatpush.msra.mxu0 0.0
    %2552 = vmatpush.msra.mxu0 0.0
    %2553 = vmatpush.msra.mxu0 0.0
    %2554 = vmatpush.msra.mxu0 0.0
    %2555 = vmatpush.msra.mxu0 0.0
    %2556 = vmatpush.msra.mxu0 0.0
    %2557 = vmatpush.msra.mxu0 0.0
    %2558 = vmatpush.msra.mxu0 0.0
    %2559 = vmatpush.msra.mxu0 0.0
    %2560 = vmatpush.msra.mxu0 0.0
    %2561 = vmatpush.msra.mxu0 0.0
    %2562 = vmatpush.msra.mxu0 0.0
    %2563 = vmatpush.msra.mxu0 0.0
    %2564 = vmatpush.msra.mxu0 0.0
    %2565 = vmatpush.msra.mxu0 0.0
    %2566 = vmatpush.msra.mxu0 %v1689
    %2567 = vmatmul.f32.gmra.mxu0 %v2546
    %v2568 = vpop.f32.mrf.mxu0
    %v2569 = vadd.f32 0.0, %v2568
    %2570 = vmatmul.f32.gmra.mxu0 %v2549
    %v2571 = vpop.f32.mrf.mxu0
    %v2572 = vadd.f32 0.0, %v2571
    %2573 = vdwg.mxu0
    %v2575 = vsel %vm279, %v2442, 0
    %v2578 = vsel %vm279, %v2445, 0
    %2580 = vmatpush.msra.mxu0 0.0
    %2581 = vmatpush.msra.mxu0 0.0
    %2582 = vmatpush.msra.mxu0 0.0
    %2583 = vmatpush.msra.mxu0 0.0
    %2584 = vmatpush.msra.mxu0 0.0
    %2585 = vmatpush.msra.mxu0 0.0
    %2586 = vmatpush.msra.mxu0 0.0
    %2587 = vmatpush.msra.mxu0 0.0
    %2588 = vmatpush.msra.mxu0 0.0
    %2589 = vmatpush.msra.mxu0 0.0
    %2590 = vmatpush.msra.mxu0 0.0
    %2591 = vmatpush.msra.mxu0 0.0
    %2592 = vmatpush.msra.mxu0 0.0
    %2593 = vmatpush.msra.mxu0 0.0
    %2594 = vmatpush.msra.mxu0 0.0
    %2595 = vmatpush.msra.mxu0 %v1688
    %2596 = vmatmul.f32.gmra.mxu0 %v2575
    %v2597 = vpop.f32.mrf.mxu0
    %v2598 = vadd.f32 %v2569, %v2597
    %2599 = vmatmul.f32.gmra.mxu0 %v2578
    %v2600 = vpop.f32.mrf.mxu0
    %v2601 = vadd.f32 %v2572, %v2600
    %2602 = vdwg.mxu0
    %2603 = vrot.lane.b32.xlu0 %v1836, 112
    %v2604 = vpop.permute.xlu0 %2603
    %2605 = vrot.lane.b32.xlu0 %v1839, 112
    %v2606 = vpop.permute.xlu0 %2605
    %2607 = vrot.lane.b32.xlu0 %v1836, 80
    %v2608 = vpop.permute.xlu0 %2607
    %2609 = vrot.lane.b32.xlu0 %v1839, 80
    %v2610 = vpop.permute.xlu0 %2609
    %v2611 = vsel %vm279, %v2604, 0
    %v2613 = vsel %vm279, %v2606, 0
    %v2615 = vsel %vm279, %v2608, 0
    %v2617 = vsel %vm279, %v2610, 0
    %2619 = vmatpush.xpose.msra.mxu0 0.0
    %2620 = vmatpush.xpose.msra.mxu0 0.0
    %2621 = vmatpush.xpose.msra.mxu0 0.0
    %2622 = vmatpush.xpose.msra.mxu0 0.0
    %2623 = vmatpush.xpose.msra.mxu0 0.0
    %2624 = vmatpush.xpose.msra.mxu0 0.0
    %2625 = vmatpush.xpose.msra.mxu0 0.0
    %2626 = vmatpush.xpose.msra.mxu0 0.0
    %2627 = vmatpush.xpose.msra.mxu0 0.0
    %2628 = vmatpush.xpose.msra.mxu0 0.0
    %2629 = vmatpush.xpose.msra.mxu0 0.0
    %2630 = vmatpush.xpose.msra.mxu0 0.0
    %2631 = vmatpush.xpose.msra.mxu0 0.0
    %2632 = vmatpush.xpose.msra.mxu0 0.0
    %2633 = vmatpush.xpose.msra.mxu0 %v2617
    %2634 = vmatpush.xpose.msra.mxu0 %v2615
    %2635 = vmatmul.f32.gmra.mxu0 %v2611
    %v2636 = vpop.f32.mrf.mxu0
    %v2637 = vadd.f32 0.0, %v2636
    %2638 = vmatmul.f32.gmra.mxu0 %v2613
    %v2639 = vpop.f32.mrf.mxu0
    %v2640 = vadd.f32 0.0, %v2639
    %2641 = vdwg.mxu0
    %v2642 = vmul.f32 %v2637, 0.35355338
    %v2643 = vmul.f32 %v2640, 0.35355338
    %v2644 = vsel %vm313, %v2642, -inf
    %2645 = vmax.xlane.f32.xlu0 %v2644
    %v2646 = vpop.xlane.xlu0 %2645
    %v2647 = vsel %vm313, %v2643, -inf
    %2648 = vmax.xlane.f32.xlu0 %v2647
    %v2649 = vpop.xlane.xlu0 %2648
    %v2650 = vsub.f32 %v2642, %v2646
    %v2651 = vsub.f32 %v2643, %v2649
    %v2652 = vmul.f32 %v2650, 1.442695
    %v2653 = vpow.pop %v2652
    %v2654 = vmul.f32 %v2651, 1.442695
    %v2655 = vpow.pop %v2654
    %v2656 = vsel %vm313, %v2653, 0.0
    %2657 = vadd.xlane.f32.xlu0 %v2656
    %v2658 = vpop.xlane.xlu0 %2657
    %v2659 = vsel %vm313, %v2655, 0.0
    %2660 = vadd.xlane.f32.xlu0 %v2659
    %v2661 = vpop.xlane.xlu0 %2660
    %v2662 = vrcp.pop %v2658
    %v2663 = vrcp.pop %v2661
    %v2664 = vmul.f32 %v2653, %v2662
    %v2665 = vmul.f32 %v2655, %v2663
    %2666 = vrot.lane.b32.xlu0 %v1836, 48
    %v2667 = vpop.permute.xlu0 %2666
    %2668 = vrot.lane.b32.xlu0 %v1839, 48
    %v2669 = vpop.permute.xlu0 %2668
    %v2673 = vsel %vm313, %v2664, 0
    %v2676 = vsel %vm313, %v2665, 0
    %2678 = vmatpush.msra.mxu0 0.0
    %2679 = vmatpush.msra.mxu0 0.0
    %2680 = vmatpush.msra.mxu0 0.0
    %2681 = vmatpush.msra.mxu0 0.0
    %2682 = vmatpush.msra.mxu0 0.0
    %2683 = vmatpush.msra.mxu0 0.0
    %2684 = vmatpush.msra.mxu0 0.0
    %2685 = vmatpush.msra.mxu0 0.0
    %2686 = vmatpush.msra.mxu0 0.0
    %2687 = vmatpush.msra.mxu0 0.0
    %2688 = vmatpush.msra.mxu0 0.0
    %2689 = vmatpush.msra.mxu0 0.0
    %2690 = vmatpush.msra.mxu0 0.0
    %2691 = vmatpush.msra.mxu0 0.0
    %2692 = vmatpush.msra.mxu0 %v2669
    %2693 = vmatpush.msra.mxu0 %v2667
    %2694 = vmatmul.f32.gmra.mxu0 %v2673
    %v2695 = vpop.f32.mrf.mxu0
    %v2696 = vadd.f32 0.0, %v2695
    %2697 = vmatmul.f32.gmra.mxu0 %v2676
    %v2698 = vpop.f32.mrf.mxu0
    %v2699 = vadd.f32 0.0, %v2698
    %2700 = vdwg.mxu0
    %v2702 = vsel %vm279, %v2696, 0
    %v2705 = vsel %vm279, %v2699, 0
    %2707 = vmatpush.msra.mxu0 0.0
    %2708 = vmatpush.msra.mxu0 0.0
    %2709 = vmatpush.msra.mxu0 0.0
    %2710 = vmatpush.msra.mxu0 0.0
    %2711 = vmatpush.msra.mxu0 0.0
    %2712 = vmatpush.msra.mxu0 0.0
    %2713 = vmatpush.msra.mxu0 0.0
    %2714 = vmatpush.msra.mxu0 0.0
    %2715 = vmatpush.msra.mxu0 0.0
    %2716 = vmatpush.msra.mxu0 0.0
    %2717 = vmatpush.msra.mxu0 0.0
    %2718 = vmatpush.msra.mxu0 0.0
    %2719 = vmatpush.msra.mxu0 0.0
    %2720 = vmatpush.msra.mxu0 0.0
    %2721 = vmatpush.msra.mxu0 0.0
    %2722 = vmatpush.msra.mxu0 %v1690
    %2723 = vmatmul.f32.gmra.mxu0 %v2702
    %v2724 = vpop.f32.mrf.mxu0
    %v2725 = vadd.f32 0.0, %v2724
    %2726 = vmatmul.f32.gmra.mxu0 %v2705
    %v2727 = vpop.f32.mrf.mxu0
    %v2728 = vadd.f32 0.0, %v2727
    %2729 = vdwg.mxu0
    %v2730 = vadd.f32 %v2598, %v2725
    %v2731 = vadd.f32 %v2601, %v2728
    %2732 = vrot.lane.b32.xlu0 %v1836, 104
    %v2733 = vpop.permute.xlu0 %2732
    %2734 = vrot.lane.b32.xlu0 %v1839, 104
    %v2735 = vpop.permute.xlu0 %2734
    %2736 = vrot.lane.b32.xlu0 %v1836, 72
    %v2737 = vpop.permute.xlu0 %2736
    %2738 = vrot.lane.b32.xlu0 %v1839, 72
    %v2739 = vpop.permute.xlu0 %2738
    %v2740 = vsel %vm279, %v2733, 0
    %v2742 = vsel %vm279, %v2735, 0
    %v2744 = vsel %vm279, %v2737, 0
    %v2746 = vsel %vm279, %v2739, 0
    %2748 = vmatpush.xpose.msra.mxu0 0.0
    %2749 = vmatpush.xpose.msra.mxu0 0.0
    %2750 = vmatpush.xpose.msra.mxu0 0.0
    %2751 = vmatpush.xpose.msra.mxu0 0.0
    %2752 = vmatpush.xpose.msra.mxu0 0.0
    %2753 = vmatpush.xpose.msra.mxu0 0.0
    %2754 = vmatpush.xpose.msra.mxu0 0.0
    %2755 = vmatpush.xpose.msra.mxu0 0.0
    %2756 = vmatpush.xpose.msra.mxu0 0.0
    %2757 = vmatpush.xpose.msra.mxu0 0.0
    %2758 = vmatpush.xpose.msra.mxu0 0.0
    %2759 = vmatpush.xpose.msra.mxu0 0.0
    %2760 = vmatpush.xpose.msra.mxu0 0.0
    %2761 = vmatpush.xpose.msra.mxu0 0.0
    %2762 = vmatpush.xpose.msra.mxu0 %v2746
    %2763 = vmatpush.xpose.msra.mxu0 %v2744
    %2764 = vmatmul.f32.gmra.mxu0 %v2740
    %v2765 = vpop.f32.mrf.mxu0
    %v2766 = vadd.f32 0.0, %v2765
    %2767 = vmatmul.f32.gmra.mxu0 %v2742
    %v2768 = vpop.f32.mrf.mxu0
    %v2769 = vadd.f32 0.0, %v2768
    %2770 = vdwg.mxu0
    %v2771 = vmul.f32 %v2766, 0.35355338
    %v2772 = vmul.f32 %v2769, 0.35355338
    %v2773 = vsel %vm313, %v2771, -inf
    %2774 = vmax.xlane.f32.xlu0 %v2773
    %v2775 = vpop.xlane.xlu0 %2774
    %v2776 = vsel %vm313, %v2772, -inf
    %2777 = vmax.xlane.f32.xlu0 %v2776
    %v2778 = vpop.xlane.xlu0 %2777
    %v2779 = vsub.f32 %v2771, %v2775
    %v2780 = vsub.f32 %v2772, %v2778
    %v2781 = vmul.f32 %v2779, 1.442695
    %v2782 = vpow.pop %v2781
    %v2783 = vmul.f32 %v2780, 1.442695
    %v2784 = vpow.pop %v2783
    %v2785 = vsel %vm313, %v2782, 0.0
    %2786 = vadd.xlane.f32.xlu0 %v2785
    %v2787 = vpop.xlane.xlu0 %2786
    %v2788 = vsel %vm313, %v2784, 0.0
    %2789 = vadd.xlane.f32.xlu0 %v2788
    %v2790 = vpop.xlane.xlu0 %2789
    %v2791 = vrcp.pop %v2787
    %v2792 = vrcp.pop %v2790
    %v2793 = vmul.f32 %v2782, %v2791
    %v2794 = vmul.f32 %v2784, %v2792
    %2795 = vrot.lane.b32.xlu0 %v1836, 40
    %v2796 = vpop.permute.xlu0 %2795
    %2797 = vrot.lane.b32.xlu0 %v1839, 40
    %v2798 = vpop.permute.xlu0 %2797
    %v2802 = vsel %vm313, %v2793, 0
    %v2805 = vsel %vm313, %v2794, 0
    %2807 = vmatpush.msra.mxu0 0.0
    %2808 = vmatpush.msra.mxu0 0.0
    %2809 = vmatpush.msra.mxu0 0.0
    %2810 = vmatpush.msra.mxu0 0.0
    %2811 = vmatpush.msra.mxu0 0.0
    %2812 = vmatpush.msra.mxu0 0.0
    %2813 = vmatpush.msra.mxu0 0.0
    %2814 = vmatpush.msra.mxu0 0.0
    %2815 = vmatpush.msra.mxu0 0.0
    %2816 = vmatpush.msra.mxu0 0.0
    %2817 = vmatpush.msra.mxu0 0.0
    %2818 = vmatpush.msra.mxu0 0.0
    %2819 = vmatpush.msra.mxu0 0.0
    %2820 = vmatpush.msra.mxu0 0.0
    %2821 = vmatpush.msra.mxu0 %v2798
    %2822 = vmatpush.msra.mxu0 %v2796
    %2823 = vmatmul.f32.gmra.mxu0 %v2802
    %v2824 = vpop.f32.mrf.mxu0
    %v2825 = vadd.f32 0.0, %v2824
    %2826 = vmatmul.f32.gmra.mxu0 %v2805
    %v2827 = vpop.f32.mrf.mxu0
    %v2828 = vadd.f32 0.0, %v2827
    %2829 = vdwg.mxu0
    %v2831 = vsel %vm279, %v2825, 0
    %v2834 = vsel %vm279, %v2828, 0
    %2836 = vmatpush.msra.mxu0 0.0
    %2837 = vmatpush.msra.mxu0 0.0
    %2838 = vmatpush.msra.mxu0 0.0
    %2839 = vmatpush.msra.mxu0 0.0
    %2840 = vmatpush.msra.mxu0 0.0
    %2841 = vmatpush.msra.mxu0 0.0
    %2842 = vmatpush.msra.mxu0 0.0
    %2843 = vmatpush.msra.mxu0 0.0
    %2844 = vmatpush.msra.mxu0 0.0
    %2845 = vmatpush.msra.mxu0 0.0
    %2846 = vmatpush.msra.mxu0 0.0
    %2847 = vmatpush.msra.mxu0 0.0
    %2848 = vmatpush.msra.mxu0 0.0
    %2849 = vmatpush.msra.mxu0 0.0
    %2850 = vmatpush.msra.mxu0 0.0
    %2851 = vmatpush.msra.mxu0 %v1691
    %2852 = vmatmul.f32.gmra.mxu0 %v2831
    %v2853 = vpop.f32.mrf.mxu0
    %v2854 = vadd.f32 0.0, %v2853
    %2855 = vmatmul.f32.gmra.mxu0 %v2834
    %v2856 = vpop.f32.mrf.mxu0
    %v2857 = vadd.f32 0.0, %v2856
    %2858 = vdwg.mxu0
    %v2859 = vadd.f32 %v2730, %v2854
    %v2860 = vadd.f32 %v2731, %v2857
    %v2861 = vadd.f32 %v1681, %v2349
    %v2862 = vadd.f32 %v1682, %v2350
    %v2863 = vadd.f32 %v1683, %v2859
    %v2864 = vadd.f32 %v1684, %v2860
    %v2865 = vperm.slane %v1686, 4
    %v2866 = vadd.f32 %v2861, %v2865
    %v2867 = vadd.f32 %v2862, %v2865
    %v2868 = vadd.f32 %v2863, %v2865
    %v2869 = vadd.f32 %v2864, %v2865
    %v2870 = vsel %vm118, %v2866, 0.0
    %2871 = vadd.xlane.f32.xlu0 %v2870
    %v2872 = vpop.xlane.xlu0 %2871
    %v2873 = vsel %vm118, %v2867, 0.0
    %2874 = vadd.xlane.f32.xlu0 %v2873
    %v2875 = vpop.xlane.xlu0 %2874
    %v2876 = vsel %vm118, %v2868, 0.0
    %2877 = vadd.xlane.f32.xlu0 %v2876
    %v2878 = vpop.xlane.xlu0 %2877
    %v2879 = vsel %vm118, %v2869, 0.0
    %2880 = vadd.xlane.f32.xlu0 %v2879
    %v2881 = vpop.xlane.xlu0 %2880
    %v2882 = vmul.f32 %v2872, %v137
    %v2883 = vmul.f32 %v2875, %v137
    %v2884 = vmul.f32 %v2878, %v137
    %v2885 = vmul.f32 %v2881, %v137
    %v2886 = vsub.f32 %v2866, %v2882
    %v2887 = vsub.f32 %v2867, %v2883
    %v2888 = vsub.f32 %v2868, %v2884
    %v2889 = vsub.f32 %v2869, %v2885
    %v2890 = vmul.f32 %v2886, %v2886
    %v2891 = vmul.f32 %v2887, %v2887
    %v2892 = vmul.f32 %v2888, %v2888
    %v2893 = vmul.f32 %v2889, %v2889
    %v2894 = vsel %vm118, %v2890, 0.0
    %2895 = vadd.xlane.f32.xlu0 %v2894
    %v2896 = vpop.xlane.xlu0 %2895
    %v2897 = vsel %vm118, %v2891, 0.0
    %2898 = vadd.xlane.f32.xlu0 %v2897
    %v2899 = vpop.xlane.xlu0 %2898
    %v2900 = vsel %vm118, %v2892, 0.0
    %2901 = vadd.xlane.f32.xlu0 %v2900
    %v2902 = vpop.xlane.xlu0 %2901
    %v2903 = vsel %vm118, %v2893, 0.0
    %2904 = vadd.xlane.f32.xlu0 %v2903
    %v2905 = vpop.xlane.xlu0 %2904
    %v2906 = vmul.f32 %v2896, %v137
    %v2907 = vmul.f32 %v2899, %v137
    %v2908 = vmul.f32 %v2902, %v137
    %v2909 = vmul.f32 %v2905, %v137
    %v2910 = vadd.f32 %v2906, 1e-06
    %v2911 = vadd.f32 %v2907, 1e-06
    %v2912 = vadd.f32 %v2908, 1e-06
    %v2913 = vadd.f32 %v2909, 1e-06
    %v2914 = vrsqrt.pop %v2910
    %v2915 = vmul.f32 %v2914, %v2910
    %v2916 = vmul.f32 %v2915, %v2914
    %v2917 = vmul.f32 0.5, %v2916
    %v2918 = vsub.f32 1.5, %v2917
    %v2919 = vmul.f32 %v2914, %v2918
    %vm2920 = vweird.f32 %v2910
    %vm2921 = vweird.f32 %v2914
    %vm2922 = vmor %vm2920, %vm2921
    %v2923 = vsel %vm2922, %v2914, %v2919
    %v2924 = vrsqrt.pop %v2911
    %v2925 = vmul.f32 %v2924, %v2911
    %v2926 = vmul.f32 %v2925, %v2924
    %v2927 = vmul.f32 0.5, %v2926
    %v2928 = vsub.f32 1.5, %v2927
    %v2929 = vmul.f32 %v2924, %v2928
    %vm2930 = vweird.f32 %v2911
    %vm2931 = vweird.f32 %v2924
    %vm2932 = vmor %vm2930, %vm2931
    %v2933 = vsel %vm2932, %v2924, %v2929
    %v2934 = vrsqrt.pop %v2912
    %v2935 = vmul.f32 %v2934, %v2912
    %v2936 = vmul.f32 %v2935, %v2934
    %v2937 = vmul.f32 0.5, %v2936
    %v2938 = vsub.f32 1.5, %v2937
    %v2939 = vmul.f32 %v2934, %v2938
    %vm2940 = vweird.f32 %v2912
    %vm2941 = vweird.f32 %v2934
    %vm2942 = vmor %vm2940, %vm2941
    %v2943 = vsel %vm2942, %v2934, %v2939
    %v2944 = vrsqrt.pop %v2913
    %v2945 = vmul.f32 %v2944, %v2913
    %v2946 = vmul.f32 %v2945, %v2944
    %v2947 = vmul.f32 0.5, %v2946
    %v2948 = vsub.f32 1.5, %v2947
    %v2949 = vmul.f32 %v2944, %v2948
    %vm2950 = vweird.f32 %v2913
    %vm2951 = vweird.f32 %v2944
    %vm2952 = vmor %vm2950, %vm2951
    %v2953 = vsel %vm2952, %v2944, %v2949
    %v2954 = vmul.f32 %v2886, %v2923
    %v2955 = vmul.f32 %v2887, %v2933
    %v2956 = vmul.f32 %v2888, %v2943
    %v2957 = vmul.f32 %v2889, %v2953
    %v2958 = vperm.slane %v1686, 2
    %v2959 = vmul.f32 %v2954, %v2958
    %v2960 = vmul.f32 %v2955, %v2958
    %v2961 = vmul.f32 %v2956, %v2958
    %v2962 = vmul.f32 %v2957, %v2958
    %v2963 = vperm.slane %v1686, 3
    %v2964 = vadd.f32 %v2959, %v2963
    %v2965 = vadd.f32 %v2960, %v2963
    %v2966 = vadd.f32 %v2961, %v2963
    %v2967 = vadd.f32 %v2962, %v2963
    %s2968 = scalar_lea.vmem %s7, 32
    %v2969 = vld [vmem:[%s2968] sm:$0xff]
    %v2970 = vld [vmem:[%s2968 + $0x8] sm:$0xff]
    %v2971 = vld [vmem:[%s2968 + $0x10] sm:$0xff]
    %v2972 = vld [vmem:[%s2968 + $0x18] sm:$0xff]
    %s2973 = scalar_lea.vmem %s8, 1
    %v2974 = vld [vmem:[%s2973] sm:$0x1]
    %v2976 = vperm.slane %v2974, 0
    %v2979 = vsel %vm118, %v2964, 0
    %v2982 = vsel %vm118, %v2965, 0
    %v2985 = vsel %vm118, %v2966, 0
    %v2988 = vsel %vm118, %v2967, 0
    %2990 = vmatpush.msra.mxu0 0.0
    %2991 = vmatpush.msra.mxu0 0.0
    %2992 = vmatpush.msra.mxu0 0.0
    %2993 = vmatpush.msra.mxu0 0.0
    %2994 = vmatpush.msra.mxu0 0.0
    %2995 = vmatpush.msra.mxu0 0.0
    %2996 = vmatpush.msra.mxu0 0.0
    %2997 = vmatpush.msra.mxu0 0.0
    %2998 = vmatpush.msra.mxu0 0.0
    %2999 = vmatpush.msra.mxu0 0.0
    %3000 = vmatpush.msra.mxu0 0.0
    %3001 = vmatpush.msra.mxu0 0.0
    %3002 = vmatpush.msra.mxu0 %v2972
    %3003 = vmatpush.msra.mxu0 %v2971
    %3004 = vmatpush.msra.mxu0 %v2970
    %3005 = vmatpush.msra.mxu0 %v2969
    %3006 = vmatmul.f32.gmra.mxu0 %v2979
    %v3007 = vpop.f32.mrf.mxu0
    %v3008 = vadd.f32 %v2976, %v3007
    %3009 = vmatmul.f32.gmra.mxu0 %v2982
    %v3010 = vpop.f32.mrf.mxu0
    %v3011 = vadd.f32 %v2976, %v3010
    %3012 = vmatmul.f32.gmra.mxu0 %v2985
    %v3013 = vpop.f32.mrf.mxu0
    %v3014 = vadd.f32 %v2976, %v3013
    %3015 = vmatmul.f32.gmra.mxu0 %v2988
    %v3016 = vpop.f32.mrf.mxu0
    %v3017 = vadd.f32 %v2976, %v3016
    %3018 = vdwg.mxu0
    %v3019 = vmul.f32 %v3008, 0.5
    %v3020 = vmul.f32 %v3011, 0.5
    %v3021 = vmul.f32 %v3014, 0.5
    %v3022 = vmul.f32 %v3017, 0.5
    %v3023 = vmul.f32 %v3008, 0.70710677
    %v3024 = vmul.f32 %v3011, 0.70710677
    %v3025 = vmul.f32 %v3014, 0.70710677
    %v3026 = vmul.f32 %v3017, 0.70710677
    %v3027 = vmul.f32 %v3023, %v3023
    %v3028 = vmin.f32 16.0, %v3027
    %v3029 = vmul.f32 %v3028, 2.1237322e-06
    %v3030 = vadd.f32 %v3029, 0.00028619796
    %v3031 = vmul.f32 %v3028, %v3030
    %v3032 = vadd.f32 %v3031, 0.0036580483
    %v3033 = vmul.f32 %v3028, %v3032
    %v3034 = vadd.f32 %v3033, 0.05243302
    %v3035 = vmul.f32 %v3028, %v3034
    %v3036 = vadd.f32 %v3035, 0.18741608
    %v3037 = vmul.f32 %v3028, %v3036
    %v3038 = vadd.f32 %v3037, 1.1283791
    %v3039 = vmul.f32 %v3023, %v3038
    %v3040 = vmul.f32 %v3028, 3.8918573e-05
    %v3041 = vadd.f32 %v3040, 0.001143296
    %v3042 = vmul.f32 %v3028, %v3041
    %v3043 = vadd.f32 %v3042, 0.014752088
    %v3044 = vmul.f32 %v3028, %v3043
    %v3045 = vadd.f32 %v3044, 0.112945676
    %v3046 = vmul.f32 %v3028, %v3045
    %v3047 = vadd.f32 %v3046, 0.4994258
    %v3048 = vmul.f32 %v3028, %v3047
    %v3049 = vadd.f32 %v3048, 1.0
    %v3050 = vrcp.pop %v3049
    %v3051 = vmul.f32 %v3049, %v3050
    %v3052 = vsub.f32 1.0, %v3051
    %v3053 = vmul.f32 %v3050, %v3052
    %v3054 = vadd.f32 %v3050, %v3053
    %vm3055 = vweird.f32 %v3049
    %vm3056 = vweird.f32 %v3050
    %vm3057 = vmor %vm3055, %vm3056
    %v3058 = vsel %vm3057, %v3050, %v3054
    %v3059 = vand.u32 2147483647, %v3049
    %vm3060 = vcmp.eq.f32.partialorder %v3059, 8.507059e+37
    %v3061 = vand.u32 %v3049, 2147483648
    %v3062 = vor.u32 1.1754944e-38, %v3061
    %v3063 = vsel %vm3060, %v3062, %v3058
    %v3064 = vmul.f32 %v3039, %v3063
    %v3065 = vmin.f32 %v3064, 1.0
    %v3066 = vmax.f32 %v3065, -1.0
    %v3067 = vmul.f32 %v3024, %v3024
    %v3068 = vmin.f32 16.0, %v3067
    %v3069 = vmul.f32 %v3068, 2.1237322e-06
    %v3070 = vadd.f32 %v3069, 0.00028619796
    %v3071 = vmul.f32 %v3068, %v3070
    %v3072 = vadd.f32 %v3071, 0.0036580483
    %v3073 = vmul.f32 %v3068, %v3072
    %v3074 = vadd.f32 %v3073, 0.05243302
    %v3075 = vmul.f32 %v3068, %v3074
    %v3076 = vadd.f32 %v3075, 0.18741608
    %v3077 = vmul.f32 %v3068, %v3076
    %v3078 = vadd.f32 %v3077, 1.1283791
    %v3079 = vmul.f32 %v3024, %v3078
    %v3080 = vmul.f32 %v3068, 3.8918573e-05
    %v3081 = vadd.f32 %v3080, 0.001143296
    %v3082 = vmul.f32 %v3068, %v3081
    %v3083 = vadd.f32 %v3082, 0.014752088
    %v3084 = vmul.f32 %v3068, %v3083
    %v3085 = vadd.f32 %v3084, 0.112945676
    %v3086 = vmul.f32 %v3068, %v3085
    %v3087 = vadd.f32 %v3086, 0.4994258
    %v3088 = vmul.f32 %v3068, %v3087
    %v3089 = vadd.f32 %v3088, 1.0
    %v3090 = vrcp.pop %v3089
    %v3091 = vmul.f32 %v3089, %v3090
    %v3092 = vsub.f32 1.0, %v3091
    %v3093 = vmul.f32 %v3090, %v3092
    %v3094 = vadd.f32 %v3090, %v3093
    %vm3095 = vweird.f32 %v3089
    %vm3096 = vweird.f32 %v3090
    %vm3097 = vmor %vm3095, %vm3096
    %v3098 = vsel %vm3097, %v3090, %v3094
    %v3099 = vand.u32 2147483647, %v3089
    %vm3100 = vcmp.eq.f32.partialorder %v3099, 8.507059e+37
    %v3101 = vand.u32 %v3089, 2147483648
    %v3102 = vor.u32 1.1754944e-38, %v3101
    %v3103 = vsel %vm3100, %v3102, %v3098
    %v3104 = vmul.f32 %v3079, %v3103
    %v3105 = vmin.f32 %v3104, 1.0
    %v3106 = vmax.f32 %v3105, -1.0
    %v3107 = vmul.f32 %v3025, %v3025
    %v3108 = vmin.f32 16.0, %v3107
    %v3109 = vmul.f32 %v3108, 2.1237322e-06
    %v3110 = vadd.f32 %v3109, 0.00028619796
    %v3111 = vmul.f32 %v3108, %v3110
    %v3112 = vadd.f32 %v3111, 0.0036580483
    %v3113 = vmul.f32 %v3108, %v3112
    %v3114 = vadd.f32 %v3113, 0.05243302
    %v3115 = vmul.f32 %v3108, %v3114
    %v3116 = vadd.f32 %v3115, 0.18741608
    %v3117 = vmul.f32 %v3108, %v3116
    %v3118 = vadd.f32 %v3117, 1.1283791
    %v3119 = vmul.f32 %v3025, %v3118
    %v3120 = vmul.f32 %v3108, 3.8918573e-05
    %v3121 = vadd.f32 %v3120, 0.001143296
    %v3122 = vmul.f32 %v3108, %v3121
    %v3123 = vadd.f32 %v3122, 0.014752088
    %v3124 = vmul.f32 %v3108, %v3123
    %v3125 = vadd.f32 %v3124, 0.112945676
    %v3126 = vmul.f32 %v3108, %v3125
    %v3127 = vadd.f32 %v3126, 0.4994258
    %v3128 = vmul.f32 %v3108, %v3127
    %v3129 = vadd.f32 %v3128, 1.0
    %v3130 = vrcp.pop %v3129
    %v3131 = vmul.f32 %v3129, %v3130
    %v3132 = vsub.f32 1.0, %v3131
    %v3133 = vmul.f32 %v3130, %v3132
    %v3134 = vadd.f32 %v3130, %v3133
    %vm3135 = vweird.f32 %v3129
    %vm3136 = vweird.f32 %v3130
    %vm3137 = vmor %vm3135, %vm3136
    %v3138 = vsel %vm3137, %v3130, %v3134
    %v3139 = vand.u32 2147483647, %v3129
    %vm3140 = vcmp.eq.f32.partialorder %v3139, 8.507059e+37
    %v3141 = vand.u32 %v3129, 2147483648
    %v3142 = vor.u32 1.1754944e-38, %v3141
    %v3143 = vsel %vm3140, %v3142, %v3138
    %v3144 = vmul.f32 %v3119, %v3143
    %v3145 = vmin.f32 %v3144, 1.0
    %v3146 = vmax.f32 %v3145, -1.0
    %v3147 = vmul.f32 %v3026, %v3026
    %v3148 = vmin.f32 16.0, %v3147
    %v3149 = vmul.f32 %v3148, 2.1237322e-06
    %v3150 = vadd.f32 %v3149, 0.00028619796
    %v3151 = vmul.f32 %v3148, %v3150
    %v3152 = vadd.f32 %v3151, 0.0036580483
    %v3153 = vmul.f32 %v3148, %v3152
    %v3154 = vadd.f32 %v3153, 0.05243302
    %v3155 = vmul.f32 %v3148, %v3154
    %v3156 = vadd.f32 %v3155, 0.18741608
    %v3157 = vmul.f32 %v3148, %v3156
    %v3158 = vadd.f32 %v3157, 1.1283791
    %v3159 = vmul.f32 %v3026, %v3158
    %v3160 = vmul.f32 %v3148, 3.8918573e-05
    %v3161 = vadd.f32 %v3160, 0.001143296
    %v3162 = vmul.f32 %v3148, %v3161
    %v3163 = vadd.f32 %v3162, 0.014752088
    %v3164 = vmul.f32 %v3148, %v3163
    %v3165 = vadd.f32 %v3164, 0.112945676
    %v3166 = vmul.f32 %v3148, %v3165
    %v3167 = vadd.f32 %v3166, 0.4994258
    %v3168 = vmul.f32 %v3148, %v3167
    %v3169 = vadd.f32 %v3168, 1.0
    %v3170 = vrcp.pop %v3169
    %v3171 = vmul.f32 %v3169, %v3170
    %v3172 = vsub.f32 1.0, %v3171
    %v3173 = vmul.f32 %v3170, %v3172
    %v3174 = vadd.f32 %v3170, %v3173
    %vm3175 = vweird.f32 %v3169
    %vm3176 = vweird.f32 %v3170
    %vm3177 = vmor %vm3175, %vm3176
    %v3178 = vsel %vm3177, %v3170, %v3174
    %v3179 = vand.u32 2147483647, %v3169
    %vm3180 = vcmp.eq.f32.partialorder %v3179, 8.507059e+37
    %v3181 = vand.u32 %v3169, 2147483648
    %v3182 = vor.u32 1.1754944e-38, %v3181
    %v3183 = vsel %vm3180, %v3182, %v3178
    %v3184 = vmul.f32 %v3159, %v3183
    %v3185 = vmin.f32 %v3184, 1.0
    %v3186 = vmax.f32 %v3185, -1.0
    %v3187 = vadd.f32 %v3066, 1.0
    %v3188 = vadd.f32 %v3106, 1.0
    %v3189 = vadd.f32 %v3146, 1.0
    %v3190 = vadd.f32 %v3186, 1.0
    %v3191 = vmul.f32 %v3019, %v3187
    %v3192 = vmul.f32 %v3020, %v3188
    %v3193 = vmul.f32 %v3021, %v3189
    %v3194 = vmul.f32 %v3022, %v3190
    %s3195 = scalar_lea.vmem %s9, 64
    %v3196 = vld [vmem:[%s3195] sm:$0xff]
    %v3197 = vld [vmem:[%s3195 + $0x8] sm:$0xff]
    %v3198 = vld [vmem:[%s3195 + $0x10] sm:$0xff]
    %v3199 = vld [vmem:[%s3195 + $0x18] sm:$0xff]
    %v3200 = vld [vmem:[%s3195 + $0x20] sm:$0xff]
    %v3201 = vld [vmem:[%s3195 + $0x28] sm:$0xff]
    %v3202 = vld [vmem:[%s3195 + $0x30] sm:$0xff]
    %v3203 = vld [vmem:[%s3195 + $0x38] sm:$0xff]
    %v3205 = vsel %vm71, %v3191, 0
    %v3208 = vsel %vm71, %v3192, 0
    %v3211 = vsel %vm71, %v3193, 0
    %v3214 = vsel %vm71, %v3194, 0
    %3216 = vmatpush.msra.mxu0 0.0
    %3217 = vmatpush.msra.mxu0 0.0
    %3218 = vmatpush.msra.mxu0 0.0
    %3219 = vmatpush.msra.mxu0 0.0
    %3220 = vmatpush.msra.mxu0 0.0
    %3221 = vmatpush.msra.mxu0 0.0
    %3222 = vmatpush.msra.mxu0 0.0
    %3223 = vmatpush.msra.mxu0 0.0
    %3224 = vmatpush.msra.mxu0 %v3203
    %3225 = vmatpush.msra.mxu0 %v3202
    %3226 = vmatpush.msra.mxu0 %v3201
    %3227 = vmatpush.msra.mxu0 %v3200
    %3228 = vmatpush.msra.mxu0 %v3199
    %3229 = vmatpush.msra.mxu0 %v3198
    %3230 = vmatpush.msra.mxu0 %v3197
    %3231 = vmatpush.msra.mxu0 %v3196
    %3232 = vmatmul.f32.gmra.mxu0 %v3205
    %v3233 = vpop.f32.mrf.mxu0
    %v3234 = vadd.f32 0.0, %v3233
    %3235 = vmatmul.f32.gmra.mxu0 %v3208
    %v3236 = vpop.f32.mrf.mxu0
    %v3237 = vadd.f32 0.0, %v3236
    %3238 = vmatmul.f32.gmra.mxu0 %v3211
    %v3239 = vpop.f32.mrf.mxu0
    %v3240 = vadd.f32 0.0, %v3239
    %3241 = vmatmul.f32.gmra.mxu0 %v3214
    %v3242 = vpop.f32.mrf.mxu0
    %v3243 = vadd.f32 0.0, %v3242
    %3244 = vdwg.mxu0
    %v3245 = vadd.f32 %v2866, %v3234
    %v3246 = vadd.f32 %v2867, %v3237
    %v3247 = vadd.f32 %v2868, %v3240
    %v3248 = vadd.f32 %v2869, %v3243
    %v3249 = vperm.slane %v1686, 5
    %v3250 = vadd.f32 %v3245, %v3249
    %v3251 = vadd.f32 %v3246, %v3249
    %v3252 = vadd.f32 %v3247, %v3249
    %v3253 = vadd.f32 %v3248, %v3249
    %v3254 = vld [vmem:[%s10] sm:$0x1]
    %v3255 = vld [vmem:[%s10 + $0x1] sm:$0x1]
    %v3256 = vsel %vm118, %v3250, 0.0
    %3257 = vadd.xlane.f32.xlu0 %v3256
    %v3258 = vpop.xlane.xlu0 %3257
    %v3259 = vsel %vm118, %v3251, 0.0
    %3260 = vadd.xlane.f32.xlu0 %v3259
    %v3261 = vpop.xlane.xlu0 %3260
    %v3262 = vsel %vm118, %v3252, 0.0
    %3263 = vadd.xlane.f32.xlu0 %v3262
    %v3264 = vpop.xlane.xlu0 %3263
    %v3265 = vsel %vm118, %v3253, 0.0
    %3266 = vadd.xlane.f32.xlu0 %v3265
    %v3267 = vpop.xlane.xlu0 %3266
    %v3268 = vmul.f32 %v3258, %v137
    %v3269 = vmul.f32 %v3261, %v137
    %v3270 = vmul.f32 %v3264, %v137
    %v3271 = vmul.f32 %v3267, %v137
    %v3272 = vsub.f32 %v3250, %v3268
    %v3273 = vsub.f32 %v3251, %v3269
    %v3274 = vsub.f32 %v3252, %v3270
    %v3275 = vsub.f32 %v3253, %v3271
    %v3276 = vmul.f32 %v3272, %v3272
    %v3277 = vmul.f32 %v3273, %v3273
    %v3278 = vmul.f32 %v3274, %v3274
    %v3279 = vmul.f32 %v3275, %v3275
    %v3280 = vsel %vm118, %v3276, 0.0
    %3281 = vadd.xlane.f32.xlu0 %v3280
    %v3282 = vpop.xlane.xlu0 %3281
    %v3283 = vsel %vm118, %v3277, 0.0
    %3284 = vadd.xlane.f32.xlu0 %v3283
    %v3285 = vpop.xlane.xlu0 %3284
    %v3286 = vsel %vm118, %v3278, 0.0
    %3287 = vadd.xlane.f32.xlu0 %v3286
    %v3288 = vpop.xlane.xlu0 %3287
    %v3289 = vsel %vm118, %v3279, 0.0
    %3290 = vadd.xlane.f32.xlu0 %v3289
    %v3291 = vpop.xlane.xlu0 %3290
    %v3292 = vmul.f32 %v3282, %v137
    %v3293 = vmul.f32 %v3285, %v137
    %v3294 = vmul.f32 %v3288, %v137
    %v3295 = vmul.f32 %v3291, %v137
    %v3296 = vadd.f32 %v3292, 1e-06
    %v3297 = vadd.f32 %v3293, 1e-06
    %v3298 = vadd.f32 %v3294, 1e-06
    %v3299 = vadd.f32 %v3295, 1e-06
    %v3300 = vrsqrt.pop %v3296
    %v3301 = vmul.f32 %v3300, %v3296
    %v3302 = vmul.f32 %v3301, %v3300
    %v3303 = vmul.f32 0.5, %v3302
    %v3304 = vsub.f32 1.5, %v3303
    %v3305 = vmul.f32 %v3300, %v3304
    %vm3306 = vweird.f32 %v3296
    %vm3307 = vweird.f32 %v3300
    %vm3308 = vmor %vm3306, %vm3307
    %v3309 = vsel %vm3308, %v3300, %v3305
    %v3310 = vrsqrt.pop %v3297
    %v3311 = vmul.f32 %v3310, %v3297
    %v3312 = vmul.f32 %v3311, %v3310
    %v3313 = vmul.f32 0.5, %v3312
    %v3314 = vsub.f32 1.5, %v3313
    %v3315 = vmul.f32 %v3310, %v3314
    %vm3316 = vweird.f32 %v3297
    %vm3317 = vweird.f32 %v3310
    %vm3318 = vmor %vm3316, %vm3317
    %v3319 = vsel %vm3318, %v3310, %v3315
    %v3320 = vrsqrt.pop %v3298
    %v3321 = vmul.f32 %v3320, %v3298
    %v3322 = vmul.f32 %v3321, %v3320
    %v3323 = vmul.f32 0.5, %v3322
    %v3324 = vsub.f32 1.5, %v3323
    %v3325 = vmul.f32 %v3320, %v3324
    %vm3326 = vweird.f32 %v3298
    %vm3327 = vweird.f32 %v3320
    %vm3328 = vmor %vm3326, %vm3327
    %v3329 = vsel %vm3328, %v3320, %v3325
    %v3330 = vrsqrt.pop %v3299
    %v3331 = vmul.f32 %v3330, %v3299
    %v3332 = vmul.f32 %v3331, %v3330
    %v3333 = vmul.f32 0.5, %v3332
    %v3334 = vsub.f32 1.5, %v3333
    %v3335 = vmul.f32 %v3330, %v3334
    %vm3336 = vweird.f32 %v3299
    %vm3337 = vweird.f32 %v3330
    %vm3338 = vmor %vm3336, %vm3337
    %v3339 = vsel %vm3338, %v3330, %v3335
    %v3340 = vmul.f32 %v3272, %v3309
    %v3341 = vmul.f32 %v3273, %v3319
    %v3342 = vmul.f32 %v3274, %v3329
    %v3343 = vmul.f32 %v3275, %v3339
    %v3344 = vperm.slane %v3254, 0
    %v3345 = vmul.f32 %v3340, %v3344
    %v3346 = vmul.f32 %v3341, %v3344
    %v3347 = vmul.f32 %v3342, %v3344
    %v3348 = vmul.f32 %v3343, %v3344
    %v3349 = vperm.slane %v3255, 0
    %v3350 = vadd.f32 %v3345, %v3349
    %v3351 = vadd.f32 %v3346, %v3349
    %v3352 = vadd.f32 %v3347, %v3349
    %v3353 = vadd.f32 %v3348, %v3349
    %3354 = vst.msk [vmem:[#allocation5] sm:$0xff] %vm118, %v3350
    %3355 = vst.msk [vmem:[#allocation5 + $0x8] sm:$0xff] %vm118, %v3351
    %3356 = vst.msk [vmem:[#allocation5 + $0x10] sm:$0xff] %vm118, %v3352
    %3357 = vst.msk [vmem:[#allocation5 + $0x18] sm:$0xff] %vm118, %v3353
    // Predicated region
    $region50: #{tpu_custom_call.1} parent=1 // pred_check
      _
    $region51: #{tpu_custom_call.1} parent=1 // pred_check_branch
      %3359 = sbr.rel (0) target = $region53
    $region52: #{tpu_custom_call.1} parent=1 // pred_region
      %3361 = vsyncadd [#allocation4], 0
      %s3362 = sshll.u32 [#allocation5], 4
      %s3363 = int_to_ptr.vmem [resolvable:$true] %s3362
      %s3364 = sshll.u32 %s11, 4
      %s3365 = int_to_ptr.hbm [resolvable:$true] %s3364
      %3370 = dma.vmem_to_hbm [thread:$0]  %s3363, 512, %s3365, [#allocation4], 128, 128, 8
    $region53: #{tpu_custom_call.1} parent=1 // pred_fallthru
      _
    // Predicated region
    $region54: #{tpu_custom_call.1} parent=1 // pred_check
      _
    $region55: #{tpu_custom_call.1} parent=1 // pred_check_branch
      %3372 = sbr.rel (0) target = $region57
    $region56: #{tpu_custom_call.1} parent=1 // pred_region
      %3374 = dma.done [#allocation4], 512
    $region57: #{tpu_custom_call.1} parent=1 // pred_fallthru
      _
    %3375 = vsyncpa [#allocation3], 1
    %3376 = vsyncpa [#allocation4], 1

</llo_original>
